<compile_context>
chip_gen: v7x
topology: tpu7x:2x2x1
jax: 0.10.0
libtpu: 0.0.40
codegen_flags: <defaults>
</compile_context>

<pallas_src>
import functools
import math

import jax
import jax.numpy as jnp
from jax import lax
from jax.experimental import pallas as pl
from jax.experimental.pallas import tpu as pltpu


def gat_fused_kernel(x_src_ref, x_dst_ref, xt_ref, w_ref, w_lt_ref, w_r_ref,
                     bias_ref, o_ref, *, num_heads, out_feats, negative_slope):
    H, F = num_heads, out_feats
    prec = lax.Precision.HIGHEST  # fp32 MXU contraction (default would be bf16)

    # Per-head projected features for ALL source nodes: one fused MXU matmul.
    feat = jnp.dot(x_src_ref[...], w_ref[...],
                   preferred_element_type=jnp.float32,
                   precision=prec)                                # (N, H*F)

    # el logits for all src nodes, already laid out (head, src) = src along lanes.
    el_t = jnp.dot(w_lt_ref[...], xt_ref[...],
                   preferred_element_type=jnp.float32,
                   precision=prec)                                # (H, N)

    # er logits for this destination tile.
    er = jnp.dot(x_dst_ref[...], w_r_ref[...],
                 preferred_element_type=jnp.float32,
                 precision=prec)                                  # (T, H)

    bias = bias_ref[...].astype(jnp.float32)                      # (T, N): 0 / -1e30

    outs = []
    for h in range(H):                                            # static, unrolled
        # e[d, s] = er[d] + el[s]  (dst, src orientation — softmax along lanes)
        e = er[:, h:h + 1] + el_t[h:h + 1, :]                     # (T, N)
        e = jnp.maximum(e, negative_slope * e)                    # LeakyReLU
        e = e + bias                                              # mask non-edges
        m = jnp.max(e, axis=-1, keepdims=True)                    # (T, 1)
        p = jnp.exp(e - m)                                        # masked -> exact 0
        denom = jnp.sum(p, axis=-1, keepdims=True)                # > 0 (>=1 edge/dst)
        a = p / denom                                             # exact softmax
        # rst[d] = sum_s a[d, s] * feat[s]  — transpose-free MXU matmul.
        outs.append(jnp.dot(a, feat[:, h * F:(h + 1) * F],
                            preferred_element_type=jnp.float32,
                            precision=prec))                      # (T, F)

    # Single lane-dense store of the full (T, H*F) tile.
    o_ref[...] = jnp.concatenate(outs, axis=-1).astype(o_ref.dtype)


def gat_conv_forward(x, adj, weight, attn_l, attn_r, num_heads, out_feats,
                     *, dst_tile=None, negative_slope=0.2):
    """x: (N, D_in), adj: (N_src, N_dst) with adj[u, v]=1 iff edge u->v,
    weight: (H*F, D_in) PyTorch Linear layout, attn_l/attn_r: (1, H, F).
    Returns (N, H*F), matching `rst.view(len(rst), -1)` of the PyTorch module."""
    N, D_in = x.shape
    H, F = num_heads, out_feats
    HF = H * F

    T = N if dst_tile is None else dst_tile
    assert N % T == 0, "dst_tile must divide N (pad the graph otherwise)"
    assert T == N or T % 16 == 0, "dst_tile must be a multiple of 16 (bf16 mask tiling)"

    # fc(x) = x @ weight.T ; column h*F + f of w_all is (head h, feature f).
    w_all = weight.T                                      # (D_in, H*F)
    w3 = w_all.reshape(D_in, H, F)
    al = attn_l.reshape(H, F)
    ar = attn_r.reshape(H, F)
    # Fold attn params into the projection (exact f32 multiply+reduce, no matmul):
    # el = x @ w_l, er = x @ w_r.
    w_l = jnp.sum(w3 * al[None, :, :], axis=-1)           # (D_in, H)
    w_r = jnp.sum(w3 * ar[None, :, :], axis=-1)           # (D_in, H)
    w_lt = w_l.T                                          # (H, D_in)
    xt = x.T                                              # (D_in, N) -> lane-oriented src

    # Additive softmax mask in (dst, src) orientation; bf16 halves the only
    # O(N^2) HBM input. Upcast to f32 in-kernel before the softmax.
    bias = jnp.where(adj.T > 0, 0.0, -1e30).astype(jnp.bfloat16)   # (N_dst, N_src)

    kernel = functools.partial(gat_fused_kernel, num_heads=H, out_feats=F,
                               negative_slope=negative_slope)

    return pl.pallas_call(
        kernel,
        out_shape=jax.ShapeDtypeStruct((N, HF), x.dtype),
        grid_spec=pltpu.PrefetchScalarGridSpec(
            num_scalar_prefetch=0,
            grid=(N // T,),                                       # dst tiles
            in_specs=[
                pl.BlockSpec((N, D_in), lambda d: (0, 0)),        # x (all src nodes)
                pl.BlockSpec((T, D_in), lambda d: (d, 0)),        # x (dst tile)
                pl.BlockSpec((D_in, N), lambda d: (0, 0)),        # x.T (for el logits)
                pl.BlockSpec((D_in, HF), lambda d: (0, 0)),       # W_all
                pl.BlockSpec((H, D_in), lambda d: (0, 0)),        # w_l.T
                pl.BlockSpec((D_in, H), lambda d: (0, 0)),        # w_r
                pl.BlockSpec((T, N), lambda d: (d, 0)),           # mask bias (bf16)
            ],
            out_specs=pl.BlockSpec((T, HF), lambda d: (d, 0)),    # lane-dense (N, H*F)
        ),
        compiler_params=pltpu.CompilerParams(
            dimension_semantics=("parallel",)),                   # 2 TCs on v7x
    )(x, x, xt, w_all, w_lt, w_r, bias)


def gat_conv_reference(x, adj, weight, attn_l, attn_r, num_heads, out_feats):
    """Pure-JAX reference mirroring the PyTorch/DGL forward (fp32-exact matmuls)."""
    N, D_in = x.shape
    H, F = num_heads, out_feats
    prec = lax.Precision.HIGHEST
    feat = jnp.dot(x, weight.T, precision=prec).reshape(N, H, F)  # (N, H, F)
    el = jnp.sum(feat * attn_l, axis=-1)                          # (N, H)
    er = jnp.sum(feat * attn_r, axis=-1)                          # (N, H)
    e = el[:, None, :] + er[None, :, :]                           # (N_src, N_dst, H)
    e = jnp.where(e > 0, e, 0.2 * e)
    mask = (adj > 0)[:, :, None]
    e = jnp.where(mask, e, -1e30)
    m = jnp.max(e, axis=0, keepdims=True)
    p = jnp.where(mask, jnp.exp(e - m), 0.0)
    a = p / jnp.sum(p, axis=0, keepdims=True)                     # (N_src, N_dst, H)
    rst = jnp.einsum('uvh,uhf->vhf', a, feat, precision=prec)     # (N_dst, H, F)
    return rst.reshape(N, H * F)


def xavier_normal(key, shape, gain):
    # nn.init.xavier_normal_ semantics for 2D (fan_out, fan_in) and (1, H, F) params.
    if len(shape) == 2:
        fan_out, fan_in = shape
    else:
        receptive = 1
        for s in shape[2:]:
            receptive *= s
        fan_in = shape[1] * receptive
        fan_out = shape[0] * receptive
    std = gain * math.sqrt(2.0 / (fan_in + fan_out))
    return std * jax.random.normal(key, shape, dtype=jnp.float32)


if __name__ == "__main__":
    key = jax.random.PRNGKey(0)
    k_x, k_adj, k_w, k_al, k_ar = jax.random.split(key, 5)

    # Shapes consistent with GATConv(in_feats=32, out_feats=16, num_heads=4).
    N, D_in, F, H = 64, 32, 16, 4
    gain = math.sqrt(2.0)  # calculate_gain('relu')

    x = jax.random.normal(k_x, (N, D_in), dtype=jnp.float32)

    # Random sparse-ish graph with self-loops (guarantees no 0-in-degree dst node,
    # matching the module's zero-in-degree requirement).
    adj = (jax.random.uniform(k_adj, (N, N)) < 0.25).astype(jnp.float32)
    adj = jnp.maximum(adj, jnp.eye(N, dtype=jnp.float32))

    weight = xavier_normal(k_w, (H * F, D_in), gain)      # fc.weight (out, in)
    attn_l = xavier_normal(k_al, (1, H, F), gain)
    attn_r = xavier_normal(k_ar, (1, H, F), gain)

    out = gat_conv_forward(x, adj, weight, attn_l, attn_r, H, F, dst_tile=32)
    out = jax.block_until_ready(out)

    ref = gat_conv_reference(x, adj, weight, attn_l, attn_r, H, F)
    assert out.shape == (N, H * F)
    assert jnp.allclose(out, ref, atol=2e-3, rtol=2e-3), "mismatch vs reference"

    # TODO(synk): feat_drop / attn_drop (p=0 here), residual and activation are
    # disabled in this configuration and therefore not implemented in-kernel.
    print("KERNEL_OK")
</pallas_src>

<mosaic_0001>
module attributes {stable_mosaic.version = 11 : i64} {
  func.func @gat_fused_kernel(%arg0: i32, %arg1: memref<64x32xf32, #tpu.memory_space<vmem>>, %arg2: memref<32x32xf32, #tpu.memory_space<vmem>>, %arg3: memref<32x64xf32, #tpu.memory_space<vmem>>, %arg4: memref<32x64xf32, #tpu.memory_space<vmem>>, %arg5: memref<4x32xf32, #tpu.memory_space<vmem>>, %arg6: memref<32x4xf32, #tpu.memory_space<vmem>>, %arg7: memref<32x64xbf16, #tpu.memory_space<vmem>>, %arg8: memref<32x64xf32, #tpu.memory_space<vmem>>) attributes {dimension_semantics = [#tpu.dimension_semantics<parallel>], iteration_bounds = array<i64: 2>, scalar_prefetch = 0 : i64, scratch_operands = 0 : i64, tpu.core_type = #tpu.core_type<tc>, window_params = [{pipeline_mode = #tpu.pipeline_mode<synchronous>, transform_indices = @transform_0, window_bounds = array<i64: 64, 32>}, {transform_indices = @transform_1, window_bounds = array<i64: 32, 32>}, {pipeline_mode = #tpu.pipeline_mode<synchronous>, transform_indices = @transform_2, window_bounds = array<i64: 32, 64>}, {pipeline_mode = #tpu.pipeline_mode<synchronous>, transform_indices = @transform_3, window_bounds = array<i64: 32, 64>}, {pipeline_mode = #tpu.pipeline_mode<synchronous>, transform_indices = @transform_4, window_bounds = array<i64: 4, 32>}, {pipeline_mode = #tpu.pipeline_mode<synchronous>, transform_indices = @transform_5, window_bounds = array<i64: 32, 4>}, {transform_indices = @transform_6, window_bounds = array<i64: 32, 64>}, {transform_indices = @transform_7, window_bounds = array<i64: 32, 64>}]} {
    %c0 = arith.constant 0 : index
    %c0_0 = arith.constant 0 : index
    %0 = vector.load %arg1[%c0, %c0_0] : memref<64x32xf32, #tpu.memory_space<vmem>>, vector<64x32xf32>
    %c0_1 = arith.constant 0 : index
    %c0_2 = arith.constant 0 : index
    %1 = vector.load %arg4[%c0_1, %c0_2] : memref<32x64xf32, #tpu.memory_space<vmem>>, vector<32x64xf32>
    %cst = arith.constant dense<0.000000e+00> : vector<64x64xf32>
    %2 = tpu.matmul %0, %1, %cst {dimension_numbers = #tpu.dot_dimension_numbers<[1], [0], [0], [1], [0, 0, 1, 1], [], []>, precision = #tpu.contract_precision<fp32>} : vector<64x32xf32>, vector<32x64xf32>, vector<64x64xf32> -> vector<64x64xf32>
    %c0_3 = arith.constant 0 : index
    %c0_4 = arith.constant 0 : index
    %3 = vector.load %arg5[%c0_3, %c0_4] : memref<4x32xf32, #tpu.memory_space<vmem>>, vector<4x32xf32>
    %c0_5 = arith.constant 0 : index
    %c0_6 = arith.constant 0 : index
    %4 = vector.load %arg3[%c0_5, %c0_6] : memref<32x64xf32, #tpu.memory_space<vmem>>, vector<32x64xf32>
    %cst_7 = arith.constant dense<0.000000e+00> : vector<4x64xf32>
    %5 = tpu.matmul %3, %4, %cst_7 {dimension_numbers = #tpu.dot_dimension_numbers<[1], [0], [0], [1], [0, 0, 1, 1], [], []>, precision = #tpu.contract_precision<fp32>} : vector<4x32xf32>, vector<32x64xf32>, vector<4x64xf32> -> vector<4x64xf32>
    %c0_8 = arith.constant 0 : index
    %c0_9 = arith.constant 0 : index
    %6 = vector.load %arg2[%c0_8, %c0_9] : memref<32x32xf32, #tpu.memory_space<vmem>>, vector<32x32xf32>
    %c0_10 = arith.constant 0 : index
    %c0_11 = arith.constant 0 : index
    %7 = vector.load %arg6[%c0_10, %c0_11] : memref<32x4xf32, #tpu.memory_space<vmem>>, vector<32x4xf32>
    %cst_12 = arith.constant dense<0.000000e+00> : vector<32x4xf32>
    %8 = tpu.matmul %6, %7, %cst_12 {dimension_numbers = #tpu.dot_dimension_numbers<[1], [0], [0], [1], [0, 0, 1, 1], [], []>, precision = #tpu.contract_precision<fp32>} : vector<32x32xf32>, vector<32x4xf32>, vector<32x4xf32> -> vector<32x4xf32>
    %c0_13 = arith.constant 0 : index
    %c0_14 = arith.constant 0 : index
    %9 = vector.load %arg7[%c0_13, %c0_14] : memref<32x64xbf16, #tpu.memory_space<vmem>>, vector<32x64xbf16>
    %10 = arith.extf %9 : vector<32x64xbf16> to vector<32x64xf32>
    %11 = vector.extract_strided_slice %8 {offsets = [0, 0], sizes = [32, 1], strides = [1, 1]} : vector<32x4xf32> to vector<32x1xf32>
    %12 = vector.extract_strided_slice %5 {offsets = [0, 0], sizes = [1, 64], strides = [1, 1]} : vector<4x64xf32> to vector<1x64xf32>
    %13 = vector.broadcast %11 : vector<32x1xf32> to vector<32x64xf32>
    %14 = vector.broadcast %12 : vector<1x64xf32> to vector<32x64xf32>
    %15 = arith.addf %13, %14 : vector<32x64xf32>
    %cst_15 = arith.constant 2.000000e-01 : f32
    %16 = vector.broadcast %cst_15 : f32 to vector<32x64xf32>
    %17 = arith.mulf %16, %15 : vector<32x64xf32>
    %18 = arith.maximumf %15, %17 : vector<32x64xf32>
    %19 = arith.addf %18, %10 : vector<32x64xf32>
    %cst_16 = arith.constant dense<0xFF800000> : vector<32xf32>
    %20 = vector.multi_reduction <maximumf>, %19, %cst_16 [1] : vector<32x64xf32> to vector<32xf32>
    %21 = vector.shape_cast %20 : vector<32xf32> to vector<32x1xf32>
    %22 = vector.broadcast %21 : vector<32x1xf32> to vector<32x64xf32>
    %23 = arith.subf %19, %22 : vector<32x64xf32>
    %24 = math.exp %23 : vector<32x64xf32>
    %cst_17 = arith.constant dense<0.000000e+00> : vector<32xf32>
    %25 = vector.multi_reduction <add>, %24, %cst_17 [1] : vector<32x64xf32> to vector<32xf32>
    %26 = vector.shape_cast %25 : vector<32xf32> to vector<32x1xf32>
    %27 = vector.broadcast %26 : vector<32x1xf32> to vector<32x64xf32>
    %28 = arith.divf %24, %27 : vector<32x64xf32>
    %29 = vector.extract_strided_slice %2 {offsets = [0, 0], sizes = [64, 16], strides = [1, 1]} : vector<64x64xf32> to vector<64x16xf32>
    %cst_18 = arith.constant dense<0.000000e+00> : vector<32x16xf32>
    %30 = tpu.matmul %28, %29, %cst_18 {dimension_numbers = #tpu.dot_dimension_numbers<[1], [0], [0], [1], [0, 0, 1, 1], [], []>, precision = #tpu.contract_precision<fp32>} : vector<32x64xf32>, vector<64x16xf32>, vector<32x16xf32> -> vector<32x16xf32>
    %31 = vector.extract_strided_slice %8 {offsets = [0, 1], sizes = [32, 1], strides = [1, 1]} : vector<32x4xf32> to vector<32x1xf32>
    %32 = vector.extract_strided_slice %5 {offsets = [1, 0], sizes = [1, 64], strides = [1, 1]} : vector<4x64xf32> to vector<1x64xf32>
    %33 = vector.broadcast %31 : vector<32x1xf32> to vector<32x64xf32>
    %34 = vector.broadcast %32 : vector<1x64xf32> to vector<32x64xf32>
    %35 = arith.addf %33, %34 : vector<32x64xf32>
    %cst_19 = arith.constant 2.000000e-01 : f32
    %36 = vector.broadcast %cst_19 : f32 to vector<32x64xf32>
    %37 = arith.mulf %36, %35 : vector<32x64xf32>
    %38 = arith.maximumf %35, %37 : vector<32x64xf32>
    %39 = arith.addf %38, %10 : vector<32x64xf32>
    %cst_20 = arith.constant dense<0xFF800000> : vector<32xf32>
    %40 = vector.multi_reduction <maximumf>, %39, %cst_20 [1] : vector<32x64xf32> to vector<32xf32>
    %41 = vector.shape_cast %40 : vector<32xf32> to vector<32x1xf32>
    %42 = vector.broadcast %41 : vector<32x1xf32> to vector<32x64xf32>
    %43 = arith.subf %39, %42 : vector<32x64xf32>
    %44 = math.exp %43 : vector<32x64xf32>
    %cst_21 = arith.constant dense<0.000000e+00> : vector<32xf32>
    %45 = vector.multi_reduction <add>, %44, %cst_21 [1] : vector<32x64xf32> to vector<32xf32>
    %46 = vector.shape_cast %45 : vector<32xf32> to vector<32x1xf32>
    %47 = vector.broadcast %46 : vector<32x1xf32> to vector<32x64xf32>
    %48 = arith.divf %44, %47 : vector<32x64xf32>
    %49 = vector.extract_strided_slice %2 {offsets = [0, 16], sizes = [64, 16], strides = [1, 1]} : vector<64x64xf32> to vector<64x16xf32>
    %cst_22 = arith.constant dense<0.000000e+00> : vector<32x16xf32>
    %50 = tpu.matmul %48, %49, %cst_22 {dimension_numbers = #tpu.dot_dimension_numbers<[1], [0], [0], [1], [0, 0, 1, 1], [], []>, precision = #tpu.contract_precision<fp32>} : vector<32x64xf32>, vector<64x16xf32>, vector<32x16xf32> -> vector<32x16xf32>
    %51 = vector.extract_strided_slice %8 {offsets = [0, 2], sizes = [32, 1], strides = [1, 1]} : vector<32x4xf32> to vector<32x1xf32>
    %52 = vector.extract_strided_slice %5 {offsets = [2, 0], sizes = [1, 64], strides = [1, 1]} : vector<4x64xf32> to vector<1x64xf32>
    %53 = vector.broadcast %51 : vector<32x1xf32> to vector<32x64xf32>
    %54 = vector.broadcast %52 : vector<1x64xf32> to vector<32x64xf32>
    %55 = arith.addf %53, %54 : vector<32x64xf32>
    %cst_23 = arith.constant 2.000000e-01 : f32
    %56 = vector.broadcast %cst_23 : f32 to vector<32x64xf32>
    %57 = arith.mulf %56, %55 : vector<32x64xf32>
    %58 = arith.maximumf %55, %57 : vector<32x64xf32>
    %59 = arith.addf %58, %10 : vector<32x64xf32>
    %cst_24 = arith.constant dense<0xFF800000> : vector<32xf32>
    %60 = vector.multi_reduction <maximumf>, %59, %cst_24 [1] : vector<32x64xf32> to vector<32xf32>
    %61 = vector.shape_cast %60 : vector<32xf32> to vector<32x1xf32>
    %62 = vector.broadcast %61 : vector<32x1xf32> to vector<32x64xf32>
    %63 = arith.subf %59, %62 : vector<32x64xf32>
    %64 = math.exp %63 : vector<32x64xf32>
    %cst_25 = arith.constant dense<0.000000e+00> : vector<32xf32>
    %65 = vector.multi_reduction <add>, %64, %cst_25 [1] : vector<32x64xf32> to vector<32xf32>
    %66 = vector.shape_cast %65 : vector<32xf32> to vector<32x1xf32>
    %67 = vector.broadcast %66 : vector<32x1xf32> to vector<32x64xf32>
    %68 = arith.divf %64, %67 : vector<32x64xf32>
    %69 = vector.extract_strided_slice %2 {offsets = [0, 32], sizes = [64, 16], strides = [1, 1]} : vector<64x64xf32> to vector<64x16xf32>
    %cst_26 = arith.constant dense<0.000000e+00> : vector<32x16xf32>
    %70 = tpu.matmul %68, %69, %cst_26 {dimension_numbers = #tpu.dot_dimension_numbers<[1], [0], [0], [1], [0, 0, 1, 1], [], []>, precision = #tpu.contract_precision<fp32>} : vector<32x64xf32>, vector<64x16xf32>, vector<32x16xf32> -> vector<32x16xf32>
    %71 = vector.extract_strided_slice %8 {offsets = [0, 3], sizes = [32, 1], strides = [1, 1]} : vector<32x4xf32> to vector<32x1xf32>
    %72 = vector.extract_strided_slice %5 {offsets = [3, 0], sizes = [1, 64], strides = [1, 1]} : vector<4x64xf32> to vector<1x64xf32>
    %73 = vector.broadcast %71 : vector<32x1xf32> to vector<32x64xf32>
    %74 = vector.broadcast %72 : vector<1x64xf32> to vector<32x64xf32>
    %75 = arith.addf %73, %74 : vector<32x64xf32>
    %cst_27 = arith.constant 2.000000e-01 : f32
    %76 = vector.broadcast %cst_27 : f32 to vector<32x64xf32>
    %77 = arith.mulf %76, %75 : vector<32x64xf32>
    %78 = arith.maximumf %75, %77 : vector<32x64xf32>
    %79 = arith.addf %78, %10 : vector<32x64xf32>
    %cst_28 = arith.constant dense<0xFF800000> : vector<32xf32>
    %80 = vector.multi_reduction <maximumf>, %79, %cst_28 [1] : vector<32x64xf32> to vector<32xf32>
    %81 = vector.shape_cast %80 : vector<32xf32> to vector<32x1xf32>
    %82 = vector.broadcast %81 : vector<32x1xf32> to vector<32x64xf32>
    %83 = arith.subf %79, %82 : vector<32x64xf32>
    %84 = math.exp %83 : vector<32x64xf32>
    %cst_29 = arith.constant dense<0.000000e+00> : vector<32xf32>
    %85 = vector.multi_reduction <add>, %84, %cst_29 [1] : vector<32x64xf32> to vector<32xf32>
    %86 = vector.shape_cast %85 : vector<32xf32> to vector<32x1xf32>
    %87 = vector.broadcast %86 : vector<32x1xf32> to vector<32x64xf32>
    %88 = arith.divf %84, %87 : vector<32x64xf32>
    %89 = vector.extract_strided_slice %2 {offsets = [0, 48], sizes = [64, 16], strides = [1, 1]} : vector<64x64xf32> to vector<64x16xf32>
    %cst_30 = arith.constant dense<0.000000e+00> : vector<32x16xf32>
    %90 = tpu.matmul %88, %89, %cst_30 {dimension_numbers = #tpu.dot_dimension_numbers<[1], [0], [0], [1], [0, 0, 1, 1], [], []>, precision = #tpu.contract_precision<fp32>} : vector<32x64xf32>, vector<64x16xf32>, vector<32x16xf32> -> vector<32x16xf32>
    %91 = tpu.concatenate %30, %50, %70, %90 in 1 : vector<32x16xf32>, vector<32x16xf32>, vector<32x16xf32>, vector<32x16xf32> -> vector<32x64xf32>
    %c0_31 = arith.constant 0 : index
    %c0_32 = arith.constant 0 : index
    %92 = vector.load %arg8[%c0_31, %c0_32] : memref<32x64xf32, #tpu.memory_space<vmem>>, vector<32x64xf32>
    tpu.vector_store %arg8[%c0_31, %c0_32], %91 {strides = array<i32>} : memref<32x64xf32, #tpu.memory_space<vmem>>, vector<32x64xf32>,
    return
  }
  func.func @transform_0(%arg0: i32) -> (i32, i32) {
    %c0_i32 = arith.constant 0 : i32
    %c0_i32_0 = arith.constant 0 : i32
    %c0_i32_1 = arith.constant 0 : i32
    return %c0_i32, %c0_i32_0 : i32, i32
  }
  func.func @transform_1(%arg0: i32) -> (i32, i32) {
    %c0_i32 = arith.constant 0 : i32
    %c0_i32_0 = arith.constant 0 : i32
    return %arg0, %c0_i32 : i32, i32
  }
  func.func @transform_2(%arg0: i32) -> (i32, i32) {
    %c0_i32 = arith.constant 0 : i32
    %c0_i32_0 = arith.constant 0 : i32
    %c0_i32_1 = arith.constant 0 : i32
    return %c0_i32, %c0_i32_0 : i32, i32
  }
  func.func @transform_3(%arg0: i32) -> (i32, i32) {
    %c0_i32 = arith.constant 0 : i32
    %c0_i32_0 = arith.constant 0 : i32
    %c0_i32_1 = arith.constant 0 : i32
    return %c0_i32, %c0_i32_0 : i32, i32
  }
  func.func @transform_4(%arg0: i32) -> (i32, i32) {
    %c0_i32 = arith.constant 0 : i32
    %c0_i32_0 = arith.constant 0 : i32
    %c0_i32_1 = arith.constant 0 : i32
    return %c0_i32, %c0_i32_0 : i32, i32
  }
  func.func @transform_5(%arg0: i32) -> (i32, i32) {
    %c0_i32 = arith.constant 0 : i32
    %c0_i32_0 = arith.constant 0 : i32
    %c0_i32_1 = arith.constant 0 : i32
    return %c0_i32, %c0_i32_0 : i32, i32
  }
  func.func @transform_6(%arg0: i32) -> (i32, i32) {
    %c0_i32 = arith.constant 0 : i32
    %c0_i32_0 = arith.constant 0 : i32
    return %arg0, %c0_i32 : i32, i32
  }
  func.func @transform_7(%arg0: i32) -> (i32, i32) {
    %c0_i32 = arith.constant 0 : i32
    %c0_i32_0 = arith.constant 0 : i32
    return %arg0, %c0_i32 : i32, i32
  }
}

</mosaic_0001>

<llo_original>
// kernel: tpu_custom_call.1
$region0: #{tpu_custom_call.1}
  #allocation0 [shape = 'u32[]', space=smem, size = 0x4, offset = 0x4, fixed_abs, tag = 'smem constant byte address 0x4 - core index']
  #allocation1 [shape = 'u32[144,128]{1,0:T(1,128)}', space=vmem, size = 0x12000, scoped, tag = 'internal scratch']
  %s0 = inlined_call_operand.vmem [shape: f32[64,32], index: 0, kind: input, shape index: {}]
  %s1 = inlined_call_operand.vmem [shape: f32[64,32], index: 1, kind: input, shape index: {}]
  %s2 = inlined_call_operand.vmem [shape: f32[32,64], index: 2, kind: input, shape index: {}]
  %s3 = inlined_call_operand.vmem [shape: f32[32,64], index: 3, kind: input, shape index: {}]
  %s4 = inlined_call_operand.vmem [shape: f32[4,32], index: 4, kind: input, shape index: {}]
  %s5 = inlined_call_operand.vmem [shape: f32[32,4], index: 5, kind: input, shape index: {}]
  %s6 = inlined_call_operand.vmem [shape: bf16[64,64], index: 6, kind: input, shape index: {}]
  %s7 = inlined_call_operand.hbm [shape: f32[64,64], index: 7, kind: output, shape index: {}]
  %s8 = sld [smem:[#allocation0]]
  $region61: #{tpu_custom_call.1} parent=0
    _
  %s10 = ssub.s32 1, %s8
  %s11 = scalar_select 0, %s10, %s8
  $region1: #{tpu_custom_call.1} parent=0
    #allocation2 [shape = 'u8[32768]{0}', space=vmem, size = 0x8000, scoped, tag = 'output window, operand 0']
    #allocation3 [shape = 's32[2]{0}', space=sflag, size = 0x8, scoped, tag = 'scoped memory for tpu_custom_call.1']
    %12 = vsyncpa [#allocation3], 0
    %s13 = scalar_lea.sflag [#allocation3], 1
    %14 = vsyncpa %s13, 0
    loop: start=0, step=1, limit=4
    $region2: #{tpu_custom_call.1} parent=1 // loop_pre_header
      _
    $region3: #{tpu_custom_call.1} parent=1 // loop_header
      %s16 = sphi 0, %s20
      %p17 = scmp.ge.s32.totalorder %s16, 4
      %s24 = sphi 0, %s24
      %s26 = sphi 0, %s24
      %s27 = sphi 0, %s26
      %s41 = sphi 0, %s27
      %s47 = sphi 0, %s49
      %s50 = sphi 0, %s47
      %s51 = sphi 0, %s50
      %s67 = sphi 0, %s51
      %s71 = sphi 0, %s71
      %s73 = sphi 0, %s71
      %s74 = sphi 0, %s73
      %s88 = sphi 0, %s74
      %s92 = sphi 0, %s92
      %s94 = sphi 0, %s92
      %s95 = sphi 0, %s94
      %s109 = sphi 0, %s95
      %s113 = sphi 0, %s113
      %s115 = sphi 0, %s113
      %s116 = sphi 0, %s115
      %s130 = sphi 0, %s116
      %s134 = sphi 0, %s134
      %s136 = sphi 0, %s134
      %s137 = sphi 0, %s136
      %s151 = sphi 0, %s137
      %s157 = sphi 0, %s159
      %s160 = sphi 0, %s157
      %s161 = sphi 0, %s160
      %s177 = sphi 0, %s161
      %s183 = sphi 0, %s185
      %s186 = sphi 0, %s183
      %s187 = sphi 0, %s186
      %s203 = sphi 0, %s187
    $region4: #{tpu_custom_call.1} parent=1 // loop_header_branch
      %19 = sbr.rel (%p17) target = $region8
    $region5: #{tpu_custom_call.1} parent=1 // loop_body
      %s21 = ssub.s32 %s16, 1
      %s22 = ssub.s32 %s16, 2
      %s23 = sadd.s32 %s16, 1
      %s25 = sadd.s32 %s24, 1
      %p28 = scmp.eq.s32.totalorder %s16, 1
      %p29 = scmp.ne.s32.totalorder %s24, %s26
      %p30 = scmp.eq.s32.totalorder %s16, 0
      %p31 = por %p29, %p30
      %p32 = scmp.ne.s32.totalorder %s24, %s26
      %p33 = scmp.eq.s32.totalorder %s21, 1
      %p34 = por %p32, %p33
      %p35 = scmp.ne.s32.totalorder %s26, %s27
      %p36 = scmp.eq.s32.totalorder %s21, 0
      %p37 = por %p35, %p36
      %p38 = scmp.ne.s32.totalorder %s26, %s27
      %p39 = scmp.eq.s32.totalorder %s22, 1
      %p40 = por %p38, %p39
      %p42 = scmp.ne.s32.totalorder %s27, %s41
      %p43 = scmp.eq.s32.totalorder %s22, 0
      %p44 = por %p42, %p43
      %s45 = ssub.s32 %s16, %s23
      %p46 = scmp.eq.s32.totalorder %s45, 0
      %s48 = sadd.s32 %s47, 1
      %s49 = scalar_select %p46, %s47, %s48
      %p52 = pneg %p46
      %p53 = scmp.eq.s32.totalorder %s16, 1
      %p54 = por %p52, %p53
      %p55 = scmp.ne.s32.totalorder %s47, %s50
      %p56 = scmp.eq.s32.totalorder %s16, 0
      %p57 = por %p55, %p56
      %p58 = scmp.ne.s32.totalorder %s47, %s50
      %p59 = scmp.eq.s32.totalorder %s21, 1
      %p60 = por %p58, %p59
      %p61 = scmp.ne.s32.totalorder %s50, %s51
      %p62 = scmp.eq.s32.totalorder %s21, 0
      %p63 = por %p61, %p62
      %p64 = scmp.ne.s32.totalorder %s50, %s51
      %p65 = scmp.eq.s32.totalorder %s22, 1
      %p66 = por %p64, %p65
      %p68 = scmp.ne.s32.totalorder %s51, %s67
      %p69 = scmp.eq.s32.totalorder %s22, 0
      %p70 = por %p68, %p69
      %s72 = sadd.s32 %s71, 1
      %p75 = scmp.eq.s32.totalorder %s16, 1
      %p76 = scmp.ne.s32.totalorder %s71, %s73
      %p77 = scmp.eq.s32.totalorder %s16, 0
      %p78 = por %p76, %p77
      %p79 = scmp.ne.s32.totalorder %s71, %s73
      %p80 = scmp.eq.s32.totalorder %s21, 1
      %p81 = por %p79, %p80
      %p82 = scmp.ne.s32.totalorder %s73, %s74
      %p83 = scmp.eq.s32.totalorder %s21, 0
      %p84 = por %p82, %p83
      %p85 = scmp.ne.s32.totalorder %s73, %s74
      %p86 = scmp.eq.s32.totalorder %s22, 1
      %p87 = por %p85, %p86
      %p89 = scmp.ne.s32.totalorder %s74, %s88
      %p90 = scmp.eq.s32.totalorder %s22, 0
      %p91 = por %p89, %p90
      %s93 = sadd.s32 %s92, 1
      %p96 = scmp.eq.s32.totalorder %s16, 1
      %p97 = scmp.ne.s32.totalorder %s92, %s94
      %p98 = scmp.eq.s32.totalorder %s16, 0
      %p99 = por %p97, %p98
      %p100 = scmp.ne.s32.totalorder %s92, %s94
      %p101 = scmp.eq.s32.totalorder %s21, 1
      %p102 = por %p100, %p101
      %p103 = scmp.ne.s32.totalorder %s94, %s95
      %p104 = scmp.eq.s32.totalorder %s21, 0
      %p105 = por %p103, %p104
      %p106 = scmp.ne.s32.totalorder %s94, %s95
      %p107 = scmp.eq.s32.totalorder %s22, 1
      %p108 = por %p106, %p107
      %p110 = scmp.ne.s32.totalorder %s95, %s109
      %p111 = scmp.eq.s32.totalorder %s22, 0
      %p112 = por %p110, %p111
      %s114 = sadd.s32 %s113, 1
      %p117 = scmp.eq.s32.totalorder %s16, 1
      %p118 = scmp.ne.s32.totalorder %s113, %s115
      %p119 = scmp.eq.s32.totalorder %s16, 0
      %p120 = por %p118, %p119
      %p121 = scmp.ne.s32.totalorder %s113, %s115
      %p122 = scmp.eq.s32.totalorder %s21, 1
      %p123 = por %p121, %p122
      %p124 = scmp.ne.s32.totalorder %s115, %s116
      %p125 = scmp.eq.s32.totalorder %s21, 0
      %p126 = por %p124, %p125
      %p127 = scmp.ne.s32.totalorder %s115, %s116
      %p128 = scmp.eq.s32.totalorder %s22, 1
      %p129 = por %p127, %p128
      %p131 = scmp.ne.s32.totalorder %s116, %s130
      %p132 = scmp.eq.s32.totalorder %s22, 0
      %p133 = por %p131, %p132
      %s135 = sadd.s32 %s134, 1
      %p138 = scmp.eq.s32.totalorder %s16, 1
      %p139 = scmp.ne.s32.totalorder %s134, %s136
      %p140 = scmp.eq.s32.totalorder %s16, 0
      %p141 = por %p139, %p140
      %p142 = scmp.ne.s32.totalorder %s134, %s136
      %p143 = scmp.eq.s32.totalorder %s21, 1
      %p144 = por %p142, %p143
      %p145 = scmp.ne.s32.totalorder %s136, %s137
      %p146 = scmp.eq.s32.totalorder %s21, 0
      %p147 = por %p145, %p146
      %p148 = scmp.ne.s32.totalorder %s136, %s137
      %p149 = scmp.eq.s32.totalorder %s22, 1
      %p150 = por %p148, %p149
      %p152 = scmp.ne.s32.totalorder %s137, %s151
      %p153 = scmp.eq.s32.totalorder %s22, 0
      %p154 = por %p152, %p153
      %s155 = ssub.s32 %s16, %s23
      %p156 = scmp.eq.s32.totalorder %s155, 0
      %s158 = sadd.s32 %s157, 1
      %s159 = scalar_select %p156, %s157, %s158
      %p162 = pneg %p156
      %p163 = scmp.eq.s32.totalorder %s16, 1
      %p164 = por %p162, %p163
      %p165 = scmp.ne.s32.totalorder %s157, %s160
      %p166 = scmp.eq.s32.totalorder %s16, 0
      %p167 = por %p165, %p166
      %p168 = scmp.ne.s32.totalorder %s157, %s160
      %p169 = scmp.eq.s32.totalorder %s21, 1
      %p170 = por %p168, %p169
      %p171 = scmp.ne.s32.totalorder %s160, %s161
      %p172 = scmp.eq.s32.totalorder %s21, 0
      %p173 = por %p171, %p172
      %p174 = scmp.ne.s32.totalorder %s160, %s161
      %p175 = scmp.eq.s32.totalorder %s22, 1
      %p176 = por %p174, %p175
      %p178 = scmp.ne.s32.totalorder %s161, %s177
      %p179 = scmp.eq.s32.totalorder %s22, 0
      %p180 = por %p178, %p179
      %s181 = ssub.s32 %s16, %s23
      %p182 = scmp.eq.s32.totalorder %s181, 0
      %s184 = sadd.s32 %s183, 1
      %s185 = scalar_select %p182, %s183, %s184
      %p188 = pneg %p182
      %p189 = scmp.eq.s32.totalorder %s16, 1
      %p190 = por %p188, %p189
      %p191 = scmp.ne.s32.totalorder %s183, %s186
      %p192 = scmp.eq.s32.totalorder %s16, 0
      %p193 = por %p191, %p192
      %p194 = scmp.ne.s32.totalorder %s183, %s186
      %p195 = scmp.eq.s32.totalorder %s21, 1
      %p196 = por %p194, %p195
      %p197 = scmp.ne.s32.totalorder %s186, %s187
      %p198 = scmp.eq.s32.totalorder %s21, 0
      %p199 = por %p197, %p198
      %p200 = scmp.ne.s32.totalorder %s186, %s187
      %p201 = scmp.eq.s32.totalorder %s22, 1
      %p202 = por %p200, %p201
      %p204 = scmp.ne.s32.totalorder %s187, %s203
      %p205 = scmp.eq.s32.totalorder %s22, 0
      %p206 = por %p204, %p205
      %p207 = scmp.le.s32.totalorder 1, %s16
      %p208 = scmp.lt.s32.totalorder %s16, 3
      %p209 = pnand %p207, %p208
      %p210 = pneg %p209
      // Predicated region
      $region9: #{tpu_custom_call.1} parent=5 // pred_check
        _
      $region10: #{tpu_custom_call.1} parent=5 // pred_check_branch
        %212 = sbr.rel (%p209) target = $region12
      $region11: #{tpu_custom_call.1} parent=5 // pred_region
        %s213 = ssub.s32 %s16, 1
        // Predicated region
        $region13: #{tpu_custom_call.1} parent=11 // pred_check
          %p214 = pneg %p37
        $region14: #{tpu_custom_call.1} parent=11 // pred_check_branch
          %216 = sbr.rel (%p214) target = $region16
        $region15: #{tpu_custom_call.1} parent=11 // pred_region
          _
        $region16: #{tpu_custom_call.1} parent=11 // pred_fallthru
          _
        // Predicated region
        $region17: #{tpu_custom_call.1} parent=11 // pred_check
          %p217 = pneg %p84
        $region18: #{tpu_custom_call.1} parent=11 // pred_check_branch
          %219 = sbr.rel (%p217) target = $region20
        $region19: #{tpu_custom_call.1} parent=11 // pred_region
          _
        $region20: #{tpu_custom_call.1} parent=11 // pred_fallthru
          _
        // Predicated region
        $region21: #{tpu_custom_call.1} parent=11 // pred_check
          %p220 = pneg %p105
        $region22: #{tpu_custom_call.1} parent=11 // pred_check_branch
          %222 = sbr.rel (%p220) target = $region24
        $region23: #{tpu_custom_call.1} parent=11 // pred_region
          _
        $region24: #{tpu_custom_call.1} parent=11 // pred_fallthru
          _
        // Predicated region
        $region25: #{tpu_custom_call.1} parent=11 // pred_check
          %p223 = pneg %p126
        $region26: #{tpu_custom_call.1} parent=11 // pred_check_branch
          %225 = sbr.rel (%p223) target = $region28
        $region27: #{tpu_custom_call.1} parent=11 // pred_region
          _
        $region28: #{tpu_custom_call.1} parent=11 // pred_fallthru
          _
        // Predicated region
        $region29: #{tpu_custom_call.1} parent=11 // pred_check
          %p226 = pneg %p147
        $region30: #{tpu_custom_call.1} parent=11 // pred_check_branch
          %228 = sbr.rel (%p226) target = $region32
        $region31: #{tpu_custom_call.1} parent=11 // pred_region
          _
        $region32: #{tpu_custom_call.1} parent=11 // pred_fallthru
          _
      $region12: #{tpu_custom_call.1} parent=5 // pred_fallthru
        _
      %p229 = scmp.lt.s32.totalorder %s16, 2
      // Predicated region
      $region33: #{tpu_custom_call.1} parent=5 // pred_check
        %p230 = pneg %p229
      $region34: #{tpu_custom_call.1} parent=5 // pred_check_branch
        %232 = sbr.rel (%p230) target = $region36
      $region35: #{tpu_custom_call.1} parent=5 // pred_region
        // Predicated region
        $region37: #{tpu_custom_call.1} parent=35 // pred_check
          %p233 = pneg %p57
        $region38: #{tpu_custom_call.1} parent=35 // pred_check_branch
          %235 = sbr.rel (%p233) target = $region40
        $region39: #{tpu_custom_call.1} parent=35 // pred_region
          %s236 = smul.u32 4, %s16
          %p237 = scmp.lt.s32.totalorder %s236, 7
          %s238 = scalar_select %p237, %s236, 7
          %s239 = smul.addr %s238, 8
          %s240 = scalar_lea.vmem %s1, %s239
          %s241 = smul.u32 4, %s16
        $region40: #{tpu_custom_call.1} parent=35 // pred_fallthru
          _
        // Predicated region
        $region41: #{tpu_custom_call.1} parent=35 // pred_check
          %p242 = pneg %p167
        $region42: #{tpu_custom_call.1} parent=35 // pred_check_branch
          %244 = sbr.rel (%p242) target = $region44
        $region43: #{tpu_custom_call.1} parent=35 // pred_region
          %s245 = smul.u32 4, %s16
          %p246 = scmp.lt.s32.totalorder %s245, 7
          %s247 = scalar_select %p246, %s245, 7
          %s248 = smul.addr %s247, 4
          %s249 = scalar_lea.vmem %s6, %s248
          %s250 = smul.u32 4, %s16
        $region44: #{tpu_custom_call.1} parent=35 // pred_fallthru
          _
      $region36: #{tpu_custom_call.1} parent=5 // pred_fallthru
        _
      %p251 = scmp.le.s32.totalorder 1, %s16
      %p252 = scmp.lt.s32.totalorder %s16, 3
      %p253 = pnand %p251, %p252
      %p254 = pneg %p253
      // Predicated region
      $region45: #{tpu_custom_call.1} parent=5 // pred_check
        _
      $region46: #{tpu_custom_call.1} parent=5 // pred_check_branch
        %256 = sbr.rel (%p253) target = $region48
      $region47: #{tpu_custom_call.1} parent=5 // pred_region
        %s257 = ssub.s32 %s16, 1
        %p258 = pneg %p37
        %p259 = pneg %p34
        %s260 = smul.u32 4, %s21
        %p261 = scmp.lt.s32.totalorder %s260, 7
        %s262 = scalar_select %p261, %s260, 7
        %s263 = smul.addr %s262, 8
        %s264 = scalar_lea.vmem %s1, %s263
        %p265 = pneg %p63
        %p266 = pneg %p60
        %p267 = pneg %p84
        %p268 = pneg %p81
        %p269 = pneg %p105
        %p270 = pneg %p102
        %p271 = pneg %p126
        %p272 = pneg %p123
        %p273 = pneg %p147
        %p274 = pneg %p144
        %s275 = smul.u32 4, %s21
        %p276 = scmp.lt.s32.totalorder %s275, 7
        %s277 = scalar_select %p276, %s275, 7
        %s278 = smul.addr %s277, 4
        %s279 = scalar_lea.vmem %s6, %s278
        %p280 = pneg %p173
        %p281 = pneg %p170
        %p282 = pneg %p199
        %p283 = pneg %p196
        %s284 = sand.u32 %s186, 1
        %s285 = scalar_lea.sflag [#allocation3], %s284
        %s286 = sand.u32 %s186, 1
        %s287 = smul.addr %s286, 32
        %s288 = scalar_lea.vmem [#allocation2], %s287
        %s289 = smul.u32 4, %s21
        %p290 = scmp.lt.s32.totalorder %s289, 7
        %s291 = scalar_select %p290, %s289, 7
        %s292 = smul.addr %s291, 8
        %s293 = scalar_lea.vmem %s1, %s292
        %s294 = smul.u32 4, %s21
        %s295 = smul.u32 4, %s21
        %p296 = scmp.lt.s32.totalorder %s295, 7
        %s297 = scalar_select %p296, %s295, 7
        %s298 = smul.addr %s297, 4
        %s299 = scalar_lea.vmem %s6, %s298
        %s300 = smul.u32 4, %s21
        %s301 = smul.u32 4, %s21
        %v302 = vld [vmem:[%s0] sm:$0xff]
        %v303 = vld [vmem:[%s0 + $0x8] sm:$0xff]
        %v304 = vld [vmem:[%s0 + $0x10] sm:$0xff]
        %v305 = vld [vmem:[%s0 + $0x18] sm:$0xff]
        %v306 = vld [vmem:[%s0 + $0x20] sm:$0xff]
        %v307 = vld [vmem:[%s0 + $0x28] sm:$0xff]
        %v308 = vld [vmem:[%s0 + $0x30] sm:$0xff]
        %v309 = vld [vmem:[%s0 + $0x38] sm:$0xff]
        %v310 = vld [vmem:[%s3] sm:$0xff]
        %v311 = vld [vmem:[%s3 + $0x8] sm:$0xff]
        %v312 = vld [vmem:[%s3 + $0x10] sm:$0xff]
        %v313 = vld [vmem:[%s3 + $0x18] sm:$0xff]
        %vm314 = vcmask 261120
        %v316 = vsel %vm314, %v302, 0
        %v319 = vsel %vm314, %v303, 0
        %v322 = vsel %vm314, %v304, 0
        %v325 = vsel %vm314, %v305, 0
        %v328 = vsel %vm314, %v306, 0
        %v331 = vsel %vm314, %v307, 0
        %v334 = vsel %vm314, %v308, 0
        %v337 = vsel %vm314, %v309, 0
        %339 = vmatprep.subr.mxu0 0.0
        %v340 = vand.u32 %v310, 4294901760
        %341 = vmatpush1.msra.mxu0 %v340
        %342 = vmatprep.subr.mxu0 0.0
        %v343 = vand.u32 %v311, 4294901760
        %344 = vmatpush1.msra.mxu0 %v343
        %345 = vmatprep.subr.mxu0 0.0
        %v346 = vand.u32 %v312, 4294901760
        %347 = vmatpush1.msra.mxu0 %v346
        %348 = vmatprep.subr.mxu0 0.0
        %v349 = vand.u32 %v313, 4294901760
        %350 = vmatpush1.msra.mxu0 %v349
        %351 = vmatprep.subr.mxu0 0.0
        %352 = vmatpush1.msra.mxu0 0.0
        %353 = vmatprep.subr.mxu0 0.0
        %354 = vmatpush1.msra.mxu0 0.0
        %355 = vmatprep.subr.mxu0 0.0
        %356 = vmatpush1.msra.mxu0 0.0
        %357 = vmatprep.subr.mxu0 0.0
        %358 = vmatpush1.msra.mxu0 0.0
        %359 = vmatprep.subr.mxu0 0.0
        %360 = vmatpush1.msra.mxu0 0.0
        %361 = vmatprep.subr.mxu0 0.0
        %362 = vmatpush1.msra.mxu0 0.0
        %363 = vmatprep.subr.mxu0 0.0
        %364 = vmatpush1.msra.mxu0 0.0
        %365 = vmatprep.subr.mxu0 0.0
        %366 = vmatpush1.msra.mxu0 0.0
        %367 = vmatprep.subr.mxu0 0.0
        %368 = vmatpush1.msra.mxu0 0.0
        %369 = vmatprep.subr.mxu0 0.0
        %370 = vmatpush1.msra.mxu0 0.0
        %371 = vmatprep.subr.mxu0 0.0
        %372 = vmatpush1.msra.mxu0 0.0
        %373 = vmatprep.subr.mxu0 0.0
        %374 = vmatpush1.msra.mxu0 0.0
        %375 = vmatprep.subr.mxu0 0.0
        %376 = vmatpush1.msra.mxu0 0.0
        %377 = vmatprep.subr.mxu0 0.0
        %378 = vmatpush1.msra.mxu0 0.0
        %379 = vmatprep.subr.mxu0 0.0
        %380 = vmatpush1.msra.mxu0 0.0
        %381 = vmatprep.subr.mxu0 0.0
        %382 = vmatpush1.msra.mxu0 0.0
        %383 = vmatprep.subr.mxu0 0.0
        %384 = vmatpush1.msra.mxu0 0.0
        %385 = vmatprep.subr.mxu0 0.0
        %386 = vmatpush1.msra.mxu0 0.0
        %387 = vmatprep.subr.mxu0 0.0
        %388 = vmatpush1.msra.mxu0 0.0
        %389 = vmatprep.subr.mxu0 0.0
        %390 = vmatpush1.msra.mxu0 0.0
        %391 = vmatprep.subr.mxu0 0.0
        %392 = vmatpush1.msra.mxu0 0.0
        %393 = vmatprep.subr.mxu0 0.0
        %394 = vmatpush1.msra.mxu0 0.0
        %395 = vmatprep.subr.mxu0 0.0
        %396 = vmatpush1.msra.mxu0 0.0
        %397 = vmatprep.subr.mxu0 0.0
        %398 = vmatpush1.msra.mxu0 0.0
        %399 = vmatprep.subr.mxu0 0.0
        %400 = vmatpush1.msra.mxu0 0.0
        %401 = vmatprep.subr.mxu0 0.0
        %402 = vmatpush1.msra.mxu0 0.0
        %403 = vmatprep.subr.mxu0 0.0
        %404 = vmatpush1.msra.mxu0 0.0
        %405 = vmatprep.subr.mxu0 0.0
        %406 = vmatpush1.msra.mxu0 0.0
        %407 = vmatprep.mubr.f32.mxu0 0.0
        %v408 = vand.u32 %v316, 4294901760
        %v409 = vsub.f32 %v316, %v408
        %v410 = vand.u32 %v409, 4294901760
        %v411 = vsub.f32 %v409, %v410
        %v412 = vand.u32 %v411, 4294901760
        %413 = vmatmul.mubr.f32.gmra.mrb[0].mxu0 %v412
        %v414 = vpop.f32.mrb[0].mxu0
        %v415 = vadd.f32 0.0, %v414
        %v416 = vpop.f32.mrb[0].mxu0
        %417 = vmatprep.mubr.f32.mxu0 0.0
        %v418 = vand.u32 %v319, 4294901760
        %v419 = vsub.f32 %v319, %v418
        %v420 = vand.u32 %v419, 4294901760
        %v421 = vsub.f32 %v419, %v420
        %v422 = vand.u32 %v421, 4294901760
        %423 = vmatmul.mubr.f32.gmra.mrb[0].mxu0 %v422
        %v424 = vpop.f32.mrb[0].mxu0
        %v425 = vadd.f32 0.0, %v424
        %v426 = vpop.f32.mrb[0].mxu0
        %427 = vmatprep.mubr.f32.mxu0 0.0
        %v428 = vand.u32 %v322, 4294901760
        %v429 = vsub.f32 %v322, %v428
        %v430 = vand.u32 %v429, 4294901760
        %v431 = vsub.f32 %v429, %v430
        %v432 = vand.u32 %v431, 4294901760
        %433 = vmatmul.mubr.f32.gmra.mrb[0].mxu0 %v432
        %v434 = vpop.f32.mrb[0].mxu0
        %v435 = vadd.f32 0.0, %v434
        %v436 = vpop.f32.mrb[0].mxu0
        %437 = vmatprep.mubr.f32.mxu0 0.0
        %v438 = vand.u32 %v325, 4294901760
        %v439 = vsub.f32 %v325, %v438
        %v440 = vand.u32 %v439, 4294901760
        %v441 = vsub.f32 %v439, %v440
        %v442 = vand.u32 %v441, 4294901760
        %443 = vmatmul.mubr.f32.gmra.mrb[0].mxu0 %v442
        %v444 = vpop.f32.mrb[0].mxu0
        %v445 = vadd.f32 0.0, %v444
        %v446 = vpop.f32.mrb[0].mxu0
        %447 = vmatprep.mubr.f32.mxu0 0.0
        %v448 = vand.u32 %v328, 4294901760
        %v449 = vsub.f32 %v328, %v448
        %v450 = vand.u32 %v449, 4294901760
        %v451 = vsub.f32 %v449, %v450
        %v452 = vand.u32 %v451, 4294901760
        %453 = vmatmul.mubr.f32.gmra.mrb[0].mxu0 %v452
        %v454 = vpop.f32.mrb[0].mxu0
        %v455 = vadd.f32 0.0, %v454
        %v456 = vpop.f32.mrb[0].mxu0
        %457 = vmatprep.mubr.f32.mxu0 0.0
        %v458 = vand.u32 %v331, 4294901760
        %v459 = vsub.f32 %v331, %v458
        %v460 = vand.u32 %v459, 4294901760
        %v461 = vsub.f32 %v459, %v460
        %v462 = vand.u32 %v461, 4294901760
        %463 = vmatmul.mubr.f32.gmra.mrb[0].mxu0 %v462
        %v464 = vpop.f32.mrb[0].mxu0
        %v465 = vadd.f32 0.0, %v464
        %v466 = vpop.f32.mrb[0].mxu0
        %467 = vmatprep.mubr.f32.mxu0 0.0
        %v468 = vand.u32 %v334, 4294901760
        %v469 = vsub.f32 %v334, %v468
        %v470 = vand.u32 %v469, 4294901760
        %v471 = vsub.f32 %v469, %v470
        %v472 = vand.u32 %v471, 4294901760
        %473 = vmatmul.mubr.f32.gmra.mrb[0].mxu0 %v472
        %v474 = vpop.f32.mrb[0].mxu0
        %v475 = vadd.f32 0.0, %v474
        %v476 = vpop.f32.mrb[0].mxu0
        %477 = vmatprep.mubr.f32.mxu0 0.0
        %v478 = vand.u32 %v337, 4294901760
        %v479 = vsub.f32 %v337, %v478
        %v480 = vand.u32 %v479, 4294901760
        %v481 = vsub.f32 %v479, %v480
        %v482 = vand.u32 %v481, 4294901760
        %483 = vmatmul.mubr.f32.gmra.mrb[0].mxu0 %v482
        %v484 = vpop.f32.mrb[0].mxu0
        %v485 = vadd.f32 0.0, %v484
        %v486 = vpop.f32.mrb[0].mxu0
        %487 = vdwg.mxu0
        %488 = vmatprep.subr.mxu0 0.0
        %v489 = vand.u32 %v310, 4294901760
        %v490 = vsub.f32 %v310, %v489
        %v491 = vand.u32 %v490, 4294901760
        %v492 = vsub.f32 %v490, %v491
        %v493 = vand.u32 %v492, 4294901760
        %494 = vmatpush1.msra.mxu0 %v493
        %495 = vmatprep.subr.mxu0 0.0
        %v496 = vand.u32 %v311, 4294901760
        %v497 = vsub.f32 %v311, %v496
        %v498 = vand.u32 %v497, 4294901760
        %v499 = vsub.f32 %v497, %v498
        %v500 = vand.u32 %v499, 4294901760
        %501 = vmatpush1.msra.mxu0 %v500
        %502 = vmatprep.subr.mxu0 0.0
        %v503 = vand.u32 %v312, 4294901760
        %v504 = vsub.f32 %v312, %v503
        %v505 = vand.u32 %v504, 4294901760
        %v506 = vsub.f32 %v504, %v505
        %v507 = vand.u32 %v506, 4294901760
        %508 = vmatpush1.msra.mxu0 %v507
        %509 = vmatprep.subr.mxu0 0.0
        %v510 = vand.u32 %v313, 4294901760
        %v511 = vsub.f32 %v313, %v510
        %v512 = vand.u32 %v511, 4294901760
        %v513 = vsub.f32 %v511, %v512
        %v514 = vand.u32 %v513, 4294901760
        %515 = vmatpush1.msra.mxu0 %v514
        %516 = vmatprep.subr.mxu0 0.0
        %517 = vmatpush1.msra.mxu0 0.0
        %518 = vmatprep.subr.mxu0 0.0
        %519 = vmatpush1.msra.mxu0 0.0
        %520 = vmatprep.subr.mxu0 0.0
        %521 = vmatpush1.msra.mxu0 0.0
        %522 = vmatprep.subr.mxu0 0.0
        %523 = vmatpush1.msra.mxu0 0.0
        %524 = vmatprep.subr.mxu0 0.0
        %525 = vmatpush1.msra.mxu0 0.0
        %526 = vmatprep.subr.mxu0 0.0
        %527 = vmatpush1.msra.mxu0 0.0
        %528 = vmatprep.subr.mxu0 0.0
        %529 = vmatpush1.msra.mxu0 0.0
        %530 = vmatprep.subr.mxu0 0.0
        %531 = vmatpush1.msra.mxu0 0.0
        %532 = vmatprep.subr.mxu0 0.0
        %533 = vmatpush1.msra.mxu0 0.0
        %534 = vmatprep.subr.mxu0 0.0
        %535 = vmatpush1.msra.mxu0 0.0
        %536 = vmatprep.subr.mxu0 0.0
        %537 = vmatpush1.msra.mxu0 0.0
        %538 = vmatprep.subr.mxu0 0.0
        %539 = vmatpush1.msra.mxu0 0.0
        %540 = vmatprep.subr.mxu0 0.0
        %541 = vmatpush1.msra.mxu0 0.0
        %542 = vmatprep.subr.mxu0 0.0
        %543 = vmatpush1.msra.mxu0 0.0
        %544 = vmatprep.subr.mxu0 0.0
        %545 = vmatpush1.msra.mxu0 0.0
        %546 = vmatprep.subr.mxu0 0.0
        %547 = vmatpush1.msra.mxu0 0.0
        %548 = vmatprep.subr.mxu0 0.0
        %549 = vmatpush1.msra.mxu0 0.0
        %550 = vmatprep.subr.mxu0 0.0
        %551 = vmatpush1.msra.mxu0 0.0
        %552 = vmatprep.subr.mxu0 0.0
        %553 = vmatpush1.msra.mxu0 0.0
        %554 = vmatprep.subr.mxu0 0.0
        %555 = vmatpush1.msra.mxu0 0.0
        %556 = vmatprep.subr.mxu0 0.0
        %557 = vmatpush1.msra.mxu0 0.0
        %558 = vmatprep.subr.mxu0 0.0
        %559 = vmatpush1.msra.mxu0 0.0
        %560 = vmatprep.subr.mxu0 0.0
        %561 = vmatpush1.msra.mxu0 0.0
        %562 = vmatprep.subr.mxu0 0.0
        %563 = vmatpush1.msra.mxu0 0.0
        %564 = vmatprep.subr.mxu0 0.0
        %565 = vmatpush1.msra.mxu0 0.0
        %566 = vmatprep.subr.mxu0 0.0
        %567 = vmatpush1.msra.mxu0 0.0
        %568 = vmatprep.subr.mxu0 0.0
        %569 = vmatpush1.msra.mxu0 0.0
        %570 = vmatprep.subr.mxu0 0.0
        %571 = vmatpush1.msra.mxu0 0.0
        %572 = vmatprep.mubr.f32.mxu0 0.0
        %v573 = vand.u32 %v316, 4294901760
        %574 = vmatmul.mubr.f32.gmra.mrb[0].mxu0 %v573
        %v575 = vpop.f32.mrb[0].mxu0
        %v576 = vadd.f32 %v415, %v575
        %v577 = vpop.f32.mrb[0].mxu0
        %578 = vmatprep.mubr.f32.mxu0 0.0
        %v579 = vand.u32 %v319, 4294901760
        %580 = vmatmul.mubr.f32.gmra.mrb[0].mxu0 %v579
        %v581 = vpop.f32.mrb[0].mxu0
        %v582 = vadd.f32 %v425, %v581
        %v583 = vpop.f32.mrb[0].mxu0
        %584 = vmatprep.mubr.f32.mxu0 0.0
        %v585 = vand.u32 %v322, 4294901760
        %586 = vmatmul.mubr.f32.gmra.mrb[0].mxu0 %v585
        %v587 = vpop.f32.mrb[0].mxu0
        %v588 = vadd.f32 %v435, %v587
        %v589 = vpop.f32.mrb[0].mxu0
        %590 = vmatprep.mubr.f32.mxu0 0.0
        %v591 = vand.u32 %v325, 4294901760
        %592 = vmatmul.mubr.f32.gmra.mrb[0].mxu0 %v591
        %v593 = vpop.f32.mrb[0].mxu0
        %v594 = vadd.f32 %v445, %v593
        %v595 = vpop.f32.mrb[0].mxu0
        %596 = vmatprep.mubr.f32.mxu0 0.0
        %v597 = vand.u32 %v328, 4294901760
        %598 = vmatmul.mubr.f32.gmra.mrb[0].mxu0 %v597
        %v599 = vpop.f32.mrb[0].mxu0
        %v600 = vadd.f32 %v455, %v599
        %v601 = vpop.f32.mrb[0].mxu0
        %602 = vmatprep.mubr.f32.mxu0 0.0
        %v603 = vand.u32 %v331, 4294901760
        %604 = vmatmul.mubr.f32.gmra.mrb[0].mxu0 %v603
        %v605 = vpop.f32.mrb[0].mxu0
        %v606 = vadd.f32 %v465, %v605
        %v607 = vpop.f32.mrb[0].mxu0
        %608 = vmatprep.mubr.f32.mxu0 0.0
        %v609 = vand.u32 %v334, 4294901760
        %610 = vmatmul.mubr.f32.gmra.mrb[0].mxu0 %v609
        %v611 = vpop.f32.mrb[0].mxu0
        %v612 = vadd.f32 %v475, %v611
        %v613 = vpop.f32.mrb[0].mxu0
        %614 = vmatprep.mubr.f32.mxu0 0.0
        %v615 = vand.u32 %v337, 4294901760
        %616 = vmatmul.mubr.f32.gmra.mrb[0].mxu0 %v615
        %v617 = vpop.f32.mrb[0].mxu0
        %v618 = vadd.f32 %v485, %v617
        %v619 = vpop.f32.mrb[0].mxu0
        %620 = vdwg.mxu0
        %621 = vmatprep.subr.mxu0 0.0
        %v622 = vand.u32 %v310, 4294901760
        %v623 = vsub.f32 %v310, %v622
        %624 = vmatpush1.msra.mxu0 %v623
        %625 = vmatprep.subr.mxu0 0.0
        %v626 = vand.u32 %v311, 4294901760
        %v627 = vsub.f32 %v311, %v626
        %628 = vmatpush1.msra.mxu0 %v627
        %629 = vmatprep.subr.mxu0 0.0
        %v630 = vand.u32 %v312, 4294901760
        %v631 = vsub.f32 %v312, %v630
        %632 = vmatpush1.msra.mxu0 %v631
        %633 = vmatprep.subr.mxu0 0.0
        %v634 = vand.u32 %v313, 4294901760
        %v635 = vsub.f32 %v313, %v634
        %636 = vmatpush1.msra.mxu0 %v635
        %637 = vmatprep.subr.mxu0 0.0
        %638 = vmatpush1.msra.mxu0 0.0
        %639 = vmatprep.subr.mxu0 0.0
        %640 = vmatpush1.msra.mxu0 0.0
        %641 = vmatprep.subr.mxu0 0.0
        %642 = vmatpush1.msra.mxu0 0.0
        %643 = vmatprep.subr.mxu0 0.0
        %644 = vmatpush1.msra.mxu0 0.0
        %645 = vmatprep.subr.mxu0 0.0
        %646 = vmatpush1.msra.mxu0 0.0
        %647 = vmatprep.subr.mxu0 0.0
        %648 = vmatpush1.msra.mxu0 0.0
        %649 = vmatprep.subr.mxu0 0.0
        %650 = vmatpush1.msra.mxu0 0.0
        %651 = vmatprep.subr.mxu0 0.0
        %652 = vmatpush1.msra.mxu0 0.0
        %653 = vmatprep.subr.mxu0 0.0
        %654 = vmatpush1.msra.mxu0 0.0
        %655 = vmatprep.subr.mxu0 0.0
        %656 = vmatpush1.msra.mxu0 0.0
        %657 = vmatprep.subr.mxu0 0.0
        %658 = vmatpush1.msra.mxu0 0.0
        %659 = vmatprep.subr.mxu0 0.0
        %660 = vmatpush1.msra.mxu0 0.0
        %661 = vmatprep.subr.mxu0 0.0
        %662 = vmatpush1.msra.mxu0 0.0
        %663 = vmatprep.subr.mxu0 0.0
        %664 = vmatpush1.msra.mxu0 0.0
        %665 = vmatprep.subr.mxu0 0.0
        %666 = vmatpush1.msra.mxu0 0.0
        %667 = vmatprep.subr.mxu0 0.0
        %668 = vmatpush1.msra.mxu0 0.0
        %669 = vmatprep.subr.mxu0 0.0
        %670 = vmatpush1.msra.mxu0 0.0
        %671 = vmatprep.subr.mxu0 0.0
        %672 = vmatpush1.msra.mxu0 0.0
        %673 = vmatprep.subr.mxu0 0.0
        %674 = vmatpush1.msra.mxu0 0.0
        %675 = vmatprep.subr.mxu0 0.0
        %676 = vmatpush1.msra.mxu0 0.0
        %677 = vmatprep.subr.mxu0 0.0
        %678 = vmatpush1.msra.mxu0 0.0
        %679 = vmatprep.subr.mxu0 0.0
        %680 = vmatpush1.msra.mxu0 0.0
        %681 = vmatprep.subr.mxu0 0.0
        %682 = vmatpush1.msra.mxu0 0.0
        %683 = vmatprep.subr.mxu0 0.0
        %684 = vmatpush1.msra.mxu0 0.0
        %685 = vmatprep.subr.mxu0 0.0
        %686 = vmatpush1.msra.mxu0 0.0
        %687 = vmatprep.subr.mxu0 0.0
        %688 = vmatpush1.msra.mxu0 0.0
        %689 = vmatprep.subr.mxu0 0.0
        %690 = vmatpush1.msra.mxu0 0.0
        %691 = vmatprep.subr.mxu0 0.0
        %692 = vmatpush1.msra.mxu0 0.0
        %693 = vmatprep.mubr.f32.mxu0 0.0
        %v694 = vand.u32 %v316, 4294901760
        %v695 = vsub.f32 %v316, %v694
        %696 = vmatmul.mubr.f32.gmra.mrb[0].mxu0 %v695
        %v697 = vpop.f32.mrb[0].mxu0
        %v698 = vadd.f32 %v576, %v697
        %v699 = vpop.f32.mrb[0].mxu0
        %700 = vmatprep.mubr.f32.mxu0 0.0
        %v701 = vand.u32 %v319, 4294901760
        %v702 = vsub.f32 %v319, %v701
        %703 = vmatmul.mubr.f32.gmra.mrb[0].mxu0 %v702
        %v704 = vpop.f32.mrb[0].mxu0
        %v705 = vadd.f32 %v582, %v704
        %v706 = vpop.f32.mrb[0].mxu0
        %707 = vmatprep.mubr.f32.mxu0 0.0
        %v708 = vand.u32 %v322, 4294901760
        %v709 = vsub.f32 %v322, %v708
        %710 = vmatmul.mubr.f32.gmra.mrb[0].mxu0 %v709
        %v711 = vpop.f32.mrb[0].mxu0
        %v712 = vadd.f32 %v588, %v711
        %v713 = vpop.f32.mrb[0].mxu0
        %714 = vmatprep.mubr.f32.mxu0 0.0
        %v715 = vand.u32 %v325, 4294901760
        %v716 = vsub.f32 %v325, %v715
        %717 = vmatmul.mubr.f32.gmra.mrb[0].mxu0 %v716
        %v718 = vpop.f32.mrb[0].mxu0
        %v719 = vadd.f32 %v594, %v718
        %v720 = vpop.f32.mrb[0].mxu0
        %721 = vmatprep.mubr.f32.mxu0 0.0
        %v722 = vand.u32 %v328, 4294901760
        %v723 = vsub.f32 %v328, %v722
        %724 = vmatmul.mubr.f32.gmra.mrb[0].mxu0 %v723
        %v725 = vpop.f32.mrb[0].mxu0
        %v726 = vadd.f32 %v600, %v725
        %v727 = vpop.f32.mrb[0].mxu0
        %728 = vmatprep.mubr.f32.mxu0 0.0
        %v729 = vand.u32 %v331, 4294901760
        %v730 = vsub.f32 %v331, %v729
        %731 = vmatmul.mubr.f32.gmra.mrb[0].mxu0 %v730
        %v732 = vpop.f32.mrb[0].mxu0
        %v733 = vadd.f32 %v606, %v732
        %v734 = vpop.f32.mrb[0].mxu0
        %735 = vmatprep.mubr.f32.mxu0 0.0
        %v736 = vand.u32 %v334, 4294901760
        %v737 = vsub.f32 %v334, %v736
        %738 = vmatmul.mubr.f32.gmra.mrb[0].mxu0 %v737
        %v739 = vpop.f32.mrb[0].mxu0
        %v740 = vadd.f32 %v612, %v739
        %v741 = vpop.f32.mrb[0].mxu0
        %742 = vmatprep.mubr.f32.mxu0 0.0
        %v743 = vand.u32 %v337, 4294901760
        %v744 = vsub.f32 %v337, %v743
        %745 = vmatmul.mubr.f32.gmra.mrb[0].mxu0 %v744
        %v746 = vpop.f32.mrb[0].mxu0
        %v747 = vadd.f32 %v618, %v746
        %v748 = vpop.f32.mrb[0].mxu0
        %749 = vdwg.mxu0
        %750 = vmatprep.subr.mxu0 0.0
        %v751 = vand.u32 %v310, 4294901760
        %752 = vmatpush1.msra.mxu0 %v751
        %753 = vmatprep.subr.mxu0 0.0
        %v754 = vand.u32 %v311, 4294901760
        %755 = vmatpush1.msra.mxu0 %v754
        %756 = vmatprep.subr.mxu0 0.0
        %v757 = vand.u32 %v312, 4294901760
        %758 = vmatpush1.msra.mxu0 %v757
        %759 = vmatprep.subr.mxu0 0.0
        %v760 = vand.u32 %v313, 4294901760
        %761 = vmatpush1.msra.mxu0 %v760
        %762 = vmatprep.subr.mxu0 0.0
        %763 = vmatpush1.msra.mxu0 0.0
        %764 = vmatprep.subr.mxu0 0.0
        %765 = vmatpush1.msra.mxu0 0.0
        %766 = vmatprep.subr.mxu0 0.0
        %767 = vmatpush1.msra.mxu0 0.0
        %768 = vmatprep.subr.mxu0 0.0
        %769 = vmatpush1.msra.mxu0 0.0
        %770 = vmatprep.subr.mxu0 0.0
        %771 = vmatpush1.msra.mxu0 0.0
        %772 = vmatprep.subr.mxu0 0.0
        %773 = vmatpush1.msra.mxu0 0.0
        %774 = vmatprep.subr.mxu0 0.0
        %775 = vmatpush1.msra.mxu0 0.0
        %776 = vmatprep.subr.mxu0 0.0
        %777 = vmatpush1.msra.mxu0 0.0
        %778 = vmatprep.subr.mxu0 0.0
        %779 = vmatpush1.msra.mxu0 0.0
        %780 = vmatprep.subr.mxu0 0.0
        %781 = vmatpush1.msra.mxu0 0.0
        %782 = vmatprep.subr.mxu0 0.0
        %783 = vmatpush1.msra.mxu0 0.0
        %784 = vmatprep.subr.mxu0 0.0
        %785 = vmatpush1.msra.mxu0 0.0
        %786 = vmatprep.subr.mxu0 0.0
        %787 = vmatpush1.msra.mxu0 0.0
        %788 = vmatprep.subr.mxu0 0.0
        %789 = vmatpush1.msra.mxu0 0.0
        %790 = vmatprep.subr.mxu0 0.0
        %791 = vmatpush1.msra.mxu0 0.0
        %792 = vmatprep.subr.mxu0 0.0
        %793 = vmatpush1.msra.mxu0 0.0
        %794 = vmatprep.subr.mxu0 0.0
        %795 = vmatpush1.msra.mxu0 0.0
        %796 = vmatprep.subr.mxu0 0.0
        %797 = vmatpush1.msra.mxu0 0.0
        %798 = vmatprep.subr.mxu0 0.0
        %799 = vmatpush1.msra.mxu0 0.0
        %800 = vmatprep.subr.mxu0 0.0
        %801 = vmatpush1.msra.mxu0 0.0
        %802 = vmatprep.subr.mxu0 0.0
        %803 = vmatpush1.msra.mxu0 0.0
        %804 = vmatprep.subr.mxu0 0.0
        %805 = vmatpush1.msra.mxu0 0.0
        %806 = vmatprep.subr.mxu0 0.0
        %807 = vmatpush1.msra.mxu0 0.0
        %808 = vmatprep.subr.mxu0 0.0
        %809 = vmatpush1.msra.mxu0 0.0
        %810 = vmatprep.subr.mxu0 0.0
        %811 = vmatpush1.msra.mxu0 0.0
        %812 = vmatprep.subr.mxu0 0.0
        %813 = vmatpush1.msra.mxu0 0.0
        %814 = vmatprep.subr.mxu0 0.0
        %815 = vmatpush1.msra.mxu0 0.0
        %816 = vmatprep.subr.mxu0 0.0
        %817 = vmatpush1.msra.mxu0 0.0
        %818 = vmatprep.mubr.f32.mxu0 0.0
        %v819 = vand.u32 %v316, 4294901760
        %v820 = vsub.f32 %v316, %v819
        %v821 = vand.u32 %v820, 4294901760
        %822 = vmatmul.mubr.f32.gmra.mrb[0].mxu0 %v821
        %v823 = vpop.f32.mrb[0].mxu0
        %v824 = vadd.f32 %v698, %v823
        %v825 = vpop.f32.mrb[0].mxu0
        %826 = vmatprep.mubr.f32.mxu0 0.0
        %v827 = vand.u32 %v319, 4294901760
        %v828 = vsub.f32 %v319, %v827
        %v829 = vand.u32 %v828, 4294901760
        %830 = vmatmul.mubr.f32.gmra.mrb[0].mxu0 %v829
        %v831 = vpop.f32.mrb[0].mxu0
        %v832 = vadd.f32 %v705, %v831
        %v833 = vpop.f32.mrb[0].mxu0
        %834 = vmatprep.mubr.f32.mxu0 0.0
        %v835 = vand.u32 %v322, 4294901760
        %v836 = vsub.f32 %v322, %v835
        %v837 = vand.u32 %v836, 4294901760
        %838 = vmatmul.mubr.f32.gmra.mrb[0].mxu0 %v837
        %v839 = vpop.f32.mrb[0].mxu0
        %v840 = vadd.f32 %v712, %v839
        %v841 = vpop.f32.mrb[0].mxu0
        %842 = vmatprep.mubr.f32.mxu0 0.0
        %v843 = vand.u32 %v325, 4294901760
        %v844 = vsub.f32 %v325, %v843
        %v845 = vand.u32 %v844, 4294901760
        %846 = vmatmul.mubr.f32.gmra.mrb[0].mxu0 %v845
        %v847 = vpop.f32.mrb[0].mxu0
        %v848 = vadd.f32 %v719, %v847
        %v849 = vpop.f32.mrb[0].mxu0
        %850 = vmatprep.mubr.f32.mxu0 0.0
        %v851 = vand.u32 %v328, 4294901760
        %v852 = vsub.f32 %v328, %v851
        %v853 = vand.u32 %v852, 4294901760
        %854 = vmatmul.mubr.f32.gmra.mrb[0].mxu0 %v853
        %v855 = vpop.f32.mrb[0].mxu0
        %v856 = vadd.f32 %v726, %v855
        %v857 = vpop.f32.mrb[0].mxu0
        %858 = vmatprep.mubr.f32.mxu0 0.0
        %v859 = vand.u32 %v331, 4294901760
        %v860 = vsub.f32 %v331, %v859
        %v861 = vand.u32 %v860, 4294901760
        %862 = vmatmul.mubr.f32.gmra.mrb[0].mxu0 %v861
        %v863 = vpop.f32.mrb[0].mxu0
        %v864 = vadd.f32 %v733, %v863
        %v865 = vpop.f32.mrb[0].mxu0
        %866 = vmatprep.mubr.f32.mxu0 0.0
        %v867 = vand.u32 %v334, 4294901760
        %v868 = vsub.f32 %v334, %v867
        %v869 = vand.u32 %v868, 4294901760
        %870 = vmatmul.mubr.f32.gmra.mrb[0].mxu0 %v869
        %v871 = vpop.f32.mrb[0].mxu0
        %v872 = vadd.f32 %v740, %v871
        %v873 = vpop.f32.mrb[0].mxu0
        %874 = vmatprep.mubr.f32.mxu0 0.0
        %v875 = vand.u32 %v337, 4294901760
        %v876 = vsub.f32 %v337, %v875
        %v877 = vand.u32 %v876, 4294901760
        %878 = vmatmul.mubr.f32.gmra.mrb[0].mxu0 %v877
        %v879 = vpop.f32.mrb[0].mxu0
        %v880 = vadd.f32 %v747, %v879
        %v881 = vpop.f32.mrb[0].mxu0
        %882 = vdwg.mxu0
        %883 = vmatprep.subr.mxu0 0.0
        %v884 = vand.u32 %v310, 4294901760
        %v885 = vsub.f32 %v310, %v884
        %v886 = vand.u32 %v885, 4294901760
        %887 = vmatpush1.msra.mxu0 %v886
        %888 = vmatprep.subr.mxu0 0.0
        %v889 = vand.u32 %v311, 4294901760
        %v890 = vsub.f32 %v311, %v889
        %v891 = vand.u32 %v890, 4294901760
        %892 = vmatpush1.msra.mxu0 %v891
        %893 = vmatprep.subr.mxu0 0.0
        %v894 = vand.u32 %v312, 4294901760
        %v895 = vsub.f32 %v312, %v894
        %v896 = vand.u32 %v895, 4294901760
        %897 = vmatpush1.msra.mxu0 %v896
        %898 = vmatprep.subr.mxu0 0.0
        %v899 = vand.u32 %v313, 4294901760
        %v900 = vsub.f32 %v313, %v899
        %v901 = vand.u32 %v900, 4294901760
        %902 = vmatpush1.msra.mxu0 %v901
        %903 = vmatprep.subr.mxu0 0.0
        %904 = vmatpush1.msra.mxu0 0.0
        %905 = vmatprep.subr.mxu0 0.0
        %906 = vmatpush1.msra.mxu0 0.0
        %907 = vmatprep.subr.mxu0 0.0
        %908 = vmatpush1.msra.mxu0 0.0
        %909 = vmatprep.subr.mxu0 0.0
        %910 = vmatpush1.msra.mxu0 0.0
        %911 = vmatprep.subr.mxu0 0.0
        %912 = vmatpush1.msra.mxu0 0.0
        %913 = vmatprep.subr.mxu0 0.0
        %914 = vmatpush1.msra.mxu0 0.0
        %915 = vmatprep.subr.mxu0 0.0
        %916 = vmatpush1.msra.mxu0 0.0
        %917 = vmatprep.subr.mxu0 0.0
        %918 = vmatpush1.msra.mxu0 0.0
        %919 = vmatprep.subr.mxu0 0.0
        %920 = vmatpush1.msra.mxu0 0.0
        %921 = vmatprep.subr.mxu0 0.0
        %922 = vmatpush1.msra.mxu0 0.0
        %923 = vmatprep.subr.mxu0 0.0
        %924 = vmatpush1.msra.mxu0 0.0
        %925 = vmatprep.subr.mxu0 0.0
        %926 = vmatpush1.msra.mxu0 0.0
        %927 = vmatprep.subr.mxu0 0.0
        %928 = vmatpush1.msra.mxu0 0.0
        %929 = vmatprep.subr.mxu0 0.0
        %930 = vmatpush1.msra.mxu0 0.0
        %931 = vmatprep.subr.mxu0 0.0
        %932 = vmatpush1.msra.mxu0 0.0
        %933 = vmatprep.subr.mxu0 0.0
        %934 = vmatpush1.msra.mxu0 0.0
        %935 = vmatprep.subr.mxu0 0.0
        %936 = vmatpush1.msra.mxu0 0.0
        %937 = vmatprep.subr.mxu0 0.0
        %938 = vmatpush1.msra.mxu0 0.0
        %939 = vmatprep.subr.mxu0 0.0
        %940 = vmatpush1.msra.mxu0 0.0
        %941 = vmatprep.subr.mxu0 0.0
        %942 = vmatpush1.msra.mxu0 0.0
        %943 = vmatprep.subr.mxu0 0.0
        %944 = vmatpush1.msra.mxu0 0.0
        %945 = vmatprep.subr.mxu0 0.0
        %946 = vmatpush1.msra.mxu0 0.0
        %947 = vmatprep.subr.mxu0 0.0
        %948 = vmatpush1.msra.mxu0 0.0
        %949 = vmatprep.subr.mxu0 0.0
        %950 = vmatpush1.msra.mxu0 0.0
        %951 = vmatprep.subr.mxu0 0.0
        %952 = vmatpush1.msra.mxu0 0.0
        %953 = vmatprep.subr.mxu0 0.0
        %954 = vmatpush1.msra.mxu0 0.0
        %955 = vmatprep.subr.mxu0 0.0
        %956 = vmatpush1.msra.mxu0 0.0
        %957 = vmatprep.subr.mxu0 0.0
        %958 = vmatpush1.msra.mxu0 0.0
        %959 = vmatprep.mubr.f32.mxu0 0.0
        %v960 = vand.u32 %v316, 4294901760
        %961 = vmatmul.mubr.f32.gmra.mrb[0].mxu0 %v960
        %v962 = vpop.f32.mrb[0].mxu0
        %v963 = vadd.f32 %v824, %v962
        %v964 = vpop.f32.mrb[0].mxu0
        %965 = vmatprep.mubr.f32.mxu0 0.0
        %v966 = vand.u32 %v319, 4294901760
        %967 = vmatmul.mubr.f32.gmra.mrb[0].mxu0 %v966
        %v968 = vpop.f32.mrb[0].mxu0
        %v969 = vadd.f32 %v832, %v968
        %v970 = vpop.f32.mrb[0].mxu0
        %971 = vmatprep.mubr.f32.mxu0 0.0
        %v972 = vand.u32 %v322, 4294901760
        %973 = vmatmul.mubr.f32.gmra.mrb[0].mxu0 %v972
        %v974 = vpop.f32.mrb[0].mxu0
        %v975 = vadd.f32 %v840, %v974
        %v976 = vpop.f32.mrb[0].mxu0
        %977 = vmatprep.mubr.f32.mxu0 0.0
        %v978 = vand.u32 %v325, 4294901760
        %979 = vmatmul.mubr.f32.gmra.mrb[0].mxu0 %v978
        %v980 = vpop.f32.mrb[0].mxu0
        %v981 = vadd.f32 %v848, %v980
        %v982 = vpop.f32.mrb[0].mxu0
        %983 = vmatprep.mubr.f32.mxu0 0.0
        %v984 = vand.u32 %v328, 4294901760
        %985 = vmatmul.mubr.f32.gmra.mrb[0].mxu0 %v984
        %v986 = vpop.f32.mrb[0].mxu0
        %v987 = vadd.f32 %v856, %v986
        %v988 = vpop.f32.mrb[0].mxu0
        %989 = vmatprep.mubr.f32.mxu0 0.0
        %v990 = vand.u32 %v331, 4294901760
        %991 = vmatmul.mubr.f32.gmra.mrb[0].mxu0 %v990
        %v992 = vpop.f32.mrb[0].mxu0
        %v993 = vadd.f32 %v864, %v992
        %v994 = vpop.f32.mrb[0].mxu0
        %995 = vmatprep.mubr.f32.mxu0 0.0
        %v996 = vand.u32 %v334, 4294901760
        %997 = vmatmul.mubr.f32.gmra.mrb[0].mxu0 %v996
        %v998 = vpop.f32.mrb[0].mxu0
        %v999 = vadd.f32 %v872, %v998
        %v1000 = vpop.f32.mrb[0].mxu0
        %1001 = vmatprep.mubr.f32.mxu0 0.0
        %v1002 = vand.u32 %v337, 4294901760
        %1003 = vmatmul.mubr.f32.gmra.mrb[0].mxu0 %v1002
        %v1004 = vpop.f32.mrb[0].mxu0
        %v1005 = vadd.f32 %v880, %v1004
        %v1006 = vpop.f32.mrb[0].mxu0
        %1007 = vdwg.mxu0
        %1008 = vmatprep.subr.mxu0 0.0
        %v1009 = vand.u32 %v310, 4294901760
        %1010 = vmatpush1.msra.mxu0 %v1009
        %1011 = vmatprep.subr.mxu0 0.0
        %v1012 = vand.u32 %v311, 4294901760
        %1013 = vmatpush1.msra.mxu0 %v1012
        %1014 = vmatprep.subr.mxu0 0.0
        %v1015 = vand.u32 %v312, 4294901760
        %1016 = vmatpush1.msra.mxu0 %v1015
        %1017 = vmatprep.subr.mxu0 0.0
        %v1018 = vand.u32 %v313, 4294901760
        %1019 = vmatpush1.msra.mxu0 %v1018
        %1020 = vmatprep.subr.mxu0 0.0
        %1021 = vmatpush1.msra.mxu0 0.0
        %1022 = vmatprep.subr.mxu0 0.0
        %1023 = vmatpush1.msra.mxu0 0.0
        %1024 = vmatprep.subr.mxu0 0.0
        %1025 = vmatpush1.msra.mxu0 0.0
        %1026 = vmatprep.subr.mxu0 0.0
        %1027 = vmatpush1.msra.mxu0 0.0
        %1028 = vmatprep.subr.mxu0 0.0
        %1029 = vmatpush1.msra.mxu0 0.0
        %1030 = vmatprep.subr.mxu0 0.0
        %1031 = vmatpush1.msra.mxu0 0.0
        %1032 = vmatprep.subr.mxu0 0.0
        %1033 = vmatpush1.msra.mxu0 0.0
        %1034 = vmatprep.subr.mxu0 0.0
        %1035 = vmatpush1.msra.mxu0 0.0
        %1036 = vmatprep.subr.mxu0 0.0
        %1037 = vmatpush1.msra.mxu0 0.0
        %1038 = vmatprep.subr.mxu0 0.0
        %1039 = vmatpush1.msra.mxu0 0.0
        %1040 = vmatprep.subr.mxu0 0.0
        %1041 = vmatpush1.msra.mxu0 0.0
        %1042 = vmatprep.subr.mxu0 0.0
        %1043 = vmatpush1.msra.mxu0 0.0
        %1044 = vmatprep.subr.mxu0 0.0
        %1045 = vmatpush1.msra.mxu0 0.0
        %1046 = vmatprep.subr.mxu0 0.0
        %1047 = vmatpush1.msra.mxu0 0.0
        %1048 = vmatprep.subr.mxu0 0.0
        %1049 = vmatpush1.msra.mxu0 0.0
        %1050 = vmatprep.subr.mxu0 0.0
        %1051 = vmatpush1.msra.mxu0 0.0
        %1052 = vmatprep.subr.mxu0 0.0
        %1053 = vmatpush1.msra.mxu0 0.0
        %1054 = vmatprep.subr.mxu0 0.0
        %1055 = vmatpush1.msra.mxu0 0.0
        %1056 = vmatprep.subr.mxu0 0.0
        %1057 = vmatpush1.msra.mxu0 0.0
        %1058 = vmatprep.subr.mxu0 0.0
        %1059 = vmatpush1.msra.mxu0 0.0
        %1060 = vmatprep.subr.mxu0 0.0
        %1061 = vmatpush1.msra.mxu0 0.0
        %1062 = vmatprep.subr.mxu0 0.0
        %1063 = vmatpush1.msra.mxu0 0.0
        %1064 = vmatprep.subr.mxu0 0.0
        %1065 = vmatpush1.msra.mxu0 0.0
        %1066 = vmatprep.subr.mxu0 0.0
        %1067 = vmatpush1.msra.mxu0 0.0
        %1068 = vmatprep.subr.mxu0 0.0
        %1069 = vmatpush1.msra.mxu0 0.0
        %1070 = vmatprep.subr.mxu0 0.0
        %1071 = vmatpush1.msra.mxu0 0.0
        %1072 = vmatprep.subr.mxu0 0.0
        %1073 = vmatpush1.msra.mxu0 0.0
        %1074 = vmatprep.subr.mxu0 0.0
        %1075 = vmatpush1.msra.mxu0 0.0
        %1076 = vmatprep.mubr.f32.mxu0 0.0
        %v1077 = vand.u32 %v316, 4294901760
        %1078 = vmatmul.mubr.f32.gmra.mrb[0].mxu0 %v1077
        %v1079 = vpop.f32.mrb[0].mxu0
        %v1080 = vadd.f32 %v963, %v1079
        %v1081 = vpop.f32.mrb[0].mxu0
        %1082 = vmatprep.mubr.f32.mxu0 0.0
        %v1083 = vand.u32 %v319, 4294901760
        %1084 = vmatmul.mubr.f32.gmra.mrb[0].mxu0 %v1083
        %v1085 = vpop.f32.mrb[0].mxu0
        %v1086 = vadd.f32 %v969, %v1085
        %v1087 = vpop.f32.mrb[0].mxu0
        %1088 = vmatprep.mubr.f32.mxu0 0.0
        %v1089 = vand.u32 %v322, 4294901760
        %1090 = vmatmul.mubr.f32.gmra.mrb[0].mxu0 %v1089
        %v1091 = vpop.f32.mrb[0].mxu0
        %v1092 = vadd.f32 %v975, %v1091
        %v1093 = vpop.f32.mrb[0].mxu0
        %1094 = vmatprep.mubr.f32.mxu0 0.0
        %v1095 = vand.u32 %v325, 4294901760
        %1096 = vmatmul.mubr.f32.gmra.mrb[0].mxu0 %v1095
        %v1097 = vpop.f32.mrb[0].mxu0
        %v1098 = vadd.f32 %v981, %v1097
        %v1099 = vpop.f32.mrb[0].mxu0
        %1100 = vmatprep.mubr.f32.mxu0 0.0
        %v1101 = vand.u32 %v328, 4294901760
        %1102 = vmatmul.mubr.f32.gmra.mrb[0].mxu0 %v1101
        %v1103 = vpop.f32.mrb[0].mxu0
        %v1104 = vadd.f32 %v987, %v1103
        %v1105 = vpop.f32.mrb[0].mxu0
        %1106 = vmatprep.mubr.f32.mxu0 0.0
        %v1107 = vand.u32 %v331, 4294901760
        %1108 = vmatmul.mubr.f32.gmra.mrb[0].mxu0 %v1107
        %v1109 = vpop.f32.mrb[0].mxu0
        %v1110 = vadd.f32 %v993, %v1109
        %v1111 = vpop.f32.mrb[0].mxu0
        %1112 = vmatprep.mubr.f32.mxu0 0.0
        %v1113 = vand.u32 %v334, 4294901760
        %1114 = vmatmul.mubr.f32.gmra.mrb[0].mxu0 %v1113
        %v1115 = vpop.f32.mrb[0].mxu0
        %v1116 = vadd.f32 %v999, %v1115
        %v1117 = vpop.f32.mrb[0].mxu0
        %1118 = vmatprep.mubr.f32.mxu0 0.0
        %v1119 = vand.u32 %v337, 4294901760
        %1120 = vmatmul.mubr.f32.gmra.mrb[0].mxu0 %v1119
        %v1121 = vpop.f32.mrb[0].mxu0
        %v1122 = vadd.f32 %v1005, %v1121
        %v1123 = vpop.f32.mrb[0].mxu0
        %1124 = vdwg.mxu0
        %v1125 = vld [vmem:[%s4] sm:$0xf]
        %v1126 = vld [vmem:[%s2] sm:$0xff]
        %v1127 = vld [vmem:[%s2 + $0x8] sm:$0xff]
        %v1128 = vld [vmem:[%s2 + $0x10] sm:$0xff]
        %v1129 = vld [vmem:[%s2 + $0x18] sm:$0xff]
        %v1131 = vsel %vm314, %v1125, 0
        %1133 = vmatprep.subr.mxu0 0.0
        %v1134 = vand.u32 %v1126, 4294901760
        %1135 = vmatpush1.msra.mxu0 %v1134
        %1136 = vmatprep.subr.mxu0 0.0
        %v1137 = vand.u32 %v1127, 4294901760
        %1138 = vmatpush1.msra.mxu0 %v1137
        %1139 = vmatprep.subr.mxu0 0.0
        %v1140 = vand.u32 %v1128, 4294901760
        %1141 = vmatpush1.msra.mxu0 %v1140
        %1142 = vmatprep.subr.mxu0 0.0
        %v1143 = vand.u32 %v1129, 4294901760
        %1144 = vmatpush1.msra.mxu0 %v1143
        %1145 = vmatprep.subr.mxu0 0.0
        %1146 = vmatpush1.msra.mxu0 0.0
        %1147 = vmatprep.subr.mxu0 0.0
        %1148 = vmatpush1.msra.mxu0 0.0
        %1149 = vmatprep.subr.mxu0 0.0
        %1150 = vmatpush1.msra.mxu0 0.0
        %1151 = vmatprep.subr.mxu0 0.0
        %1152 = vmatpush1.msra.mxu0 0.0
        %1153 = vmatprep.subr.mxu0 0.0
        %1154 = vmatpush1.msra.mxu0 0.0
        %1155 = vmatprep.subr.mxu0 0.0
        %1156 = vmatpush1.msra.mxu0 0.0
        %1157 = vmatprep.subr.mxu0 0.0
        %1158 = vmatpush1.msra.mxu0 0.0
        %1159 = vmatprep.subr.mxu0 0.0
        %1160 = vmatpush1.msra.mxu0 0.0
        %1161 = vmatprep.subr.mxu0 0.0
        %1162 = vmatpush1.msra.mxu0 0.0
        %1163 = vmatprep.subr.mxu0 0.0
        %1164 = vmatpush1.msra.mxu0 0.0
        %1165 = vmatprep.subr.mxu0 0.0
        %1166 = vmatpush1.msra.mxu0 0.0
        %1167 = vmatprep.subr.mxu0 0.0
        %1168 = vmatpush1.msra.mxu0 0.0
        %1169 = vmatprep.subr.mxu0 0.0
        %1170 = vmatpush1.msra.mxu0 0.0
        %1171 = vmatprep.subr.mxu0 0.0
        %1172 = vmatpush1.msra.mxu0 0.0
        %1173 = vmatprep.subr.mxu0 0.0
        %1174 = vmatpush1.msra.mxu0 0.0
        %1175 = vmatprep.subr.mxu0 0.0
        %1176 = vmatpush1.msra.mxu0 0.0
        %1177 = vmatprep.subr.mxu0 0.0
        %1178 = vmatpush1.msra.mxu0 0.0
        %1179 = vmatprep.subr.mxu0 0.0
        %1180 = vmatpush1.msra.mxu0 0.0
        %1181 = vmatprep.subr.mxu0 0.0
        %1182 = vmatpush1.msra.mxu0 0.0
        %1183 = vmatprep.subr.mxu0 0.0
        %1184 = vmatpush1.msra.mxu0 0.0
        %1185 = vmatprep.subr.mxu0 0.0
        %1186 = vmatpush1.msra.mxu0 0.0
        %1187 = vmatprep.subr.mxu0 0.0
        %1188 = vmatpush1.msra.mxu0 0.0
        %1189 = vmatprep.subr.mxu0 0.0
        %1190 = vmatpush1.msra.mxu0 0.0
        %1191 = vmatprep.subr.mxu0 0.0
        %1192 = vmatpush1.msra.mxu0 0.0
        %1193 = vmatprep.subr.mxu0 0.0
        %1194 = vmatpush1.msra.mxu0 0.0
        %1195 = vmatprep.subr.mxu0 0.0
        %1196 = vmatpush1.msra.mxu0 0.0
        %1197 = vmatprep.subr.mxu0 0.0
        %1198 = vmatpush1.msra.mxu0 0.0
        %1199 = vmatprep.subr.mxu0 0.0
        %1200 = vmatpush1.msra.mxu0 0.0
        %1201 = vmatprep.mubr.f32.mxu0 0.0
        %v1202 = vand.u32 %v1131, 4294901760
        %v1203 = vsub.f32 %v1131, %v1202
        %v1204 = vand.u32 %v1203, 4294901760
        %v1205 = vsub.f32 %v1203, %v1204
        %v1206 = vand.u32 %v1205, 4294901760
        %1207 = vmatmul.mubr.f32.gmra.mrb[0].mxu0 %v1206
        %v1208 = vpop.f32.mrb[0].mxu0
        %v1209 = vadd.f32 0.0, %v1208
        %v1210 = vpop.f32.mrb[0].mxu0
        %1211 = vdwg.mxu0
        %1212 = vmatprep.subr.mxu0 0.0
        %v1213 = vand.u32 %v1126, 4294901760
        %v1214 = vsub.f32 %v1126, %v1213
        %v1215 = vand.u32 %v1214, 4294901760
        %v1216 = vsub.f32 %v1214, %v1215
        %v1217 = vand.u32 %v1216, 4294901760
        %1218 = vmatpush1.msra.mxu0 %v1217
        %1219 = vmatprep.subr.mxu0 0.0
        %v1220 = vand.u32 %v1127, 4294901760
        %v1221 = vsub.f32 %v1127, %v1220
        %v1222 = vand.u32 %v1221, 4294901760
        %v1223 = vsub.f32 %v1221, %v1222
        %v1224 = vand.u32 %v1223, 4294901760
        %1225 = vmatpush1.msra.mxu0 %v1224
        %1226 = vmatprep.subr.mxu0 0.0
        %v1227 = vand.u32 %v1128, 4294901760
        %v1228 = vsub.f32 %v1128, %v1227
        %v1229 = vand.u32 %v1228, 4294901760
        %v1230 = vsub.f32 %v1228, %v1229
        %v1231 = vand.u32 %v1230, 4294901760
        %1232 = vmatpush1.msra.mxu0 %v1231
        %1233 = vmatprep.subr.mxu0 0.0
        %v1234 = vand.u32 %v1129, 4294901760
        %v1235 = vsub.f32 %v1129, %v1234
        %v1236 = vand.u32 %v1235, 4294901760
        %v1237 = vsub.f32 %v1235, %v1236
        %v1238 = vand.u32 %v1237, 4294901760
        %1239 = vmatpush1.msra.mxu0 %v1238
        %1240 = vmatprep.subr.mxu0 0.0
        %1241 = vmatpush1.msra.mxu0 0.0
        %1242 = vmatprep.subr.mxu0 0.0
        %1243 = vmatpush1.msra.mxu0 0.0
        %1244 = vmatprep.subr.mxu0 0.0
        %1245 = vmatpush1.msra.mxu0 0.0
        %1246 = vmatprep.subr.mxu0 0.0
        %1247 = vmatpush1.msra.mxu0 0.0
        %1248 = vmatprep.subr.mxu0 0.0
        %1249 = vmatpush1.msra.mxu0 0.0
        %1250 = vmatprep.subr.mxu0 0.0
        %1251 = vmatpush1.msra.mxu0 0.0
        %1252 = vmatprep.subr.mxu0 0.0
        %1253 = vmatpush1.msra.mxu0 0.0
        %1254 = vmatprep.subr.mxu0 0.0
        %1255 = vmatpush1.msra.mxu0 0.0
        %1256 = vmatprep.subr.mxu0 0.0
        %1257 = vmatpush1.msra.mxu0 0.0
        %1258 = vmatprep.subr.mxu0 0.0
        %1259 = vmatpush1.msra.mxu0 0.0
        %1260 = vmatprep.subr.mxu0 0.0
        %1261 = vmatpush1.msra.mxu0 0.0
        %1262 = vmatprep.subr.mxu0 0.0
        %1263 = vmatpush1.msra.mxu0 0.0
        %1264 = vmatprep.subr.mxu0 0.0
        %1265 = vmatpush1.msra.mxu0 0.0
        %1266 = vmatprep.subr.mxu0 0.0
        %1267 = vmatpush1.msra.mxu0 0.0
        %1268 = vmatprep.subr.mxu0 0.0
        %1269 = vmatpush1.msra.mxu0 0.0
        %1270 = vmatprep.subr.mxu0 0.0
        %1271 = vmatpush1.msra.mxu0 0.0
        %1272 = vmatprep.subr.mxu0 0.0
        %1273 = vmatpush1.msra.mxu0 0.0
        %1274 = vmatprep.subr.mxu0 0.0
        %1275 = vmatpush1.msra.mxu0 0.0
        %1276 = vmatprep.subr.mxu0 0.0
        %1277 = vmatpush1.msra.mxu0 0.0
        %1278 = vmatprep.subr.mxu0 0.0
        %1279 = vmatpush1.msra.mxu0 0.0
        %1280 = vmatprep.subr.mxu0 0.0
        %1281 = vmatpush1.msra.mxu0 0.0
        %1282 = vmatprep.subr.mxu0 0.0
        %1283 = vmatpush1.msra.mxu0 0.0
        %1284 = vmatprep.subr.mxu0 0.0
        %1285 = vmatpush1.msra.mxu0 0.0
        %1286 = vmatprep.subr.mxu0 0.0
        %1287 = vmatpush1.msra.mxu0 0.0
        %1288 = vmatprep.subr.mxu0 0.0
        %1289 = vmatpush1.msra.mxu0 0.0
        %1290 = vmatprep.subr.mxu0 0.0
        %1291 = vmatpush1.msra.mxu0 0.0
        %1292 = vmatprep.subr.mxu0 0.0
        %1293 = vmatpush1.msra.mxu0 0.0
        %1294 = vmatprep.subr.mxu0 0.0
        %1295 = vmatpush1.msra.mxu0 0.0
        %1296 = vmatprep.mubr.f32.mxu0 0.0
        %v1297 = vand.u32 %v1131, 4294901760
        %1298 = vmatmul.mubr.f32.gmra.mrb[0].mxu0 %v1297
        %v1299 = vpop.f32.mrb[0].mxu0
        %v1300 = vadd.f32 %v1209, %v1299
        %v1301 = vpop.f32.mrb[0].mxu0
        %1302 = vdwg.mxu0
        %1303 = vmatprep.subr.mxu0 0.0
        %v1304 = vand.u32 %v1126, 4294901760
        %v1305 = vsub.f32 %v1126, %v1304
        %1306 = vmatpush1.msra.mxu0 %v1305
        %1307 = vmatprep.subr.mxu0 0.0
        %v1308 = vand.u32 %v1127, 4294901760
        %v1309 = vsub.f32 %v1127, %v1308
        %1310 = vmatpush1.msra.mxu0 %v1309
        %1311 = vmatprep.subr.mxu0 0.0
        %v1312 = vand.u32 %v1128, 4294901760
        %v1313 = vsub.f32 %v1128, %v1312
        %1314 = vmatpush1.msra.mxu0 %v1313
        %1315 = vmatprep.subr.mxu0 0.0
        %v1316 = vand.u32 %v1129, 4294901760
        %v1317 = vsub.f32 %v1129, %v1316
        %1318 = vmatpush1.msra.mxu0 %v1317
        %1319 = vmatprep.subr.mxu0 0.0
        %1320 = vmatpush1.msra.mxu0 0.0
        %1321 = vmatprep.subr.mxu0 0.0
        %1322 = vmatpush1.msra.mxu0 0.0
        %1323 = vmatprep.subr.mxu0 0.0
        %1324 = vmatpush1.msra.mxu0 0.0
        %1325 = vmatprep.subr.mxu0 0.0
        %1326 = vmatpush1.msra.mxu0 0.0
        %1327 = vmatprep.subr.mxu0 0.0
        %1328 = vmatpush1.msra.mxu0 0.0
        %1329 = vmatprep.subr.mxu0 0.0
        %1330 = vmatpush1.msra.mxu0 0.0
        %1331 = vmatprep.subr.mxu0 0.0
        %1332 = vmatpush1.msra.mxu0 0.0
        %1333 = vmatprep.subr.mxu0 0.0
        %1334 = vmatpush1.msra.mxu0 0.0
        %1335 = vmatprep.subr.mxu0 0.0
        %1336 = vmatpush1.msra.mxu0 0.0
        %1337 = vmatprep.subr.mxu0 0.0
        %1338 = vmatpush1.msra.mxu0 0.0
        %1339 = vmatprep.subr.mxu0 0.0
        %1340 = vmatpush1.msra.mxu0 0.0
        %1341 = vmatprep.subr.mxu0 0.0
        %1342 = vmatpush1.msra.mxu0 0.0
        %1343 = vmatprep.subr.mxu0 0.0
        %1344 = vmatpush1.msra.mxu0 0.0
        %1345 = vmatprep.subr.mxu0 0.0
        %1346 = vmatpush1.msra.mxu0 0.0
        %1347 = vmatprep.subr.mxu0 0.0
        %1348 = vmatpush1.msra.mxu0 0.0
        %1349 = vmatprep.subr.mxu0 0.0
        %1350 = vmatpush1.msra.mxu0 0.0
        %1351 = vmatprep.subr.mxu0 0.0
        %1352 = vmatpush1.msra.mxu0 0.0
        %1353 = vmatprep.subr.mxu0 0.0
        %1354 = vmatpush1.msra.mxu0 0.0
        %1355 = vmatprep.subr.mxu0 0.0
        %1356 = vmatpush1.msra.mxu0 0.0
        %1357 = vmatprep.subr.mxu0 0.0
        %1358 = vmatpush1.msra.mxu0 0.0
        %1359 = vmatprep.subr.mxu0 0.0
        %1360 = vmatpush1.msra.mxu0 0.0
        %1361 = vmatprep.subr.mxu0 0.0
        %1362 = vmatpush1.msra.mxu0 0.0
        %1363 = vmatprep.subr.mxu0 0.0
        %1364 = vmatpush1.msra.mxu0 0.0
        %1365 = vmatprep.subr.mxu0 0.0
        %1366 = vmatpush1.msra.mxu0 0.0
        %1367 = vmatprep.subr.mxu0 0.0
        %1368 = vmatpush1.msra.mxu0 0.0
        %1369 = vmatprep.subr.mxu0 0.0
        %1370 = vmatpush1.msra.mxu0 0.0
        %1371 = vmatprep.subr.mxu0 0.0
        %1372 = vmatpush1.msra.mxu0 0.0
        %1373 = vmatprep.subr.mxu0 0.0
        %1374 = vmatpush1.msra.mxu0 0.0
        %1375 = vmatprep.mubr.f32.mxu0 0.0
        %v1376 = vand.u32 %v1131, 4294901760
        %v1377 = vsub.f32 %v1131, %v1376
        %1378 = vmatmul.mubr.f32.gmra.mrb[0].mxu0 %v1377
        %v1379 = vpop.f32.mrb[0].mxu0
        %v1380 = vadd.f32 %v1300, %v1379
        %v1381 = vpop.f32.mrb[0].mxu0
        %1382 = vdwg.mxu0
        %1383 = vmatprep.subr.mxu0 0.0
        %v1384 = vand.u32 %v1126, 4294901760
        %1385 = vmatpush1.msra.mxu0 %v1384
        %1386 = vmatprep.subr.mxu0 0.0
        %v1387 = vand.u32 %v1127, 4294901760
        %1388 = vmatpush1.msra.mxu0 %v1387
        %1389 = vmatprep.subr.mxu0 0.0
        %v1390 = vand.u32 %v1128, 4294901760
        %1391 = vmatpush1.msra.mxu0 %v1390
        %1392 = vmatprep.subr.mxu0 0.0
        %v1393 = vand.u32 %v1129, 4294901760
        %1394 = vmatpush1.msra.mxu0 %v1393
        %1395 = vmatprep.subr.mxu0 0.0
        %1396 = vmatpush1.msra.mxu0 0.0
        %1397 = vmatprep.subr.mxu0 0.0
        %1398 = vmatpush1.msra.mxu0 0.0
        %1399 = vmatprep.subr.mxu0 0.0
        %1400 = vmatpush1.msra.mxu0 0.0
        %1401 = vmatprep.subr.mxu0 0.0
        %1402 = vmatpush1.msra.mxu0 0.0
        %1403 = vmatprep.subr.mxu0 0.0
        %1404 = vmatpush1.msra.mxu0 0.0
        %1405 = vmatprep.subr.mxu0 0.0
        %1406 = vmatpush1.msra.mxu0 0.0
        %1407 = vmatprep.subr.mxu0 0.0
        %1408 = vmatpush1.msra.mxu0 0.0
        %1409 = vmatprep.subr.mxu0 0.0
        %1410 = vmatpush1.msra.mxu0 0.0
        %1411 = vmatprep.subr.mxu0 0.0
        %1412 = vmatpush1.msra.mxu0 0.0
        %1413 = vmatprep.subr.mxu0 0.0
        %1414 = vmatpush1.msra.mxu0 0.0
        %1415 = vmatprep.subr.mxu0 0.0
        %1416 = vmatpush1.msra.mxu0 0.0
        %1417 = vmatprep.subr.mxu0 0.0
        %1418 = vmatpush1.msra.mxu0 0.0
        %1419 = vmatprep.subr.mxu0 0.0
        %1420 = vmatpush1.msra.mxu0 0.0
        %1421 = vmatprep.subr.mxu0 0.0
        %1422 = vmatpush1.msra.mxu0 0.0
        %1423 = vmatprep.subr.mxu0 0.0
        %1424 = vmatpush1.msra.mxu0 0.0
        %1425 = vmatprep.subr.mxu0 0.0
        %1426 = vmatpush1.msra.mxu0 0.0
        %1427 = vmatprep.subr.mxu0 0.0
        %1428 = vmatpush1.msra.mxu0 0.0
        %1429 = vmatprep.subr.mxu0 0.0
        %1430 = vmatpush1.msra.mxu0 0.0
        %1431 = vmatprep.subr.mxu0 0.0
        %1432 = vmatpush1.msra.mxu0 0.0
        %1433 = vmatprep.subr.mxu0 0.0
        %1434 = vmatpush1.msra.mxu0 0.0
        %1435 = vmatprep.subr.mxu0 0.0
        %1436 = vmatpush1.msra.mxu0 0.0
        %1437 = vmatprep.subr.mxu0 0.0
        %1438 = vmatpush1.msra.mxu0 0.0
        %1439 = vmatprep.subr.mxu0 0.0
        %1440 = vmatpush1.msra.mxu0 0.0
        %1441 = vmatprep.subr.mxu0 0.0
        %1442 = vmatpush1.msra.mxu0 0.0
        %1443 = vmatprep.subr.mxu0 0.0
        %1444 = vmatpush1.msra.mxu0 0.0
        %1445 = vmatprep.subr.mxu0 0.0
        %1446 = vmatpush1.msra.mxu0 0.0
        %1447 = vmatprep.subr.mxu0 0.0
        %1448 = vmatpush1.msra.mxu0 0.0
        %1449 = vmatprep.subr.mxu0 0.0
        %1450 = vmatpush1.msra.mxu0 0.0
        %1451 = vmatprep.mubr.f32.mxu0 0.0
        %v1452 = vand.u32 %v1131, 4294901760
        %v1453 = vsub.f32 %v1131, %v1452
        %v1454 = vand.u32 %v1453, 4294901760
        %1455 = vmatmul.mubr.f32.gmra.mrb[0].mxu0 %v1454
        %v1456 = vpop.f32.mrb[0].mxu0
        %v1457 = vadd.f32 %v1380, %v1456
        %v1458 = vpop.f32.mrb[0].mxu0
        %1459 = vdwg.mxu0
        %1460 = vmatprep.subr.mxu0 0.0
        %v1461 = vand.u32 %v1126, 4294901760
        %v1462 = vsub.f32 %v1126, %v1461
        %v1463 = vand.u32 %v1462, 4294901760
        %1464 = vmatpush1.msra.mxu0 %v1463
        %1465 = vmatprep.subr.mxu0 0.0
        %v1466 = vand.u32 %v1127, 4294901760
        %v1467 = vsub.f32 %v1127, %v1466
        %v1468 = vand.u32 %v1467, 4294901760
        %1469 = vmatpush1.msra.mxu0 %v1468
        %1470 = vmatprep.subr.mxu0 0.0
        %v1471 = vand.u32 %v1128, 4294901760
        %v1472 = vsub.f32 %v1128, %v1471
        %v1473 = vand.u32 %v1472, 4294901760
        %1474 = vmatpush1.msra.mxu0 %v1473
        %1475 = vmatprep.subr.mxu0 0.0
        %v1476 = vand.u32 %v1129, 4294901760
        %v1477 = vsub.f32 %v1129, %v1476
        %v1478 = vand.u32 %v1477, 4294901760
        %1479 = vmatpush1.msra.mxu0 %v1478
        %1480 = vmatprep.subr.mxu0 0.0
        %1481 = vmatpush1.msra.mxu0 0.0
        %1482 = vmatprep.subr.mxu0 0.0
        %1483 = vmatpush1.msra.mxu0 0.0
        %1484 = vmatprep.subr.mxu0 0.0
        %1485 = vmatpush1.msra.mxu0 0.0
        %1486 = vmatprep.subr.mxu0 0.0
        %1487 = vmatpush1.msra.mxu0 0.0
        %1488 = vmatprep.subr.mxu0 0.0
        %1489 = vmatpush1.msra.mxu0 0.0
        %1490 = vmatprep.subr.mxu0 0.0
        %1491 = vmatpush1.msra.mxu0 0.0
        %1492 = vmatprep.subr.mxu0 0.0
        %1493 = vmatpush1.msra.mxu0 0.0
        %1494 = vmatprep.subr.mxu0 0.0
        %1495 = vmatpush1.msra.mxu0 0.0
        %1496 = vmatprep.subr.mxu0 0.0
        %1497 = vmatpush1.msra.mxu0 0.0
        %1498 = vmatprep.subr.mxu0 0.0
        %1499 = vmatpush1.msra.mxu0 0.0
        %1500 = vmatprep.subr.mxu0 0.0
        %1501 = vmatpush1.msra.mxu0 0.0
        %1502 = vmatprep.subr.mxu0 0.0
        %1503 = vmatpush1.msra.mxu0 0.0
        %1504 = vmatprep.subr.mxu0 0.0
        %1505 = vmatpush1.msra.mxu0 0.0
        %1506 = vmatprep.subr.mxu0 0.0
        %1507 = vmatpush1.msra.mxu0 0.0
        %1508 = vmatprep.subr.mxu0 0.0
        %1509 = vmatpush1.msra.mxu0 0.0
        %1510 = vmatprep.subr.mxu0 0.0
        %1511 = vmatpush1.msra.mxu0 0.0
        %1512 = vmatprep.subr.mxu0 0.0
        %1513 = vmatpush1.msra.mxu0 0.0
        %1514 = vmatprep.subr.mxu0 0.0
        %1515 = vmatpush1.msra.mxu0 0.0
        %1516 = vmatprep.subr.mxu0 0.0
        %1517 = vmatpush1.msra.mxu0 0.0
        %1518 = vmatprep.subr.mxu0 0.0
        %1519 = vmatpush1.msra.mxu0 0.0
        %1520 = vmatprep.subr.mxu0 0.0
        %1521 = vmatpush1.msra.mxu0 0.0
        %1522 = vmatprep.subr.mxu0 0.0
        %1523 = vmatpush1.msra.mxu0 0.0
        %1524 = vmatprep.subr.mxu0 0.0
        %1525 = vmatpush1.msra.mxu0 0.0
        %1526 = vmatprep.subr.mxu0 0.0
        %1527 = vmatpush1.msra.mxu0 0.0
        %1528 = vmatprep.subr.mxu0 0.0
        %1529 = vmatpush1.msra.mxu0 0.0
        %1530 = vmatprep.subr.mxu0 0.0
        %1531 = vmatpush1.msra.mxu0 0.0
        %1532 = vmatprep.subr.mxu0 0.0
        %1533 = vmatpush1.msra.mxu0 0.0
        %1534 = vmatprep.subr.mxu0 0.0
        %1535 = vmatpush1.msra.mxu0 0.0
        %1536 = vmatprep.mubr.f32.mxu0 0.0
        %v1537 = vand.u32 %v1131, 4294901760
        %1538 = vmatmul.mubr.f32.gmra.mrb[0].mxu0 %v1537
        %v1539 = vpop.f32.mrb[0].mxu0
        %v1540 = vadd.f32 %v1457, %v1539
        %v1541 = vpop.f32.mrb[0].mxu0
        %1542 = vdwg.mxu0
        %1543 = vmatprep.subr.mxu0 0.0
        %v1544 = vand.u32 %v1126, 4294901760
        %1545 = vmatpush1.msra.mxu0 %v1544
        %1546 = vmatprep.subr.mxu0 0.0
        %v1547 = vand.u32 %v1127, 4294901760
        %1548 = vmatpush1.msra.mxu0 %v1547
        %1549 = vmatprep.subr.mxu0 0.0
        %v1550 = vand.u32 %v1128, 4294901760
        %1551 = vmatpush1.msra.mxu0 %v1550
        %1552 = vmatprep.subr.mxu0 0.0
        %v1553 = vand.u32 %v1129, 4294901760
        %1554 = vmatpush1.msra.mxu0 %v1553
        %1555 = vmatprep.subr.mxu0 0.0
        %1556 = vmatpush1.msra.mxu0 0.0
        %1557 = vmatprep.subr.mxu0 0.0
        %1558 = vmatpush1.msra.mxu0 0.0
        %1559 = vmatprep.subr.mxu0 0.0
        %1560 = vmatpush1.msra.mxu0 0.0
        %1561 = vmatprep.subr.mxu0 0.0
        %1562 = vmatpush1.msra.mxu0 0.0
        %1563 = vmatprep.subr.mxu0 0.0
        %1564 = vmatpush1.msra.mxu0 0.0
        %1565 = vmatprep.subr.mxu0 0.0
        %1566 = vmatpush1.msra.mxu0 0.0
        %1567 = vmatprep.subr.mxu0 0.0
        %1568 = vmatpush1.msra.mxu0 0.0
        %1569 = vmatprep.subr.mxu0 0.0
        %1570 = vmatpush1.msra.mxu0 0.0
        %1571 = vmatprep.subr.mxu0 0.0
        %1572 = vmatpush1.msra.mxu0 0.0
        %1573 = vmatprep.subr.mxu0 0.0
        %1574 = vmatpush1.msra.mxu0 0.0
        %1575 = vmatprep.subr.mxu0 0.0
        %1576 = vmatpush1.msra.mxu0 0.0
        %1577 = vmatprep.subr.mxu0 0.0
        %1578 = vmatpush1.msra.mxu0 0.0
        %1579 = vmatprep.subr.mxu0 0.0
        %1580 = vmatpush1.msra.mxu0 0.0
        %1581 = vmatprep.subr.mxu0 0.0
        %1582 = vmatpush1.msra.mxu0 0.0
        %1583 = vmatprep.subr.mxu0 0.0
        %1584 = vmatpush1.msra.mxu0 0.0
        %1585 = vmatprep.subr.mxu0 0.0
        %1586 = vmatpush1.msra.mxu0 0.0
        %1587 = vmatprep.subr.mxu0 0.0
        %1588 = vmatpush1.msra.mxu0 0.0
        %1589 = vmatprep.subr.mxu0 0.0
        %1590 = vmatpush1.msra.mxu0 0.0
        %1591 = vmatprep.subr.mxu0 0.0
        %1592 = vmatpush1.msra.mxu0 0.0
        %1593 = vmatprep.subr.mxu0 0.0
        %1594 = vmatpush1.msra.mxu0 0.0
        %1595 = vmatprep.subr.mxu0 0.0
        %1596 = vmatpush1.msra.mxu0 0.0
        %1597 = vmatprep.subr.mxu0 0.0
        %1598 = vmatpush1.msra.mxu0 0.0
        %1599 = vmatprep.subr.mxu0 0.0
        %1600 = vmatpush1.msra.mxu0 0.0
        %1601 = vmatprep.subr.mxu0 0.0
        %1602 = vmatpush1.msra.mxu0 0.0
        %1603 = vmatprep.subr.mxu0 0.0
        %1604 = vmatpush1.msra.mxu0 0.0
        %1605 = vmatprep.subr.mxu0 0.0
        %1606 = vmatpush1.msra.mxu0 0.0
        %1607 = vmatprep.subr.mxu0 0.0
        %1608 = vmatpush1.msra.mxu0 0.0
        %1609 = vmatprep.subr.mxu0 0.0
        %1610 = vmatpush1.msra.mxu0 0.0
        %1611 = vmatprep.mubr.f32.mxu0 0.0
        %v1612 = vand.u32 %v1131, 4294901760
        %1613 = vmatmul.mubr.f32.gmra.mrb[0].mxu0 %v1612
        %v1614 = vpop.f32.mrb[0].mxu0
        %v1615 = vadd.f32 %v1540, %v1614
        %v1616 = vpop.f32.mrb[0].mxu0
        %1617 = vdwg.mxu0
        %v1618 = vld [vmem:[%s293] sm:$0xff]
        %v1619 = vld [vmem:[%s293 + $0x8] sm:$0xff]
        %v1620 = vld [vmem:[%s293 + $0x10] sm:$0xff]
        %v1621 = vld [vmem:[%s293 + $0x18] sm:$0xff]
        %v1622 = vld [vmem:[%s5] sm:$0xff]
        %v1623 = vld [vmem:[%s5 + $0x8] sm:$0xff]
        %v1624 = vld [vmem:[%s5 + $0x10] sm:$0xff]
        %v1625 = vld [vmem:[%s5 + $0x18] sm:$0xff]
        %v1627 = vsel %vm314, %v1618, 0
        %v1630 = vsel %vm314, %v1619, 0
        %v1633 = vsel %vm314, %v1620, 0
        %v1636 = vsel %vm314, %v1621, 0
        %1638 = vmatprep.subr.mxu0 0.0
        %v1639 = vand.u32 %v1622, 4294901760
        %1640 = vmatpush1.msra.mxu0 %v1639
        %1641 = vmatprep.subr.mxu0 0.0
        %v1642 = vand.u32 %v1623, 4294901760
        %1643 = vmatpush1.msra.mxu0 %v1642
        %1644 = vmatprep.subr.mxu0 0.0
        %v1645 = vand.u32 %v1624, 4294901760
        %1646 = vmatpush1.msra.mxu0 %v1645
        %1647 = vmatprep.subr.mxu0 0.0
        %v1648 = vand.u32 %v1625, 4294901760
        %1649 = vmatpush1.msra.mxu0 %v1648
        %1650 = vmatprep.subr.mxu0 0.0
        %1651 = vmatpush1.msra.mxu0 0.0
        %1652 = vmatprep.subr.mxu0 0.0
        %1653 = vmatpush1.msra.mxu0 0.0
        %1654 = vmatprep.subr.mxu0 0.0
        %1655 = vmatpush1.msra.mxu0 0.0
        %1656 = vmatprep.subr.mxu0 0.0
        %1657 = vmatpush1.msra.mxu0 0.0
        %1658 = vmatprep.subr.mxu0 0.0
        %1659 = vmatpush1.msra.mxu0 0.0
        %1660 = vmatprep.subr.mxu0 0.0
        %1661 = vmatpush1.msra.mxu0 0.0
        %1662 = vmatprep.subr.mxu0 0.0
        %1663 = vmatpush1.msra.mxu0 0.0
        %1664 = vmatprep.subr.mxu0 0.0
        %1665 = vmatpush1.msra.mxu0 0.0
        %1666 = vmatprep.subr.mxu0 0.0
        %1667 = vmatpush1.msra.mxu0 0.0
        %1668 = vmatprep.subr.mxu0 0.0
        %1669 = vmatpush1.msra.mxu0 0.0
        %1670 = vmatprep.subr.mxu0 0.0
        %1671 = vmatpush1.msra.mxu0 0.0
        %1672 = vmatprep.subr.mxu0 0.0
        %1673 = vmatpush1.msra.mxu0 0.0
        %1674 = vmatprep.subr.mxu0 0.0
        %1675 = vmatpush1.msra.mxu0 0.0
        %1676 = vmatprep.subr.mxu0 0.0
        %1677 = vmatpush1.msra.mxu0 0.0
        %1678 = vmatprep.subr.mxu0 0.0
        %1679 = vmatpush1.msra.mxu0 0.0
        %1680 = vmatprep.subr.mxu0 0.0
        %1681 = vmatpush1.msra.mxu0 0.0
        %1682 = vmatprep.subr.mxu0 0.0
        %1683 = vmatpush1.msra.mxu0 0.0
        %1684 = vmatprep.subr.mxu0 0.0
        %1685 = vmatpush1.msra.mxu0 0.0
        %1686 = vmatprep.subr.mxu0 0.0
        %1687 = vmatpush1.msra.mxu0 0.0
        %1688 = vmatprep.subr.mxu0 0.0
        %1689 = vmatpush1.msra.mxu0 0.0
        %1690 = vmatprep.subr.mxu0 0.0
        %1691 = vmatpush1.msra.mxu0 0.0
        %1692 = vmatprep.subr.mxu0 0.0
        %1693 = vmatpush1.msra.mxu0 0.0
        %1694 = vmatprep.subr.mxu0 0.0
        %1695 = vmatpush1.msra.mxu0 0.0
        %1696 = vmatprep.subr.mxu0 0.0
        %1697 = vmatpush1.msra.mxu0 0.0
        %1698 = vmatprep.subr.mxu0 0.0
        %1699 = vmatpush1.msra.mxu0 0.0
        %1700 = vmatprep.subr.mxu0 0.0
        %1701 = vmatpush1.msra.mxu0 0.0
        %1702 = vmatprep.subr.mxu0 0.0
        %1703 = vmatpush1.msra.mxu0 0.0
        %1704 = vmatprep.subr.mxu0 0.0
        %1705 = vmatpush1.msra.mxu0 0.0
        %1706 = vmatprep.mubr.f32.mxu0 0.0
        %v1707 = vand.u32 %v1627, 4294901760
        %v1708 = vsub.f32 %v1627, %v1707
        %v1709 = vand.u32 %v1708, 4294901760
        %v1710 = vsub.f32 %v1708, %v1709
        %v1711 = vand.u32 %v1710, 4294901760
        %1712 = vmatmul.mubr.f32.gmra.mrb[0].mxu0 %v1711
        %v1713 = vpop.f32.mrb[0].mxu0
        %v1714 = vadd.f32 0.0, %v1713
        %v1715 = vpop.f32.mrb[0].mxu0
        %1716 = vmatprep.mubr.f32.mxu0 0.0
        %v1717 = vand.u32 %v1630, 4294901760
        %v1718 = vsub.f32 %v1630, %v1717
        %v1719 = vand.u32 %v1718, 4294901760
        %v1720 = vsub.f32 %v1718, %v1719
        %v1721 = vand.u32 %v1720, 4294901760
        %1722 = vmatmul.mubr.f32.gmra.mrb[0].mxu0 %v1721
        %v1723 = vpop.f32.mrb[0].mxu0
        %v1724 = vadd.f32 0.0, %v1723
        %v1725 = vpop.f32.mrb[0].mxu0
        %1726 = vmatprep.mubr.f32.mxu0 0.0
        %v1727 = vand.u32 %v1633, 4294901760
        %v1728 = vsub.f32 %v1633, %v1727
        %v1729 = vand.u32 %v1728, 4294901760
        %v1730 = vsub.f32 %v1728, %v1729
        %v1731 = vand.u32 %v1730, 4294901760
        %1732 = vmatmul.mubr.f32.gmra.mrb[0].mxu0 %v1731
        %v1733 = vpop.f32.mrb[0].mxu0
        %v1734 = vadd.f32 0.0, %v1733
        %v1735 = vpop.f32.mrb[0].mxu0
        %1736 = vmatprep.mubr.f32.mxu0 0.0
        %v1737 = vand.u32 %v1636, 4294901760
        %v1738 = vsub.f32 %v1636, %v1737
        %v1739 = vand.u32 %v1738, 4294901760
        %v1740 = vsub.f32 %v1738, %v1739
        %v1741 = vand.u32 %v1740, 4294901760
        %1742 = vmatmul.mubr.f32.gmra.mrb[0].mxu0 %v1741
        %v1743 = vpop.f32.mrb[0].mxu0
        %v1744 = vadd.f32 0.0, %v1743
        %v1745 = vpop.f32.mrb[0].mxu0
        %1746 = vdwg.mxu0
        %1747 = vmatprep.subr.mxu0 0.0
        %v1748 = vand.u32 %v1622, 4294901760
        %v1749 = vsub.f32 %v1622, %v1748
        %v1750 = vand.u32 %v1749, 4294901760
        %v1751 = vsub.f32 %v1749, %v1750
        %v1752 = vand.u32 %v1751, 4294901760
        %1753 = vmatpush1.msra.mxu0 %v1752
        %1754 = vmatprep.subr.mxu0 0.0
        %v1755 = vand.u32 %v1623, 4294901760
        %v1756 = vsub.f32 %v1623, %v1755
        %v1757 = vand.u32 %v1756, 4294901760
        %v1758 = vsub.f32 %v1756, %v1757
        %v1759 = vand.u32 %v1758, 4294901760
        %1760 = vmatpush1.msra.mxu0 %v1759
        %1761 = vmatprep.subr.mxu0 0.0
        %v1762 = vand.u32 %v1624, 4294901760
        %v1763 = vsub.f32 %v1624, %v1762
        %v1764 = vand.u32 %v1763, 4294901760
        %v1765 = vsub.f32 %v1763, %v1764
        %v1766 = vand.u32 %v1765, 4294901760
        %1767 = vmatpush1.msra.mxu0 %v1766
        %1768 = vmatprep.subr.mxu0 0.0
        %v1769 = vand.u32 %v1625, 4294901760
        %v1770 = vsub.f32 %v1625, %v1769
        %v1771 = vand.u32 %v1770, 4294901760
        %v1772 = vsub.f32 %v1770, %v1771
        %v1773 = vand.u32 %v1772, 4294901760
        %1774 = vmatpush1.msra.mxu0 %v1773
        %1775 = vmatprep.subr.mxu0 0.0
        %1776 = vmatpush1.msra.mxu0 0.0
        %1777 = vmatprep.subr.mxu0 0.0
        %1778 = vmatpush1.msra.mxu0 0.0
        %1779 = vmatprep.subr.mxu0 0.0
        %1780 = vmatpush1.msra.mxu0 0.0
        %1781 = vmatprep.subr.mxu0 0.0
        %1782 = vmatpush1.msra.mxu0 0.0
        %1783 = vmatprep.subr.mxu0 0.0
        %1784 = vmatpush1.msra.mxu0 0.0
        %1785 = vmatprep.subr.mxu0 0.0
        %1786 = vmatpush1.msra.mxu0 0.0
        %1787 = vmatprep.subr.mxu0 0.0
        %1788 = vmatpush1.msra.mxu0 0.0
        %1789 = vmatprep.subr.mxu0 0.0
        %1790 = vmatpush1.msra.mxu0 0.0
        %1791 = vmatprep.subr.mxu0 0.0
        %1792 = vmatpush1.msra.mxu0 0.0
        %1793 = vmatprep.subr.mxu0 0.0
        %1794 = vmatpush1.msra.mxu0 0.0
        %1795 = vmatprep.subr.mxu0 0.0
        %1796 = vmatpush1.msra.mxu0 0.0
        %1797 = vmatprep.subr.mxu0 0.0
        %1798 = vmatpush1.msra.mxu0 0.0
        %1799 = vmatprep.subr.mxu0 0.0
        %1800 = vmatpush1.msra.mxu0 0.0
        %1801 = vmatprep.subr.mxu0 0.0
        %1802 = vmatpush1.msra.mxu0 0.0
        %1803 = vmatprep.subr.mxu0 0.0
        %1804 = vmatpush1.msra.mxu0 0.0
        %1805 = vmatprep.subr.mxu0 0.0
        %1806 = vmatpush1.msra.mxu0 0.0
        %1807 = vmatprep.subr.mxu0 0.0
        %1808 = vmatpush1.msra.mxu0 0.0
        %1809 = vmatprep.subr.mxu0 0.0
        %1810 = vmatpush1.msra.mxu0 0.0
        %1811 = vmatprep.subr.mxu0 0.0
        %1812 = vmatpush1.msra.mxu0 0.0
        %1813 = vmatprep.subr.mxu0 0.0
        %1814 = vmatpush1.msra.mxu0 0.0
        %1815 = vmatprep.subr.mxu0 0.0
        %1816 = vmatpush1.msra.mxu0 0.0
        %1817 = vmatprep.subr.mxu0 0.0
        %1818 = vmatpush1.msra.mxu0 0.0
        %1819 = vmatprep.subr.mxu0 0.0
        %1820 = vmatpush1.msra.mxu0 0.0
        %1821 = vmatprep.subr.mxu0 0.0
        %1822 = vmatpush1.msra.mxu0 0.0
        %1823 = vmatprep.subr.mxu0 0.0
        %1824 = vmatpush1.msra.mxu0 0.0
        %1825 = vmatprep.subr.mxu0 0.0
        %1826 = vmatpush1.msra.mxu0 0.0
        %1827 = vmatprep.subr.mxu0 0.0
        %1828 = vmatpush1.msra.mxu0 0.0
        %1829 = vmatprep.subr.mxu0 0.0
        %1830 = vmatpush1.msra.mxu0 0.0
        %1831 = vmatprep.mubr.f32.mxu0 0.0
        %v1832 = vand.u32 %v1627, 4294901760
        %1833 = vmatmul.mubr.f32.gmra.mrb[0].mxu0 %v1832
        %v1834 = vpop.f32.mrb[0].mxu0
        %v1835 = vadd.f32 %v1714, %v1834
        %v1836 = vpop.f32.mrb[0].mxu0
        %1837 = vmatprep.mubr.f32.mxu0 0.0
        %v1838 = vand.u32 %v1630, 4294901760
        %1839 = vmatmul.mubr.f32.gmra.mrb[0].mxu0 %v1838
        %v1840 = vpop.f32.mrb[0].mxu0
        %v1841 = vadd.f32 %v1724, %v1840
        %v1842 = vpop.f32.mrb[0].mxu0
        %1843 = vmatprep.mubr.f32.mxu0 0.0
        %v1844 = vand.u32 %v1633, 4294901760
        %1845 = vmatmul.mubr.f32.gmra.mrb[0].mxu0 %v1844
        %v1846 = vpop.f32.mrb[0].mxu0
        %v1847 = vadd.f32 %v1734, %v1846
        %v1848 = vpop.f32.mrb[0].mxu0
        %1849 = vmatprep.mubr.f32.mxu0 0.0
        %v1850 = vand.u32 %v1636, 4294901760
        %1851 = vmatmul.mubr.f32.gmra.mrb[0].mxu0 %v1850
        %v1852 = vpop.f32.mrb[0].mxu0
        %v1853 = vadd.f32 %v1744, %v1852
        %v1854 = vpop.f32.mrb[0].mxu0
        %1855 = vdwg.mxu0
        %1856 = vmatprep.subr.mxu0 0.0
        %v1857 = vand.u32 %v1622, 4294901760
        %v1858 = vsub.f32 %v1622, %v1857
        %1859 = vmatpush1.msra.mxu0 %v1858
        %1860 = vmatprep.subr.mxu0 0.0
        %v1861 = vand.u32 %v1623, 4294901760
        %v1862 = vsub.f32 %v1623, %v1861
        %1863 = vmatpush1.msra.mxu0 %v1862
        %1864 = vmatprep.subr.mxu0 0.0
        %v1865 = vand.u32 %v1624, 4294901760
        %v1866 = vsub.f32 %v1624, %v1865
        %1867 = vmatpush1.msra.mxu0 %v1866
        %1868 = vmatprep.subr.mxu0 0.0
        %v1869 = vand.u32 %v1625, 4294901760
        %v1870 = vsub.f32 %v1625, %v1869
        %1871 = vmatpush1.msra.mxu0 %v1870
        %1872 = vmatprep.subr.mxu0 0.0
        %1873 = vmatpush1.msra.mxu0 0.0
        %1874 = vmatprep.subr.mxu0 0.0
        %1875 = vmatpush1.msra.mxu0 0.0
        %1876 = vmatprep.subr.mxu0 0.0
        %1877 = vmatpush1.msra.mxu0 0.0
        %1878 = vmatprep.subr.mxu0 0.0
        %1879 = vmatpush1.msra.mxu0 0.0
        %1880 = vmatprep.subr.mxu0 0.0
        %1881 = vmatpush1.msra.mxu0 0.0
        %1882 = vmatprep.subr.mxu0 0.0
        %1883 = vmatpush1.msra.mxu0 0.0
        %1884 = vmatprep.subr.mxu0 0.0
        %1885 = vmatpush1.msra.mxu0 0.0
        %1886 = vmatprep.subr.mxu0 0.0
        %1887 = vmatpush1.msra.mxu0 0.0
        %1888 = vmatprep.subr.mxu0 0.0
        %1889 = vmatpush1.msra.mxu0 0.0
        %1890 = vmatprep.subr.mxu0 0.0
        %1891 = vmatpush1.msra.mxu0 0.0
        %1892 = vmatprep.subr.mxu0 0.0
        %1893 = vmatpush1.msra.mxu0 0.0
        %1894 = vmatprep.subr.mxu0 0.0
        %1895 = vmatpush1.msra.mxu0 0.0
        %1896 = vmatprep.subr.mxu0 0.0
        %1897 = vmatpush1.msra.mxu0 0.0
        %1898 = vmatprep.subr.mxu0 0.0
        %1899 = vmatpush1.msra.mxu0 0.0
        %1900 = vmatprep.subr.mxu0 0.0
        %1901 = vmatpush1.msra.mxu0 0.0
        %1902 = vmatprep.subr.mxu0 0.0
        %1903 = vmatpush1.msra.mxu0 0.0
        %1904 = vmatprep.subr.mxu0 0.0
        %1905 = vmatpush1.msra.mxu0 0.0
        %1906 = vmatprep.subr.mxu0 0.0
        %1907 = vmatpush1.msra.mxu0 0.0
        %1908 = vmatprep.subr.mxu0 0.0
        %1909 = vmatpush1.msra.mxu0 0.0
        %1910 = vmatprep.subr.mxu0 0.0
        %1911 = vmatpush1.msra.mxu0 0.0
        %1912 = vmatprep.subr.mxu0 0.0
        %1913 = vmatpush1.msra.mxu0 0.0
        %1914 = vmatprep.subr.mxu0 0.0
        %1915 = vmatpush1.msra.mxu0 0.0
        %1916 = vmatprep.subr.mxu0 0.0
        %1917 = vmatpush1.msra.mxu0 0.0
        %1918 = vmatprep.subr.mxu0 0.0
        %1919 = vmatpush1.msra.mxu0 0.0
        %1920 = vmatprep.subr.mxu0 0.0
        %1921 = vmatpush1.msra.mxu0 0.0
        %1922 = vmatprep.subr.mxu0 0.0
        %1923 = vmatpush1.msra.mxu0 0.0
        %1924 = vmatprep.subr.mxu0 0.0
        %1925 = vmatpush1.msra.mxu0 0.0
        %1926 = vmatprep.subr.mxu0 0.0
        %1927 = vmatpush1.msra.mxu0 0.0
        %1928 = vmatprep.mubr.f32.mxu0 0.0
        %v1929 = vand.u32 %v1627, 4294901760
        %v1930 = vsub.f32 %v1627, %v1929
        %1931 = vmatmul.mubr.f32.gmra.mrb[0].mxu0 %v1930
        %v1932 = vpop.f32.mrb[0].mxu0
        %v1933 = vadd.f32 %v1835, %v1932
        %v1934 = vpop.f32.mrb[0].mxu0
        %1935 = vmatprep.mubr.f32.mxu0 0.0
        %v1936 = vand.u32 %v1630, 4294901760
        %v1937 = vsub.f32 %v1630, %v1936
        %1938 = vmatmul.mubr.f32.gmra.mrb[0].mxu0 %v1937
        %v1939 = vpop.f32.mrb[0].mxu0
        %v1940 = vadd.f32 %v1841, %v1939
        %v1941 = vpop.f32.mrb[0].mxu0
        %1942 = vmatprep.mubr.f32.mxu0 0.0
        %v1943 = vand.u32 %v1633, 4294901760
        %v1944 = vsub.f32 %v1633, %v1943
        %1945 = vmatmul.mubr.f32.gmra.mrb[0].mxu0 %v1944
        %v1946 = vpop.f32.mrb[0].mxu0
        %v1947 = vadd.f32 %v1847, %v1946
        %v1948 = vpop.f32.mrb[0].mxu0
        %1949 = vmatprep.mubr.f32.mxu0 0.0
        %v1950 = vand.u32 %v1636, 4294901760
        %v1951 = vsub.f32 %v1636, %v1950
        %1952 = vmatmul.mubr.f32.gmra.mrb[0].mxu0 %v1951
        %v1953 = vpop.f32.mrb[0].mxu0
        %v1954 = vadd.f32 %v1853, %v1953
        %v1955 = vpop.f32.mrb[0].mxu0
        %1956 = vdwg.mxu0
        %1957 = vmatprep.subr.mxu0 0.0
        %v1958 = vand.u32 %v1622, 4294901760
        %1959 = vmatpush1.msra.mxu0 %v1958
        %1960 = vmatprep.subr.mxu0 0.0
        %v1961 = vand.u32 %v1623, 4294901760
        %1962 = vmatpush1.msra.mxu0 %v1961
        %1963 = vmatprep.subr.mxu0 0.0
        %v1964 = vand.u32 %v1624, 4294901760
        %1965 = vmatpush1.msra.mxu0 %v1964
        %1966 = vmatprep.subr.mxu0 0.0
        %v1967 = vand.u32 %v1625, 4294901760
        %1968 = vmatpush1.msra.mxu0 %v1967
        %1969 = vmatprep.subr.mxu0 0.0
        %1970 = vmatpush1.msra.mxu0 0.0
        %1971 = vmatprep.subr.mxu0 0.0
        %1972 = vmatpush1.msra.mxu0 0.0
        %1973 = vmatprep.subr.mxu0 0.0
        %1974 = vmatpush1.msra.mxu0 0.0
        %1975 = vmatprep.subr.mxu0 0.0
        %1976 = vmatpush1.msra.mxu0 0.0
        %1977 = vmatprep.subr.mxu0 0.0
        %1978 = vmatpush1.msra.mxu0 0.0
        %1979 = vmatprep.subr.mxu0 0.0
        %1980 = vmatpush1.msra.mxu0 0.0
        %1981 = vmatprep.subr.mxu0 0.0
        %1982 = vmatpush1.msra.mxu0 0.0
        %1983 = vmatprep.subr.mxu0 0.0
        %1984 = vmatpush1.msra.mxu0 0.0
        %1985 = vmatprep.subr.mxu0 0.0
        %1986 = vmatpush1.msra.mxu0 0.0
        %1987 = vmatprep.subr.mxu0 0.0
        %1988 = vmatpush1.msra.mxu0 0.0
        %1989 = vmatprep.subr.mxu0 0.0
        %1990 = vmatpush1.msra.mxu0 0.0
        %1991 = vmatprep.subr.mxu0 0.0
        %1992 = vmatpush1.msra.mxu0 0.0
        %1993 = vmatprep.subr.mxu0 0.0
        %1994 = vmatpush1.msra.mxu0 0.0
        %1995 = vmatprep.subr.mxu0 0.0
        %1996 = vmatpush1.msra.mxu0 0.0
        %1997 = vmatprep.subr.mxu0 0.0
        %1998 = vmatpush1.msra.mxu0 0.0
        %1999 = vmatprep.subr.mxu0 0.0
        %2000 = vmatpush1.msra.mxu0 0.0
        %2001 = vmatprep.subr.mxu0 0.0
        %2002 = vmatpush1.msra.mxu0 0.0
        %2003 = vmatprep.subr.mxu0 0.0
        %2004 = vmatpush1.msra.mxu0 0.0
        %2005 = vmatprep.subr.mxu0 0.0
        %2006 = vmatpush1.msra.mxu0 0.0
        %2007 = vmatprep.subr.mxu0 0.0
        %2008 = vmatpush1.msra.mxu0 0.0
        %2009 = vmatprep.subr.mxu0 0.0
        %2010 = vmatpush1.msra.mxu0 0.0
        %2011 = vmatprep.subr.mxu0 0.0
        %2012 = vmatpush1.msra.mxu0 0.0
        %2013 = vmatprep.subr.mxu0 0.0
        %2014 = vmatpush1.msra.mxu0 0.0
        %2015 = vmatprep.subr.mxu0 0.0
        %2016 = vmatpush1.msra.mxu0 0.0
        %2017 = vmatprep.subr.mxu0 0.0
        %2018 = vmatpush1.msra.mxu0 0.0
        %2019 = vmatprep.subr.mxu0 0.0
        %2020 = vmatpush1.msra.mxu0 0.0
        %2021 = vmatprep.subr.mxu0 0.0
        %2022 = vmatpush1.msra.mxu0 0.0
        %2023 = vmatprep.subr.mxu0 0.0
        %2024 = vmatpush1.msra.mxu0 0.0
        %2025 = vmatprep.mubr.f32.mxu0 0.0
        %v2026 = vand.u32 %v1627, 4294901760
        %v2027 = vsub.f32 %v1627, %v2026
        %v2028 = vand.u32 %v2027, 4294901760
        %2029 = vmatmul.mubr.f32.gmra.mrb[0].mxu0 %v2028
        %v2030 = vpop.f32.mrb[0].mxu0
        %v2031 = vadd.f32 %v1933, %v2030
        %v2032 = vpop.f32.mrb[0].mxu0
        %2033 = vmatprep.mubr.f32.mxu0 0.0
        %v2034 = vand.u32 %v1630, 4294901760
        %v2035 = vsub.f32 %v1630, %v2034
        %v2036 = vand.u32 %v2035, 4294901760
        %2037 = vmatmul.mubr.f32.gmra.mrb[0].mxu0 %v2036
        %v2038 = vpop.f32.mrb[0].mxu0
        %v2039 = vadd.f32 %v1940, %v2038
        %v2040 = vpop.f32.mrb[0].mxu0
        %2041 = vmatprep.mubr.f32.mxu0 0.0
        %v2042 = vand.u32 %v1633, 4294901760
        %v2043 = vsub.f32 %v1633, %v2042
        %v2044 = vand.u32 %v2043, 4294901760
        %2045 = vmatmul.mubr.f32.gmra.mrb[0].mxu0 %v2044
        %v2046 = vpop.f32.mrb[0].mxu0
        %v2047 = vadd.f32 %v1947, %v2046
        %v2048 = vpop.f32.mrb[0].mxu0
        %2049 = vmatprep.mubr.f32.mxu0 0.0
        %v2050 = vand.u32 %v1636, 4294901760
        %v2051 = vsub.f32 %v1636, %v2050
        %v2052 = vand.u32 %v2051, 4294901760
        %2053 = vmatmul.mubr.f32.gmra.mrb[0].mxu0 %v2052
        %v2054 = vpop.f32.mrb[0].mxu0
        %v2055 = vadd.f32 %v1954, %v2054
        %v2056 = vpop.f32.mrb[0].mxu0
        %2057 = vdwg.mxu0
        %2058 = vmatprep.subr.mxu0 0.0
        %v2059 = vand.u32 %v1622, 4294901760
        %v2060 = vsub.f32 %v1622, %v2059
        %v2061 = vand.u32 %v2060, 4294901760
        %2062 = vmatpush1.msra.mxu0 %v2061
        %2063 = vmatprep.subr.mxu0 0.0
        %v2064 = vand.u32 %v1623, 4294901760
        %v2065 = vsub.f32 %v1623, %v2064
        %v2066 = vand.u32 %v2065, 4294901760
        %2067 = vmatpush1.msra.mxu0 %v2066
        %2068 = vmatprep.subr.mxu0 0.0
        %v2069 = vand.u32 %v1624, 4294901760
        %v2070 = vsub.f32 %v1624, %v2069
        %v2071 = vand.u32 %v2070, 4294901760
        %2072 = vmatpush1.msra.mxu0 %v2071
        %2073 = vmatprep.subr.mxu0 0.0
        %v2074 = vand.u32 %v1625, 4294901760
        %v2075 = vsub.f32 %v1625, %v2074
        %v2076 = vand.u32 %v2075, 4294901760
        %2077 = vmatpush1.msra.mxu0 %v2076
        %2078 = vmatprep.subr.mxu0 0.0
        %2079 = vmatpush1.msra.mxu0 0.0
        %2080 = vmatprep.subr.mxu0 0.0
        %2081 = vmatpush1.msra.mxu0 0.0
        %2082 = vmatprep.subr.mxu0 0.0
        %2083 = vmatpush1.msra.mxu0 0.0
        %2084 = vmatprep.subr.mxu0 0.0
        %2085 = vmatpush1.msra.mxu0 0.0
        %2086 = vmatprep.subr.mxu0 0.0
        %2087 = vmatpush1.msra.mxu0 0.0
        %2088 = vmatprep.subr.mxu0 0.0
        %2089 = vmatpush1.msra.mxu0 0.0
        %2090 = vmatprep.subr.mxu0 0.0
        %2091 = vmatpush1.msra.mxu0 0.0
        %2092 = vmatprep.subr.mxu0 0.0
        %2093 = vmatpush1.msra.mxu0 0.0
        %2094 = vmatprep.subr.mxu0 0.0
        %2095 = vmatpush1.msra.mxu0 0.0
        %2096 = vmatprep.subr.mxu0 0.0
        %2097 = vmatpush1.msra.mxu0 0.0
        %2098 = vmatprep.subr.mxu0 0.0
        %2099 = vmatpush1.msra.mxu0 0.0
        %2100 = vmatprep.subr.mxu0 0.0
        %2101 = vmatpush1.msra.mxu0 0.0
        %2102 = vmatprep.subr.mxu0 0.0
        %2103 = vmatpush1.msra.mxu0 0.0
        %2104 = vmatprep.subr.mxu0 0.0
        %2105 = vmatpush1.msra.mxu0 0.0
        %2106 = vmatprep.subr.mxu0 0.0
        %2107 = vmatpush1.msra.mxu0 0.0
        %2108 = vmatprep.subr.mxu0 0.0
        %2109 = vmatpush1.msra.mxu0 0.0
        %2110 = vmatprep.subr.mxu0 0.0
        %2111 = vmatpush1.msra.mxu0 0.0
        %2112 = vmatprep.subr.mxu0 0.0
        %2113 = vmatpush1.msra.mxu0 0.0
        %2114 = vmatprep.subr.mxu0 0.0
        %2115 = vmatpush1.msra.mxu0 0.0
        %2116 = vmatprep.subr.mxu0 0.0
        %2117 = vmatpush1.msra.mxu0 0.0
        %2118 = vmatprep.subr.mxu0 0.0
        %2119 = vmatpush1.msra.mxu0 0.0
        %2120 = vmatprep.subr.mxu0 0.0
        %2121 = vmatpush1.msra.mxu0 0.0
        %2122 = vmatprep.subr.mxu0 0.0
        %2123 = vmatpush1.msra.mxu0 0.0
        %2124 = vmatprep.subr.mxu0 0.0
        %2125 = vmatpush1.msra.mxu0 0.0
        %2126 = vmatprep.subr.mxu0 0.0
        %2127 = vmatpush1.msra.mxu0 0.0
        %2128 = vmatprep.subr.mxu0 0.0
        %2129 = vmatpush1.msra.mxu0 0.0
        %2130 = vmatprep.subr.mxu0 0.0
        %2131 = vmatpush1.msra.mxu0 0.0
        %2132 = vmatprep.subr.mxu0 0.0
        %2133 = vmatpush1.msra.mxu0 0.0
        %2134 = vmatprep.mubr.f32.mxu0 0.0
        %v2135 = vand.u32 %v1627, 4294901760
        %2136 = vmatmul.mubr.f32.gmra.mrb[0].mxu0 %v2135
        %v2137 = vpop.f32.mrb[0].mxu0
        %v2138 = vadd.f32 %v2031, %v2137
        %v2139 = vpop.f32.mrb[0].mxu0
        %2140 = vmatprep.mubr.f32.mxu0 0.0
        %v2141 = vand.u32 %v1630, 4294901760
        %2142 = vmatmul.mubr.f32.gmra.mrb[0].mxu0 %v2141
        %v2143 = vpop.f32.mrb[0].mxu0
        %v2144 = vadd.f32 %v2039, %v2143
        %v2145 = vpop.f32.mrb[0].mxu0
        %2146 = vmatprep.mubr.f32.mxu0 0.0
        %v2147 = vand.u32 %v1633, 4294901760
        %2148 = vmatmul.mubr.f32.gmra.mrb[0].mxu0 %v2147
        %v2149 = vpop.f32.mrb[0].mxu0
        %v2150 = vadd.f32 %v2047, %v2149
        %v2151 = vpop.f32.mrb[0].mxu0
        %2152 = vmatprep.mubr.f32.mxu0 0.0
        %v2153 = vand.u32 %v1636, 4294901760
        %2154 = vmatmul.mubr.f32.gmra.mrb[0].mxu0 %v2153
        %v2155 = vpop.f32.mrb[0].mxu0
        %v2156 = vadd.f32 %v2055, %v2155
        %v2157 = vpop.f32.mrb[0].mxu0
        %2158 = vdwg.mxu0
        %2159 = vmatprep.subr.mxu0 0.0
        %v2160 = vand.u32 %v1622, 4294901760
        %2161 = vmatpush1.msra.mxu0 %v2160
        %2162 = vmatprep.subr.mxu0 0.0
        %v2163 = vand.u32 %v1623, 4294901760
        %2164 = vmatpush1.msra.mxu0 %v2163
        %2165 = vmatprep.subr.mxu0 0.0
        %v2166 = vand.u32 %v1624, 4294901760
        %2167 = vmatpush1.msra.mxu0 %v2166
        %2168 = vmatprep.subr.mxu0 0.0
        %v2169 = vand.u32 %v1625, 4294901760
        %2170 = vmatpush1.msra.mxu0 %v2169
        %2171 = vmatprep.subr.mxu0 0.0
        %2172 = vmatpush1.msra.mxu0 0.0
        %2173 = vmatprep.subr.mxu0 0.0
        %2174 = vmatpush1.msra.mxu0 0.0
        %2175 = vmatprep.subr.mxu0 0.0
        %2176 = vmatpush1.msra.mxu0 0.0
        %2177 = vmatprep.subr.mxu0 0.0
        %2178 = vmatpush1.msra.mxu0 0.0
        %2179 = vmatprep.subr.mxu0 0.0
        %2180 = vmatpush1.msra.mxu0 0.0
        %2181 = vmatprep.subr.mxu0 0.0
        %2182 = vmatpush1.msra.mxu0 0.0
        %2183 = vmatprep.subr.mxu0 0.0
        %2184 = vmatpush1.msra.mxu0 0.0
        %2185 = vmatprep.subr.mxu0 0.0
        %2186 = vmatpush1.msra.mxu0 0.0
        %2187 = vmatprep.subr.mxu0 0.0
        %2188 = vmatpush1.msra.mxu0 0.0
        %2189 = vmatprep.subr.mxu0 0.0
        %2190 = vmatpush1.msra.mxu0 0.0
        %2191 = vmatprep.subr.mxu0 0.0
        %2192 = vmatpush1.msra.mxu0 0.0
        %2193 = vmatprep.subr.mxu0 0.0
        %2194 = vmatpush1.msra.mxu0 0.0
        %2195 = vmatprep.subr.mxu0 0.0
        %2196 = vmatpush1.msra.mxu0 0.0
        %2197 = vmatprep.subr.mxu0 0.0
        %2198 = vmatpush1.msra.mxu0 0.0
        %2199 = vmatprep.subr.mxu0 0.0
        %2200 = vmatpush1.msra.mxu0 0.0
        %2201 = vmatprep.subr.mxu0 0.0
        %2202 = vmatpush1.msra.mxu0 0.0
        %2203 = vmatprep.subr.mxu0 0.0
        %2204 = vmatpush1.msra.mxu0 0.0
        %2205 = vmatprep.subr.mxu0 0.0
        %2206 = vmatpush1.msra.mxu0 0.0
        %2207 = vmatprep.subr.mxu0 0.0
        %2208 = vmatpush1.msra.mxu0 0.0
        %2209 = vmatprep.subr.mxu0 0.0
        %2210 = vmatpush1.msra.mxu0 0.0
        %2211 = vmatprep.subr.mxu0 0.0
        %2212 = vmatpush1.msra.mxu0 0.0
        %2213 = vmatprep.subr.mxu0 0.0
        %2214 = vmatpush1.msra.mxu0 0.0
        %2215 = vmatprep.subr.mxu0 0.0
        %2216 = vmatpush1.msra.mxu0 0.0
        %2217 = vmatprep.subr.mxu0 0.0
        %2218 = vmatpush1.msra.mxu0 0.0
        %2219 = vmatprep.subr.mxu0 0.0
        %2220 = vmatpush1.msra.mxu0 0.0
        %2221 = vmatprep.subr.mxu0 0.0
        %2222 = vmatpush1.msra.mxu0 0.0
        %2223 = vmatprep.subr.mxu0 0.0
        %2224 = vmatpush1.msra.mxu0 0.0
        %2225 = vmatprep.subr.mxu0 0.0
        %2226 = vmatpush1.msra.mxu0 0.0
        %2227 = vmatprep.mubr.f32.mxu0 0.0
        %v2228 = vand.u32 %v1627, 4294901760
        %2229 = vmatmul.mubr.f32.gmra.mrb[0].mxu0 %v2228
        %v2230 = vpop.f32.mrb[0].mxu0
        %v2231 = vadd.f32 %v2138, %v2230
        %v2232 = vpop.f32.mrb[0].mxu0
        %2233 = vmatprep.mubr.f32.mxu0 0.0
        %v2234 = vand.u32 %v1630, 4294901760
        %2235 = vmatmul.mubr.f32.gmra.mrb[0].mxu0 %v2234
        %v2236 = vpop.f32.mrb[0].mxu0
        %v2237 = vadd.f32 %v2144, %v2236
        %v2238 = vpop.f32.mrb[0].mxu0
        %2239 = vmatprep.mubr.f32.mxu0 0.0
        %v2240 = vand.u32 %v1633, 4294901760
        %2241 = vmatmul.mubr.f32.gmra.mrb[0].mxu0 %v2240
        %v2242 = vpop.f32.mrb[0].mxu0
        %v2243 = vadd.f32 %v2150, %v2242
        %v2244 = vpop.f32.mrb[0].mxu0
        %2245 = vmatprep.mubr.f32.mxu0 0.0
        %v2246 = vand.u32 %v1636, 4294901760
        %2247 = vmatmul.mubr.f32.gmra.mrb[0].mxu0 %v2246
        %v2248 = vpop.f32.mrb[0].mxu0
        %v2249 = vadd.f32 %v2156, %v2248
        %v2250 = vpop.f32.mrb[0].mxu0
        %2251 = vdwg.mxu0
        %v2252 = vld [vmem:[%s299] sm:$0xf]
        %v2253 = vld [vmem:[%s299 + $0x4] sm:$0xf]
        %v2254 = vld [vmem:[%s299 + $0x8] sm:$0xf]
        %v2255 = vld [vmem:[%s299 + $0xc] sm:$0xf]
        %v2256 = vunpack.c.l.bf16 %v2252
        %v2257 = vunpack.c.l.bf16 %v2253
        %v2258 = vunpack.c.l.bf16 %v2254
        %v2259 = vunpack.c.l.bf16 %v2255
        %2261 = vset.pattern.permute.xlu0 0
        %2262 = vperm.xlu0 %2261, %v2231
        %v2263 = vpop.permute.xlu0 %2262
        %2266 = vset.pattern.permute.xlu0 0
        %2267 = vperm.xlu0 %2266, %v2237
        %v2268 = vpop.permute.xlu0 %2267
        %2271 = vset.pattern.permute.xlu0 0
        %2272 = vperm.xlu0 %2271, %v2243
        %v2273 = vpop.permute.xlu0 %2272
        %2276 = vset.pattern.permute.xlu0 0
        %2277 = vperm.xlu0 %2276, %v2249
        %v2278 = vpop.permute.xlu0 %2277
        %v2280 = vlaneseq
        %v2281 = vshrl.u32 %v2280, 7
        %v2282 = vsub.s32 0, %v2281
        %v2283 = vrot.slane %v1615, %v2282
        %v2284 = vadd.f32 %v2263, %v2283
        %v2285 = vadd.f32 %v2268, %v2283
        %v2286 = vadd.f32 %v2273, %v2283
        %v2287 = vadd.f32 %v2278, %v2283
        %v2288 = vmul.f32 %v2284, 0.2
        %v2289 = vmul.f32 %v2285, 0.2
        %v2290 = vmul.f32 %v2286, 0.2
        %v2291 = vmul.f32 %v2287, 0.2
        %v2292 = vmax.f32 %v2284, %v2288
        %v2293 = vmax.f32 %v2285, %v2289
        %v2294 = vmax.f32 %v2286, %v2290
        %v2295 = vmax.f32 %v2287, %v2291
        %v2296 = vadd.f32 %v2292, %v2256
        %v2297 = vadd.f32 %v2293, %v2257
        %v2298 = vadd.f32 %v2294, %v2258
        %v2299 = vadd.f32 %v2295, %v2259
        %vm2300 = vcmask 523264
        %v2301 = vsel %vm2300, %v2296, -inf
        %2302 = vmax.xlane.f32.xlu0 %v2301
        %v2303 = vpop.xlane.xlu0 %2302
        %v2304 = vsel %vm2300, %v2297, -inf
        %2305 = vmax.xlane.f32.xlu0 %v2304
        %v2306 = vpop.xlane.xlu0 %2305
        %v2307 = vsel %vm2300, %v2298, -inf
        %2308 = vmax.xlane.f32.xlu0 %v2307
        %v2309 = vpop.xlane.xlu0 %2308
        %v2310 = vsel %vm2300, %v2299, -inf
        %2311 = vmax.xlane.f32.xlu0 %v2310
        %v2312 = vpop.xlane.xlu0 %2311
        %v2313 = vsub.f32 %v2296, %v2303
        %v2314 = vsub.f32 %v2297, %v2306
        %v2315 = vsub.f32 %v2298, %v2309
        %v2316 = vsub.f32 %v2299, %v2312
        %v2317 = vmul.f32 %v2313, 1.442695
        %v2318 = vpow.pop %v2317
        %v2319 = vmul.f32 %v2314, 1.442695
        %v2320 = vpow.pop %v2319
        %v2321 = vmul.f32 %v2315, 1.442695
        %v2322 = vpow.pop %v2321
        %v2323 = vmul.f32 %v2316, 1.442695
        %v2324 = vpow.pop %v2323
        %v2325 = vsel %vm2300, %v2318, 0.0
        %2326 = vadd.xlane.f32.xlu0 %v2325
        %v2327 = vpop.xlane.xlu0 %2326
        %v2328 = vsel %vm2300, %v2320, 0.0
        %2329 = vadd.xlane.f32.xlu0 %v2328
        %v2330 = vpop.xlane.xlu0 %2329
        %v2331 = vsel %vm2300, %v2322, 0.0
        %2332 = vadd.xlane.f32.xlu0 %v2331
        %v2333 = vpop.xlane.xlu0 %2332
        %v2334 = vsel %vm2300, %v2324, 0.0
        %2335 = vadd.xlane.f32.xlu0 %v2334
        %v2336 = vpop.xlane.xlu0 %2335
        %v2337 = vrcp.pop %v2327
        %v2338 = vmul.f32 %v2318, %v2337
        %v2339 = vrcp.pop %v2330
        %v2340 = vmul.f32 %v2320, %v2339
        %v2341 = vrcp.pop %v2333
        %v2342 = vmul.f32 %v2322, %v2341
        %v2343 = vrcp.pop %v2336
        %v2344 = vmul.f32 %v2324, %v2343
        %v2346 = vsel %vm2300, %v2338, 0
        %v2349 = vsel %vm2300, %v2340, 0
        %v2352 = vsel %vm2300, %v2342, 0
        %v2355 = vsel %vm2300, %v2344, 0
        %2357 = vmatprep.subr.mxu0 0.0
        %v2358 = vand.u32 %v1080, 4294901760
        %2359 = vmatpush1.msra.mxu0 %v2358
        %2360 = vmatprep.subr.mxu0 0.0
        %v2361 = vand.u32 %v1086, 4294901760
        %2362 = vmatpush1.msra.mxu0 %v2361
        %2363 = vmatprep.subr.mxu0 0.0
        %v2364 = vand.u32 %v1092, 4294901760
        %2365 = vmatpush1.msra.mxu0 %v2364
        %2366 = vmatprep.subr.mxu0 0.0
        %v2367 = vand.u32 %v1098, 4294901760
        %2368 = vmatpush1.msra.mxu0 %v2367
        %2369 = vmatprep.subr.mxu0 0.0
        %v2370 = vand.u32 %v1104, 4294901760
        %2371 = vmatpush1.msra.mxu0 %v2370
        %2372 = vmatprep.subr.mxu0 0.0
        %v2373 = vand.u32 %v1110, 4294901760
        %2374 = vmatpush1.msra.mxu0 %v2373
        %2375 = vmatprep.subr.mxu0 0.0
        %v2376 = vand.u32 %v1116, 4294901760
        %2377 = vmatpush1.msra.mxu0 %v2376
        %2378 = vmatprep.subr.mxu0 0.0
        %v2379 = vand.u32 %v1122, 4294901760
        %2380 = vmatpush1.msra.mxu0 %v2379
        %2381 = vmatprep.subr.mxu0 0.0
        %2382 = vmatpush1.msra.mxu0 0.0
        %2383 = vmatprep.subr.mxu0 0.0
        %2384 = vmatpush1.msra.mxu0 0.0
        %2385 = vmatprep.subr.mxu0 0.0
        %2386 = vmatpush1.msra.mxu0 0.0
        %2387 = vmatprep.subr.mxu0 0.0
        %2388 = vmatpush1.msra.mxu0 0.0
        %2389 = vmatprep.subr.mxu0 0.0
        %2390 = vmatpush1.msra.mxu0 0.0
        %2391 = vmatprep.subr.mxu0 0.0
        %2392 = vmatpush1.msra.mxu0 0.0
        %2393 = vmatprep.subr.mxu0 0.0
        %2394 = vmatpush1.msra.mxu0 0.0
        %2395 = vmatprep.subr.mxu0 0.0
        %2396 = vmatpush1.msra.mxu0 0.0
        %2397 = vmatprep.subr.mxu0 0.0
        %2398 = vmatpush1.msra.mxu0 0.0
        %2399 = vmatprep.subr.mxu0 0.0
        %2400 = vmatpush1.msra.mxu0 0.0
        %2401 = vmatprep.subr.mxu0 0.0
        %2402 = vmatpush1.msra.mxu0 0.0
        %2403 = vmatprep.subr.mxu0 0.0
        %2404 = vmatpush1.msra.mxu0 0.0
        %2405 = vmatprep.subr.mxu0 0.0
        %2406 = vmatpush1.msra.mxu0 0.0
        %2407 = vmatprep.subr.mxu0 0.0
        %2408 = vmatpush1.msra.mxu0 0.0
        %2409 = vmatprep.subr.mxu0 0.0
        %2410 = vmatpush1.msra.mxu0 0.0
        %2411 = vmatprep.subr.mxu0 0.0
        %2412 = vmatpush1.msra.mxu0 0.0
        %2413 = vmatprep.subr.mxu0 0.0
        %2414 = vmatpush1.msra.mxu0 0.0
        %2415 = vmatprep.subr.mxu0 0.0
        %2416 = vmatpush1.msra.mxu0 0.0
        %2417 = vmatprep.subr.mxu0 0.0
        %2418 = vmatpush1.msra.mxu0 0.0
        %2419 = vmatprep.subr.mxu0 0.0
        %2420 = vmatpush1.msra.mxu0 0.0
        %2421 = vmatprep.subr.mxu0 0.0
        %2422 = vmatpush1.msra.mxu0 0.0
        %2423 = vmatprep.subr.mxu0 0.0
        %2424 = vmatpush1.msra.mxu0 0.0
        %2425 = vmatprep.subr.mxu0 0.0
        %2426 = vmatpush1.msra.mxu0 0.0
        %2427 = vmatprep.subr.mxu0 0.0
        %2428 = vmatpush1.msra.mxu0 0.0
        %2429 = vmatprep.mubr.f32.mxu0 0.0
        %v2430 = vand.u32 %v2346, 4294901760
        %v2431 = vsub.f32 %v2346, %v2430
        %v2432 = vand.u32 %v2431, 4294901760
        %v2433 = vsub.f32 %v2431, %v2432
        %v2434 = vand.u32 %v2433, 4294901760
        %2435 = vmatmul.mubr.f32.gmra.mrb[0].mxu0 %v2434
        %v2436 = vpop.f32.mrb[0].mxu0
        %v2437 = vadd.f32 0.0, %v2436
        %v2438 = vpop.f32.mrb[0].mxu0
        %2439 = vmatprep.mubr.f32.mxu0 0.0
        %v2440 = vand.u32 %v2349, 4294901760
        %v2441 = vsub.f32 %v2349, %v2440
        %v2442 = vand.u32 %v2441, 4294901760
        %v2443 = vsub.f32 %v2441, %v2442
        %v2444 = vand.u32 %v2443, 4294901760
        %2445 = vmatmul.mubr.f32.gmra.mrb[0].mxu0 %v2444
        %v2446 = vpop.f32.mrb[0].mxu0
        %v2447 = vadd.f32 0.0, %v2446
        %v2448 = vpop.f32.mrb[0].mxu0
        %2449 = vmatprep.mubr.f32.mxu0 0.0
        %v2450 = vand.u32 %v2352, 4294901760
        %v2451 = vsub.f32 %v2352, %v2450
        %v2452 = vand.u32 %v2451, 4294901760
        %v2453 = vsub.f32 %v2451, %v2452
        %v2454 = vand.u32 %v2453, 4294901760
        %2455 = vmatmul.mubr.f32.gmra.mrb[0].mxu0 %v2454
        %v2456 = vpop.f32.mrb[0].mxu0
        %v2457 = vadd.f32 0.0, %v2456
        %v2458 = vpop.f32.mrb[0].mxu0
        %2459 = vmatprep.mubr.f32.mxu0 0.0
        %v2460 = vand.u32 %v2355, 4294901760
        %v2461 = vsub.f32 %v2355, %v2460
        %v2462 = vand.u32 %v2461, 4294901760
        %v2463 = vsub.f32 %v2461, %v2462
        %v2464 = vand.u32 %v2463, 4294901760
        %2465 = vmatmul.mubr.f32.gmra.mrb[0].mxu0 %v2464
        %v2466 = vpop.f32.mrb[0].mxu0
        %v2467 = vadd.f32 0.0, %v2466
        %v2468 = vpop.f32.mrb[0].mxu0
        %2469 = vdwg.mxu0
        %2470 = vmatprep.subr.mxu0 0.0
        %v2471 = vand.u32 %v1080, 4294901760
        %v2472 = vsub.f32 %v1080, %v2471
        %v2473 = vand.u32 %v2472, 4294901760
        %v2474 = vsub.f32 %v2472, %v2473
        %v2475 = vand.u32 %v2474, 4294901760
        %2476 = vmatpush1.msra.mxu0 %v2475
        %2477 = vmatprep.subr.mxu0 0.0
        %v2478 = vand.u32 %v1086, 4294901760
        %v2479 = vsub.f32 %v1086, %v2478
        %v2480 = vand.u32 %v2479, 4294901760
        %v2481 = vsub.f32 %v2479, %v2480
        %v2482 = vand.u32 %v2481, 4294901760
        %2483 = vmatpush1.msra.mxu0 %v2482
        %2484 = vmatprep.subr.mxu0 0.0
        %v2485 = vand.u32 %v1092, 4294901760
        %v2486 = vsub.f32 %v1092, %v2485
        %v2487 = vand.u32 %v2486, 4294901760
        %v2488 = vsub.f32 %v2486, %v2487
        %v2489 = vand.u32 %v2488, 4294901760
        %2490 = vmatpush1.msra.mxu0 %v2489
        %2491 = vmatprep.subr.mxu0 0.0
        %v2492 = vand.u32 %v1098, 4294901760
        %v2493 = vsub.f32 %v1098, %v2492
        %v2494 = vand.u32 %v2493, 4294901760
        %v2495 = vsub.f32 %v2493, %v2494
        %v2496 = vand.u32 %v2495, 4294901760
        %2497 = vmatpush1.msra.mxu0 %v2496
        %2498 = vmatprep.subr.mxu0 0.0
        %v2499 = vand.u32 %v1104, 4294901760
        %v2500 = vsub.f32 %v1104, %v2499
        %v2501 = vand.u32 %v2500, 4294901760
        %v2502 = vsub.f32 %v2500, %v2501
        %v2503 = vand.u32 %v2502, 4294901760
        %2504 = vmatpush1.msra.mxu0 %v2503
        %2505 = vmatprep.subr.mxu0 0.0
        %v2506 = vand.u32 %v1110, 4294901760
        %v2507 = vsub.f32 %v1110, %v2506
        %v2508 = vand.u32 %v2507, 4294901760
        %v2509 = vsub.f32 %v2507, %v2508
        %v2510 = vand.u32 %v2509, 4294901760
        %2511 = vmatpush1.msra.mxu0 %v2510
        %2512 = vmatprep.subr.mxu0 0.0
        %v2513 = vand.u32 %v1116, 4294901760
        %v2514 = vsub.f32 %v1116, %v2513
        %v2515 = vand.u32 %v2514, 4294901760
        %v2516 = vsub.f32 %v2514, %v2515
        %v2517 = vand.u32 %v2516, 4294901760
        %2518 = vmatpush1.msra.mxu0 %v2517
        %2519 = vmatprep.subr.mxu0 0.0
        %v2520 = vand.u32 %v1122, 4294901760
        %v2521 = vsub.f32 %v1122, %v2520
        %v2522 = vand.u32 %v2521, 4294901760
        %v2523 = vsub.f32 %v2521, %v2522
        %v2524 = vand.u32 %v2523, 4294901760
        %2525 = vmatpush1.msra.mxu0 %v2524
        %2526 = vmatprep.subr.mxu0 0.0
        %2527 = vmatpush1.msra.mxu0 0.0
        %2528 = vmatprep.subr.mxu0 0.0
        %2529 = vmatpush1.msra.mxu0 0.0
        %2530 = vmatprep.subr.mxu0 0.0
        %2531 = vmatpush1.msra.mxu0 0.0
        %2532 = vmatprep.subr.mxu0 0.0
        %2533 = vmatpush1.msra.mxu0 0.0
        %2534 = vmatprep.subr.mxu0 0.0
        %2535 = vmatpush1.msra.mxu0 0.0
        %2536 = vmatprep.subr.mxu0 0.0
        %2537 = vmatpush1.msra.mxu0 0.0
        %2538 = vmatprep.subr.mxu0 0.0
        %2539 = vmatpush1.msra.mxu0 0.0
        %2540 = vmatprep.subr.mxu0 0.0
        %2541 = vmatpush1.msra.mxu0 0.0
        %2542 = vmatprep.subr.mxu0 0.0
        %2543 = vmatpush1.msra.mxu0 0.0
        %2544 = vmatprep.subr.mxu0 0.0
        %2545 = vmatpush1.msra.mxu0 0.0
        %2546 = vmatprep.subr.mxu0 0.0
        %2547 = vmatpush1.msra.mxu0 0.0
        %2548 = vmatprep.subr.mxu0 0.0
        %2549 = vmatpush1.msra.mxu0 0.0
        %2550 = vmatprep.subr.mxu0 0.0
        %2551 = vmatpush1.msra.mxu0 0.0
        %2552 = vmatprep.subr.mxu0 0.0
        %2553 = vmatpush1.msra.mxu0 0.0
        %2554 = vmatprep.subr.mxu0 0.0
        %2555 = vmatpush1.msra.mxu0 0.0
        %2556 = vmatprep.subr.mxu0 0.0
        %2557 = vmatpush1.msra.mxu0 0.0
        %2558 = vmatprep.subr.mxu0 0.0
        %2559 = vmatpush1.msra.mxu0 0.0
        %2560 = vmatprep.subr.mxu0 0.0
        %2561 = vmatpush1.msra.mxu0 0.0
        %2562 = vmatprep.subr.mxu0 0.0
        %2563 = vmatpush1.msra.mxu0 0.0
        %2564 = vmatprep.subr.mxu0 0.0
        %2565 = vmatpush1.msra.mxu0 0.0
        %2566 = vmatprep.subr.mxu0 0.0
        %2567 = vmatpush1.msra.mxu0 0.0
        %2568 = vmatprep.subr.mxu0 0.0
        %2569 = vmatpush1.msra.mxu0 0.0
        %2570 = vmatprep.subr.mxu0 0.0
        %2571 = vmatpush1.msra.mxu0 0.0
        %2572 = vmatprep.subr.mxu0 0.0
        %2573 = vmatpush1.msra.mxu0 0.0
        %2574 = vmatprep.mubr.f32.mxu0 0.0
        %v2575 = vand.u32 %v2346, 4294901760
        %2576 = vmatmul.mubr.f32.gmra.mrb[0].mxu0 %v2575
        %v2577 = vpop.f32.mrb[0].mxu0
        %v2578 = vadd.f32 %v2437, %v2577
        %v2579 = vpop.f32.mrb[0].mxu0
        %2580 = vmatprep.mubr.f32.mxu0 0.0
        %v2581 = vand.u32 %v2349, 4294901760
        %2582 = vmatmul.mubr.f32.gmra.mrb[0].mxu0 %v2581
        %v2583 = vpop.f32.mrb[0].mxu0
        %v2584 = vadd.f32 %v2447, %v2583
        %v2585 = vpop.f32.mrb[0].mxu0
        %2586 = vmatprep.mubr.f32.mxu0 0.0
        %v2587 = vand.u32 %v2352, 4294901760
        %2588 = vmatmul.mubr.f32.gmra.mrb[0].mxu0 %v2587
        %v2589 = vpop.f32.mrb[0].mxu0
        %v2590 = vadd.f32 %v2457, %v2589
        %v2591 = vpop.f32.mrb[0].mxu0
        %2592 = vmatprep.mubr.f32.mxu0 0.0
        %v2593 = vand.u32 %v2355, 4294901760
        %2594 = vmatmul.mubr.f32.gmra.mrb[0].mxu0 %v2593
        %v2595 = vpop.f32.mrb[0].mxu0
        %v2596 = vadd.f32 %v2467, %v2595
        %v2597 = vpop.f32.mrb[0].mxu0
        %2598 = vdwg.mxu0
        %2599 = vmatprep.subr.mxu0 0.0
        %v2600 = vand.u32 %v1080, 4294901760
        %v2601 = vsub.f32 %v1080, %v2600
        %2602 = vmatpush1.msra.mxu0 %v2601
        %2603 = vmatprep.subr.mxu0 0.0
        %v2604 = vand.u32 %v1086, 4294901760
        %v2605 = vsub.f32 %v1086, %v2604
        %2606 = vmatpush1.msra.mxu0 %v2605
        %2607 = vmatprep.subr.mxu0 0.0
        %v2608 = vand.u32 %v1092, 4294901760
        %v2609 = vsub.f32 %v1092, %v2608
        %2610 = vmatpush1.msra.mxu0 %v2609
        %2611 = vmatprep.subr.mxu0 0.0
        %v2612 = vand.u32 %v1098, 4294901760
        %v2613 = vsub.f32 %v1098, %v2612
        %2614 = vmatpush1.msra.mxu0 %v2613
        %2615 = vmatprep.subr.mxu0 0.0
        %v2616 = vand.u32 %v1104, 4294901760
        %v2617 = vsub.f32 %v1104, %v2616
        %2618 = vmatpush1.msra.mxu0 %v2617
        %2619 = vmatprep.subr.mxu0 0.0
        %v2620 = vand.u32 %v1110, 4294901760
        %v2621 = vsub.f32 %v1110, %v2620
        %2622 = vmatpush1.msra.mxu0 %v2621
        %2623 = vmatprep.subr.mxu0 0.0
        %v2624 = vand.u32 %v1116, 4294901760
        %v2625 = vsub.f32 %v1116, %v2624
        %2626 = vmatpush1.msra.mxu0 %v2625
        %2627 = vmatprep.subr.mxu0 0.0
        %v2628 = vand.u32 %v1122, 4294901760
        %v2629 = vsub.f32 %v1122, %v2628
        %2630 = vmatpush1.msra.mxu0 %v2629
        %2631 = vmatprep.subr.mxu0 0.0
        %2632 = vmatpush1.msra.mxu0 0.0
        %2633 = vmatprep.subr.mxu0 0.0
        %2634 = vmatpush1.msra.mxu0 0.0
        %2635 = vmatprep.subr.mxu0 0.0
        %2636 = vmatpush1.msra.mxu0 0.0
        %2637 = vmatprep.subr.mxu0 0.0
        %2638 = vmatpush1.msra.mxu0 0.0
        %2639 = vmatprep.subr.mxu0 0.0
        %2640 = vmatpush1.msra.mxu0 0.0
        %2641 = vmatprep.subr.mxu0 0.0
        %2642 = vmatpush1.msra.mxu0 0.0
        %2643 = vmatprep.subr.mxu0 0.0
        %2644 = vmatpush1.msra.mxu0 0.0
        %2645 = vmatprep.subr.mxu0 0.0
        %2646 = vmatpush1.msra.mxu0 0.0
        %2647 = vmatprep.subr.mxu0 0.0
        %2648 = vmatpush1.msra.mxu0 0.0
        %2649 = vmatprep.subr.mxu0 0.0
        %2650 = vmatpush1.msra.mxu0 0.0
        %2651 = vmatprep.subr.mxu0 0.0
        %2652 = vmatpush1.msra.mxu0 0.0
        %2653 = vmatprep.subr.mxu0 0.0
        %2654 = vmatpush1.msra.mxu0 0.0
        %2655 = vmatprep.subr.mxu0 0.0
        %2656 = vmatpush1.msra.mxu0 0.0
        %2657 = vmatprep.subr.mxu0 0.0
        %2658 = vmatpush1.msra.mxu0 0.0
        %2659 = vmatprep.subr.mxu0 0.0
        %2660 = vmatpush1.msra.mxu0 0.0
        %2661 = vmatprep.subr.mxu0 0.0
        %2662 = vmatpush1.msra.mxu0 0.0
        %2663 = vmatprep.subr.mxu0 0.0
        %2664 = vmatpush1.msra.mxu0 0.0
        %2665 = vmatprep.subr.mxu0 0.0
        %2666 = vmatpush1.msra.mxu0 0.0
        %2667 = vmatprep.subr.mxu0 0.0
        %2668 = vmatpush1.msra.mxu0 0.0
        %2669 = vmatprep.subr.mxu0 0.0
        %2670 = vmatpush1.msra.mxu0 0.0
        %2671 = vmatprep.subr.mxu0 0.0
        %2672 = vmatpush1.msra.mxu0 0.0
        %2673 = vmatprep.subr.mxu0 0.0
        %2674 = vmatpush1.msra.mxu0 0.0
        %2675 = vmatprep.subr.mxu0 0.0
        %2676 = vmatpush1.msra.mxu0 0.0
        %2677 = vmatprep.subr.mxu0 0.0
        %2678 = vmatpush1.msra.mxu0 0.0
        %2679 = vmatprep.mubr.f32.mxu0 0.0
        %v2680 = vand.u32 %v2346, 4294901760
        %v2681 = vsub.f32 %v2346, %v2680
        %2682 = vmatmul.mubr.f32.gmra.mrb[0].mxu0 %v2681
        %v2683 = vpop.f32.mrb[0].mxu0
        %v2684 = vadd.f32 %v2578, %v2683
        %v2685 = vpop.f32.mrb[0].mxu0
        %2686 = vmatprep.mubr.f32.mxu0 0.0
        %v2687 = vand.u32 %v2349, 4294901760
        %v2688 = vsub.f32 %v2349, %v2687
        %2689 = vmatmul.mubr.f32.gmra.mrb[0].mxu0 %v2688
        %v2690 = vpop.f32.mrb[0].mxu0
        %v2691 = vadd.f32 %v2584, %v2690
        %v2692 = vpop.f32.mrb[0].mxu0
        %2693 = vmatprep.mubr.f32.mxu0 0.0
        %v2694 = vand.u32 %v2352, 4294901760
        %v2695 = vsub.f32 %v2352, %v2694
        %2696 = vmatmul.mubr.f32.gmra.mrb[0].mxu0 %v2695
        %v2697 = vpop.f32.mrb[0].mxu0
        %v2698 = vadd.f32 %v2590, %v2697
        %v2699 = vpop.f32.mrb[0].mxu0
        %2700 = vmatprep.mubr.f32.mxu0 0.0
        %v2701 = vand.u32 %v2355, 4294901760
        %v2702 = vsub.f32 %v2355, %v2701
        %2703 = vmatmul.mubr.f32.gmra.mrb[0].mxu0 %v2702
        %v2704 = vpop.f32.mrb[0].mxu0
        %v2705 = vadd.f32 %v2596, %v2704
        %v2706 = vpop.f32.mrb[0].mxu0
        %2707 = vdwg.mxu0
        %2708 = vmatprep.subr.mxu0 0.0
        %v2709 = vand.u32 %v1080, 4294901760
        %2710 = vmatpush1.msra.mxu0 %v2709
        %2711 = vmatprep.subr.mxu0 0.0
        %v2712 = vand.u32 %v1086, 4294901760
        %2713 = vmatpush1.msra.mxu0 %v2712
        %2714 = vmatprep.subr.mxu0 0.0
        %v2715 = vand.u32 %v1092, 4294901760
        %2716 = vmatpush1.msra.mxu0 %v2715
        %2717 = vmatprep.subr.mxu0 0.0
        %v2718 = vand.u32 %v1098, 4294901760
        %2719 = vmatpush1.msra.mxu0 %v2718
        %2720 = vmatprep.subr.mxu0 0.0
        %v2721 = vand.u32 %v1104, 4294901760
        %2722 = vmatpush1.msra.mxu0 %v2721
        %2723 = vmatprep.subr.mxu0 0.0
        %v2724 = vand.u32 %v1110, 4294901760
        %2725 = vmatpush1.msra.mxu0 %v2724
        %2726 = vmatprep.subr.mxu0 0.0
        %v2727 = vand.u32 %v1116, 4294901760
        %2728 = vmatpush1.msra.mxu0 %v2727
        %2729 = vmatprep.subr.mxu0 0.0
        %v2730 = vand.u32 %v1122, 4294901760
        %2731 = vmatpush1.msra.mxu0 %v2730
        %2732 = vmatprep.subr.mxu0 0.0
        %2733 = vmatpush1.msra.mxu0 0.0
        %2734 = vmatprep.subr.mxu0 0.0
        %2735 = vmatpush1.msra.mxu0 0.0
        %2736 = vmatprep.subr.mxu0 0.0
        %2737 = vmatpush1.msra.mxu0 0.0
        %2738 = vmatprep.subr.mxu0 0.0
        %2739 = vmatpush1.msra.mxu0 0.0
        %2740 = vmatprep.subr.mxu0 0.0
        %2741 = vmatpush1.msra.mxu0 0.0
        %2742 = vmatprep.subr.mxu0 0.0
        %2743 = vmatpush1.msra.mxu0 0.0
        %2744 = vmatprep.subr.mxu0 0.0
        %2745 = vmatpush1.msra.mxu0 0.0
        %2746 = vmatprep.subr.mxu0 0.0
        %2747 = vmatpush1.msra.mxu0 0.0
        %2748 = vmatprep.subr.mxu0 0.0
        %2749 = vmatpush1.msra.mxu0 0.0
        %2750 = vmatprep.subr.mxu0 0.0
        %2751 = vmatpush1.msra.mxu0 0.0
        %2752 = vmatprep.subr.mxu0 0.0
        %2753 = vmatpush1.msra.mxu0 0.0
        %2754 = vmatprep.subr.mxu0 0.0
        %2755 = vmatpush1.msra.mxu0 0.0
        %2756 = vmatprep.subr.mxu0 0.0
        %2757 = vmatpush1.msra.mxu0 0.0
        %2758 = vmatprep.subr.mxu0 0.0
        %2759 = vmatpush1.msra.mxu0 0.0
        %2760 = vmatprep.subr.mxu0 0.0
        %2761 = vmatpush1.msra.mxu0 0.0
        %2762 = vmatprep.subr.mxu0 0.0
        %2763 = vmatpush1.msra.mxu0 0.0
        %2764 = vmatprep.subr.mxu0 0.0
        %2765 = vmatpush1.msra.mxu0 0.0
        %2766 = vmatprep.subr.mxu0 0.0
        %2767 = vmatpush1.msra.mxu0 0.0
        %2768 = vmatprep.subr.mxu0 0.0
        %2769 = vmatpush1.msra.mxu0 0.0
        %2770 = vmatprep.subr.mxu0 0.0
        %2771 = vmatpush1.msra.mxu0 0.0
        %2772 = vmatprep.subr.mxu0 0.0
        %2773 = vmatpush1.msra.mxu0 0.0
        %2774 = vmatprep.subr.mxu0 0.0
        %2775 = vmatpush1.msra.mxu0 0.0
        %2776 = vmatprep.subr.mxu0 0.0
        %2777 = vmatpush1.msra.mxu0 0.0
        %2778 = vmatprep.subr.mxu0 0.0
        %2779 = vmatpush1.msra.mxu0 0.0
        %2780 = vmatprep.mubr.f32.mxu0 0.0
        %v2781 = vand.u32 %v2346, 4294901760
        %v2782 = vsub.f32 %v2346, %v2781
        %v2783 = vand.u32 %v2782, 4294901760
        %2784 = vmatmul.mubr.f32.gmra.mrb[0].mxu0 %v2783
        %v2785 = vpop.f32.mrb[0].mxu0
        %v2786 = vadd.f32 %v2684, %v2785
        %v2787 = vpop.f32.mrb[0].mxu0
        %2788 = vmatprep.mubr.f32.mxu0 0.0
        %v2789 = vand.u32 %v2349, 4294901760
        %v2790 = vsub.f32 %v2349, %v2789
        %v2791 = vand.u32 %v2790, 4294901760
        %2792 = vmatmul.mubr.f32.gmra.mrb[0].mxu0 %v2791
        %v2793 = vpop.f32.mrb[0].mxu0
        %v2794 = vadd.f32 %v2691, %v2793
        %v2795 = vpop.f32.mrb[0].mxu0
        %2796 = vmatprep.mubr.f32.mxu0 0.0
        %v2797 = vand.u32 %v2352, 4294901760
        %v2798 = vsub.f32 %v2352, %v2797
        %v2799 = vand.u32 %v2798, 4294901760
        %2800 = vmatmul.mubr.f32.gmra.mrb[0].mxu0 %v2799
        %v2801 = vpop.f32.mrb[0].mxu0
        %v2802 = vadd.f32 %v2698, %v2801
        %v2803 = vpop.f32.mrb[0].mxu0
        %2804 = vmatprep.mubr.f32.mxu0 0.0
        %v2805 = vand.u32 %v2355, 4294901760
        %v2806 = vsub.f32 %v2355, %v2805
        %v2807 = vand.u32 %v2806, 4294901760
        %2808 = vmatmul.mubr.f32.gmra.mrb[0].mxu0 %v2807
        %v2809 = vpop.f32.mrb[0].mxu0
        %v2810 = vadd.f32 %v2705, %v2809
        %v2811 = vpop.f32.mrb[0].mxu0
        %2812 = vdwg.mxu0
        %2813 = vmatprep.subr.mxu0 0.0
        %v2814 = vand.u32 %v1080, 4294901760
        %v2815 = vsub.f32 %v1080, %v2814
        %v2816 = vand.u32 %v2815, 4294901760
        %2817 = vmatpush1.msra.mxu0 %v2816
        %2818 = vmatprep.subr.mxu0 0.0
        %v2819 = vand.u32 %v1086, 4294901760
        %v2820 = vsub.f32 %v1086, %v2819
        %v2821 = vand.u32 %v2820, 4294901760
        %2822 = vmatpush1.msra.mxu0 %v2821
        %2823 = vmatprep.subr.mxu0 0.0
        %v2824 = vand.u32 %v1092, 4294901760
        %v2825 = vsub.f32 %v1092, %v2824
        %v2826 = vand.u32 %v2825, 4294901760
        %2827 = vmatpush1.msra.mxu0 %v2826
        %2828 = vmatprep.subr.mxu0 0.0
        %v2829 = vand.u32 %v1098, 4294901760
        %v2830 = vsub.f32 %v1098, %v2829
        %v2831 = vand.u32 %v2830, 4294901760
        %2832 = vmatpush1.msra.mxu0 %v2831
        %2833 = vmatprep.subr.mxu0 0.0
        %v2834 = vand.u32 %v1104, 4294901760
        %v2835 = vsub.f32 %v1104, %v2834
        %v2836 = vand.u32 %v2835, 4294901760
        %2837 = vmatpush1.msra.mxu0 %v2836
        %2838 = vmatprep.subr.mxu0 0.0
        %v2839 = vand.u32 %v1110, 4294901760
        %v2840 = vsub.f32 %v1110, %v2839
        %v2841 = vand.u32 %v2840, 4294901760
        %2842 = vmatpush1.msra.mxu0 %v2841
        %2843 = vmatprep.subr.mxu0 0.0
        %v2844 = vand.u32 %v1116, 4294901760
        %v2845 = vsub.f32 %v1116, %v2844
        %v2846 = vand.u32 %v2845, 4294901760
        %2847 = vmatpush1.msra.mxu0 %v2846
        %2848 = vmatprep.subr.mxu0 0.0
        %v2849 = vand.u32 %v1122, 4294901760
        %v2850 = vsub.f32 %v1122, %v2849
        %v2851 = vand.u32 %v2850, 4294901760
        %2852 = vmatpush1.msra.mxu0 %v2851
        %2853 = vmatprep.subr.mxu0 0.0
        %2854 = vmatpush1.msra.mxu0 0.0
        %2855 = vmatprep.subr.mxu0 0.0
        %2856 = vmatpush1.msra.mxu0 0.0
        %2857 = vmatprep.subr.mxu0 0.0
        %2858 = vmatpush1.msra.mxu0 0.0
        %2859 = vmatprep.subr.mxu0 0.0
        %2860 = vmatpush1.msra.mxu0 0.0
        %2861 = vmatprep.subr.mxu0 0.0
        %2862 = vmatpush1.msra.mxu0 0.0
        %2863 = vmatprep.subr.mxu0 0.0
        %2864 = vmatpush1.msra.mxu0 0.0
        %2865 = vmatprep.subr.mxu0 0.0
        %2866 = vmatpush1.msra.mxu0 0.0
        %2867 = vmatprep.subr.mxu0 0.0
        %2868 = vmatpush1.msra.mxu0 0.0
        %2869 = vmatprep.subr.mxu0 0.0
        %2870 = vmatpush1.msra.mxu0 0.0
        %2871 = vmatprep.subr.mxu0 0.0
        %2872 = vmatpush1.msra.mxu0 0.0
        %2873 = vmatprep.subr.mxu0 0.0
        %2874 = vmatpush1.msra.mxu0 0.0
        %2875 = vmatprep.subr.mxu0 0.0
        %2876 = vmatpush1.msra.mxu0 0.0
        %2877 = vmatprep.subr.mxu0 0.0
        %2878 = vmatpush1.msra.mxu0 0.0
        %2879 = vmatprep.subr.mxu0 0.0
        %2880 = vmatpush1.msra.mxu0 0.0
        %2881 = vmatprep.subr.mxu0 0.0
        %2882 = vmatpush1.msra.mxu0 0.0
        %2883 = vmatprep.subr.mxu0 0.0
        %2884 = vmatpush1.msra.mxu0 0.0
        %2885 = vmatprep.subr.mxu0 0.0
        %2886 = vmatpush1.msra.mxu0 0.0
        %2887 = vmatprep.subr.mxu0 0.0
        %2888 = vmatpush1.msra.mxu0 0.0
        %2889 = vmatprep.subr.mxu0 0.0
        %2890 = vmatpush1.msra.mxu0 0.0
        %2891 = vmatprep.subr.mxu0 0.0
        %2892 = vmatpush1.msra.mxu0 0.0
        %2893 = vmatprep.subr.mxu0 0.0
        %2894 = vmatpush1.msra.mxu0 0.0
        %2895 = vmatprep.subr.mxu0 0.0
        %2896 = vmatpush1.msra.mxu0 0.0
        %2897 = vmatprep.subr.mxu0 0.0
        %2898 = vmatpush1.msra.mxu0 0.0
        %2899 = vmatprep.subr.mxu0 0.0
        %2900 = vmatpush1.msra.mxu0 0.0
        %2901 = vmatprep.mubr.f32.mxu0 0.0
        %v2902 = vand.u32 %v2346, 4294901760
        %2903 = vmatmul.mubr.f32.gmra.mrb[0].mxu0 %v2902
        %v2904 = vpop.f32.mrb[0].mxu0
        %v2905 = vadd.f32 %v2786, %v2904
        %v2906 = vpop.f32.mrb[0].mxu0
        %2907 = vmatprep.mubr.f32.mxu0 0.0
        %v2908 = vand.u32 %v2349, 4294901760
        %2909 = vmatmul.mubr.f32.gmra.mrb[0].mxu0 %v2908
        %v2910 = vpop.f32.mrb[0].mxu0
        %v2911 = vadd.f32 %v2794, %v2910
        %v2912 = vpop.f32.mrb[0].mxu0
        %2913 = vmatprep.mubr.f32.mxu0 0.0
        %v2914 = vand.u32 %v2352, 4294901760
        %2915 = vmatmul.mubr.f32.gmra.mrb[0].mxu0 %v2914
        %v2916 = vpop.f32.mrb[0].mxu0
        %v2917 = vadd.f32 %v2802, %v2916
        %v2918 = vpop.f32.mrb[0].mxu0
        %2919 = vmatprep.mubr.f32.mxu0 0.0
        %v2920 = vand.u32 %v2355, 4294901760
        %2921 = vmatmul.mubr.f32.gmra.mrb[0].mxu0 %v2920
        %v2922 = vpop.f32.mrb[0].mxu0
        %v2923 = vadd.f32 %v2810, %v2922
        %v2924 = vpop.f32.mrb[0].mxu0
        %2925 = vdwg.mxu0
        %2926 = vmatprep.subr.mxu0 0.0
        %v2927 = vand.u32 %v1080, 4294901760
        %2928 = vmatpush1.msra.mxu0 %v2927
        %2929 = vmatprep.subr.mxu0 0.0
        %v2930 = vand.u32 %v1086, 4294901760
        %2931 = vmatpush1.msra.mxu0 %v2930
        %2932 = vmatprep.subr.mxu0 0.0
        %v2933 = vand.u32 %v1092, 4294901760
        %2934 = vmatpush1.msra.mxu0 %v2933
        %2935 = vmatprep.subr.mxu0 0.0
        %v2936 = vand.u32 %v1098, 4294901760
        %2937 = vmatpush1.msra.mxu0 %v2936
        %2938 = vmatprep.subr.mxu0 0.0
        %v2939 = vand.u32 %v1104, 4294901760
        %2940 = vmatpush1.msra.mxu0 %v2939
        %2941 = vmatprep.subr.mxu0 0.0
        %v2942 = vand.u32 %v1110, 4294901760
        %2943 = vmatpush1.msra.mxu0 %v2942
        %2944 = vmatprep.subr.mxu0 0.0
        %v2945 = vand.u32 %v1116, 4294901760
        %2946 = vmatpush1.msra.mxu0 %v2945
        %2947 = vmatprep.subr.mxu0 0.0
        %v2948 = vand.u32 %v1122, 4294901760
        %2949 = vmatpush1.msra.mxu0 %v2948
        %2950 = vmatprep.subr.mxu0 0.0
        %2951 = vmatpush1.msra.mxu0 0.0
        %2952 = vmatprep.subr.mxu0 0.0
        %2953 = vmatpush1.msra.mxu0 0.0
        %2954 = vmatprep.subr.mxu0 0.0
        %2955 = vmatpush1.msra.mxu0 0.0
        %2956 = vmatprep.subr.mxu0 0.0
        %2957 = vmatpush1.msra.mxu0 0.0
        %2958 = vmatprep.subr.mxu0 0.0
        %2959 = vmatpush1.msra.mxu0 0.0
        %2960 = vmatprep.subr.mxu0 0.0
        %2961 = vmatpush1.msra.mxu0 0.0
        %2962 = vmatprep.subr.mxu0 0.0
        %2963 = vmatpush1.msra.mxu0 0.0
        %2964 = vmatprep.subr.mxu0 0.0
        %2965 = vmatpush1.msra.mxu0 0.0
        %2966 = vmatprep.subr.mxu0 0.0
        %2967 = vmatpush1.msra.mxu0 0.0
        %2968 = vmatprep.subr.mxu0 0.0
        %2969 = vmatpush1.msra.mxu0 0.0
        %2970 = vmatprep.subr.mxu0 0.0
        %2971 = vmatpush1.msra.mxu0 0.0
        %2972 = vmatprep.subr.mxu0 0.0
        %2973 = vmatpush1.msra.mxu0 0.0
        %2974 = vmatprep.subr.mxu0 0.0
        %2975 = vmatpush1.msra.mxu0 0.0
        %2976 = vmatprep.subr.mxu0 0.0
        %2977 = vmatpush1.msra.mxu0 0.0
        %2978 = vmatprep.subr.mxu0 0.0
        %2979 = vmatpush1.msra.mxu0 0.0
        %2980 = vmatprep.subr.mxu0 0.0
        %2981 = vmatpush1.msra.mxu0 0.0
        %2982 = vmatprep.subr.mxu0 0.0
        %2983 = vmatpush1.msra.mxu0 0.0
        %2984 = vmatprep.subr.mxu0 0.0
        %2985 = vmatpush1.msra.mxu0 0.0
        %2986 = vmatprep.subr.mxu0 0.0
        %2987 = vmatpush1.msra.mxu0 0.0
        %2988 = vmatprep.subr.mxu0 0.0
        %2989 = vmatpush1.msra.mxu0 0.0
        %2990 = vmatprep.subr.mxu0 0.0
        %2991 = vmatpush1.msra.mxu0 0.0
        %2992 = vmatprep.subr.mxu0 0.0
        %2993 = vmatpush1.msra.mxu0 0.0
        %2994 = vmatprep.subr.mxu0 0.0
        %2995 = vmatpush1.msra.mxu0 0.0
        %2996 = vmatprep.subr.mxu0 0.0
        %2997 = vmatpush1.msra.mxu0 0.0
        %2998 = vmatprep.mubr.f32.mxu0 0.0
        %v2999 = vand.u32 %v2346, 4294901760
        %3000 = vmatmul.mubr.f32.gmra.mrb[0].mxu0 %v2999
        %v3001 = vpop.f32.mrb[0].mxu0
        %v3002 = vadd.f32 %v2905, %v3001
        %v3003 = vpop.f32.mrb[0].mxu0
        %3004 = vmatprep.mubr.f32.mxu0 0.0
        %v3005 = vand.u32 %v2349, 4294901760
        %3006 = vmatmul.mubr.f32.gmra.mrb[0].mxu0 %v3005
        %v3007 = vpop.f32.mrb[0].mxu0
        %v3008 = vadd.f32 %v2911, %v3007
        %v3009 = vpop.f32.mrb[0].mxu0
        %3010 = vmatprep.mubr.f32.mxu0 0.0
        %v3011 = vand.u32 %v2352, 4294901760
        %3012 = vmatmul.mubr.f32.gmra.mrb[0].mxu0 %v3011
        %v3013 = vpop.f32.mrb[0].mxu0
        %v3014 = vadd.f32 %v2917, %v3013
        %v3015 = vpop.f32.mrb[0].mxu0
        %3016 = vmatprep.mubr.f32.mxu0 0.0
        %v3017 = vand.u32 %v2355, 4294901760
        %3018 = vmatmul.mubr.f32.gmra.mrb[0].mxu0 %v3017
        %v3019 = vpop.f32.mrb[0].mxu0
        %v3020 = vadd.f32 %v2923, %v3019
        %v3021 = vpop.f32.mrb[0].mxu0
        %3022 = vdwg.mxu0
        %3023 = vset.pattern.permute.xlu0 1
        %3024 = vperm.xlu0 %3023, %v2231
        %v3025 = vpop.permute.xlu0 %3024
        %3027 = vset.pattern.permute.xlu0 1
        %3028 = vperm.xlu0 %3027, %v2237
        %v3029 = vpop.permute.xlu0 %3028
        %3031 = vset.pattern.permute.xlu0 1
        %3032 = vperm.xlu0 %3031, %v2243
        %v3033 = vpop.permute.xlu0 %3032
        %3035 = vset.pattern.permute.xlu0 1
        %3036 = vperm.xlu0 %3035, %v2249
        %v3037 = vpop.permute.xlu0 %3036
        %v3039 = vlaneseq
        %v3040 = vshrl.u32 %v3039, 7
        %v3041 = vsub.s32 1, %v3040
        %v3042 = vrot.slane %v1615, %v3041
        %v3043 = vadd.f32 %v3025, %v3042
        %v3044 = vadd.f32 %v3029, %v3042
        %v3045 = vadd.f32 %v3033, %v3042
        %v3046 = vadd.f32 %v3037, %v3042
        %v3047 = vmul.f32 %v3043, 0.2
        %v3048 = vmul.f32 %v3044, 0.2
        %v3049 = vmul.f32 %v3045, 0.2
        %v3050 = vmul.f32 %v3046, 0.2
        %v3051 = vmax.f32 %v3043, %v3047
        %v3052 = vmax.f32 %v3044, %v3048
        %v3053 = vmax.f32 %v3045, %v3049
        %v3054 = vmax.f32 %v3046, %v3050
        %v3055 = vadd.f32 %v3051, %v2256
        %v3056 = vadd.f32 %v3052, %v2257
        %v3057 = vadd.f32 %v3053, %v2258
        %v3058 = vadd.f32 %v3054, %v2259
        %v3059 = vsel %vm2300, %v3055, -inf
        %3060 = vmax.xlane.f32.xlu0 %v3059
        %v3061 = vpop.xlane.xlu0 %3060
        %v3062 = vsel %vm2300, %v3056, -inf
        %3063 = vmax.xlane.f32.xlu0 %v3062
        %v3064 = vpop.xlane.xlu0 %3063
        %v3065 = vsel %vm2300, %v3057, -inf
        %3066 = vmax.xlane.f32.xlu0 %v3065
        %v3067 = vpop.xlane.xlu0 %3066
        %v3068 = vsel %vm2300, %v3058, -inf
        %3069 = vmax.xlane.f32.xlu0 %v3068
        %v3070 = vpop.xlane.xlu0 %3069
        %v3071 = vsub.f32 %v3055, %v3061
        %v3072 = vsub.f32 %v3056, %v3064
        %v3073 = vsub.f32 %v3057, %v3067
        %v3074 = vsub.f32 %v3058, %v3070
        %v3075 = vmul.f32 %v3071, 1.442695
        %v3076 = vpow.pop %v3075
        %v3077 = vmul.f32 %v3072, 1.442695
        %v3078 = vpow.pop %v3077
        %v3079 = vmul.f32 %v3073, 1.442695
        %v3080 = vpow.pop %v3079
        %v3081 = vmul.f32 %v3074, 1.442695
        %v3082 = vpow.pop %v3081
        %v3083 = vsel %vm2300, %v3076, 0.0
        %3084 = vadd.xlane.f32.xlu0 %v3083
        %v3085 = vpop.xlane.xlu0 %3084
        %v3086 = vsel %vm2300, %v3078, 0.0
        %3087 = vadd.xlane.f32.xlu0 %v3086
        %v3088 = vpop.xlane.xlu0 %3087
        %v3089 = vsel %vm2300, %v3080, 0.0
        %3090 = vadd.xlane.f32.xlu0 %v3089
        %v3091 = vpop.xlane.xlu0 %3090
        %v3092 = vsel %vm2300, %v3082, 0.0
        %3093 = vadd.xlane.f32.xlu0 %v3092
        %v3094 = vpop.xlane.xlu0 %3093
        %v3095 = vrcp.pop %v3085
        %v3096 = vmul.f32 %v3076, %v3095
        %v3097 = vrcp.pop %v3088
        %v3098 = vmul.f32 %v3078, %v3097
        %v3099 = vrcp.pop %v3091
        %v3100 = vmul.f32 %v3080, %v3099
        %v3101 = vrcp.pop %v3094
        %v3102 = vmul.f32 %v3082, %v3101
        %3111 = vrot.lane.b32.xlu0 %v1080, 112
        %v3112 = vpop.permute.xlu0 %3111
        %3113 = vrot.lane.b32.xlu0 %v1086, 112
        %v3114 = vpop.permute.xlu0 %3113
        %3115 = vrot.lane.b32.xlu0 %v1092, 112
        %v3116 = vpop.permute.xlu0 %3115
        %3117 = vrot.lane.b32.xlu0 %v1098, 112
        %v3118 = vpop.permute.xlu0 %3117
        %3119 = vrot.lane.b32.xlu0 %v1104, 112
        %v3120 = vpop.permute.xlu0 %3119
        %3121 = vrot.lane.b32.xlu0 %v1110, 112
        %v3122 = vpop.permute.xlu0 %3121
        %3123 = vrot.lane.b32.xlu0 %v1116, 112
        %v3124 = vpop.permute.xlu0 %3123
        %3125 = vrot.lane.b32.xlu0 %v1122, 112
        %v3126 = vpop.permute.xlu0 %3125
        %v3136 = vsel %vm2300, %v3096, 0
        %v3139 = vsel %vm2300, %v3098, 0
        %v3142 = vsel %vm2300, %v3100, 0
        %v3145 = vsel %vm2300, %v3102, 0
        %3147 = vmatprep.subr.mxu0 0.0
        %v3148 = vand.u32 %v3112, 4294901760
        %3149 = vmatpush1.msra.mxu0 %v3148
        %3150 = vmatprep.subr.mxu0 0.0
        %v3151 = vand.u32 %v3114, 4294901760
        %3152 = vmatpush1.msra.mxu0 %v3151
        %3153 = vmatprep.subr.mxu0 0.0
        %v3154 = vand.u32 %v3116, 4294901760
        %3155 = vmatpush1.msra.mxu0 %v3154
        %3156 = vmatprep.subr.mxu0 0.0
        %v3157 = vand.u32 %v3118, 4294901760
        %3158 = vmatpush1.msra.mxu0 %v3157
        %3159 = vmatprep.subr.mxu0 0.0
        %v3160 = vand.u32 %v3120, 4294901760
        %3161 = vmatpush1.msra.mxu0 %v3160
        %3162 = vmatprep.subr.mxu0 0.0
        %v3163 = vand.u32 %v3122, 4294901760
        %3164 = vmatpush1.msra.mxu0 %v3163
        %3165 = vmatprep.subr.mxu0 0.0
        %v3166 = vand.u32 %v3124, 4294901760
        %3167 = vmatpush1.msra.mxu0 %v3166
        %3168 = vmatprep.subr.mxu0 0.0
        %v3169 = vand.u32 %v3126, 4294901760
        %3170 = vmatpush1.msra.mxu0 %v3169
        %3171 = vmatprep.subr.mxu0 0.0
        %3172 = vmatpush1.msra.mxu0 0.0
        %3173 = vmatprep.subr.mxu0 0.0
        %3174 = vmatpush1.msra.mxu0 0.0
        %3175 = vmatprep.subr.mxu0 0.0
        %3176 = vmatpush1.msra.mxu0 0.0
        %3177 = vmatprep.subr.mxu0 0.0
        %3178 = vmatpush1.msra.mxu0 0.0
        %3179 = vmatprep.subr.mxu0 0.0
        %3180 = vmatpush1.msra.mxu0 0.0
        %3181 = vmatprep.subr.mxu0 0.0
        %3182 = vmatpush1.msra.mxu0 0.0
        %3183 = vmatprep.subr.mxu0 0.0
        %3184 = vmatpush1.msra.mxu0 0.0
        %3185 = vmatprep.subr.mxu0 0.0
        %3186 = vmatpush1.msra.mxu0 0.0
        %3187 = vmatprep.subr.mxu0 0.0
        %3188 = vmatpush1.msra.mxu0 0.0
        %3189 = vmatprep.subr.mxu0 0.0
        %3190 = vmatpush1.msra.mxu0 0.0
        %3191 = vmatprep.subr.mxu0 0.0
        %3192 = vmatpush1.msra.mxu0 0.0
        %3193 = vmatprep.subr.mxu0 0.0
        %3194 = vmatpush1.msra.mxu0 0.0
        %3195 = vmatprep.subr.mxu0 0.0
        %3196 = vmatpush1.msra.mxu0 0.0
        %3197 = vmatprep.subr.mxu0 0.0
        %3198 = vmatpush1.msra.mxu0 0.0
        %3199 = vmatprep.subr.mxu0 0.0
        %3200 = vmatpush1.msra.mxu0 0.0
        %3201 = vmatprep.subr.mxu0 0.0
        %3202 = vmatpush1.msra.mxu0 0.0
        %3203 = vmatprep.subr.mxu0 0.0
        %3204 = vmatpush1.msra.mxu0 0.0
        %3205 = vmatprep.subr.mxu0 0.0
        %3206 = vmatpush1.msra.mxu0 0.0
        %3207 = vmatprep.subr.mxu0 0.0
        %3208 = vmatpush1.msra.mxu0 0.0
        %3209 = vmatprep.subr.mxu0 0.0
        %3210 = vmatpush1.msra.mxu0 0.0
        %3211 = vmatprep.subr.mxu0 0.0
        %3212 = vmatpush1.msra.mxu0 0.0
        %3213 = vmatprep.subr.mxu0 0.0
        %3214 = vmatpush1.msra.mxu0 0.0
        %3215 = vmatprep.subr.mxu0 0.0
        %3216 = vmatpush1.msra.mxu0 0.0
        %3217 = vmatprep.subr.mxu0 0.0
        %3218 = vmatpush1.msra.mxu0 0.0
        %3219 = vmatprep.mubr.f32.mxu0 0.0
        %v3220 = vand.u32 %v3136, 4294901760
        %v3221 = vsub.f32 %v3136, %v3220
        %v3222 = vand.u32 %v3221, 4294901760
        %v3223 = vsub.f32 %v3221, %v3222
        %v3224 = vand.u32 %v3223, 4294901760
        %3225 = vmatmul.mubr.f32.gmra.mrb[0].mxu0 %v3224
        %v3226 = vpop.f32.mrb[0].mxu0
        %v3227 = vadd.f32 0.0, %v3226
        %v3228 = vpop.f32.mrb[0].mxu0
        %3229 = vmatprep.mubr.f32.mxu0 0.0
        %v3230 = vand.u32 %v3139, 4294901760
        %v3231 = vsub.f32 %v3139, %v3230
        %v3232 = vand.u32 %v3231, 4294901760
        %v3233 = vsub.f32 %v3231, %v3232
        %v3234 = vand.u32 %v3233, 4294901760
        %3235 = vmatmul.mubr.f32.gmra.mrb[0].mxu0 %v3234
        %v3236 = vpop.f32.mrb[0].mxu0
        %v3237 = vadd.f32 0.0, %v3236
        %v3238 = vpop.f32.mrb[0].mxu0
        %3239 = vmatprep.mubr.f32.mxu0 0.0
        %v3240 = vand.u32 %v3142, 4294901760
        %v3241 = vsub.f32 %v3142, %v3240
        %v3242 = vand.u32 %v3241, 4294901760
        %v3243 = vsub.f32 %v3241, %v3242
        %v3244 = vand.u32 %v3243, 4294901760
        %3245 = vmatmul.mubr.f32.gmra.mrb[0].mxu0 %v3244
        %v3246 = vpop.f32.mrb[0].mxu0
        %v3247 = vadd.f32 0.0, %v3246
        %v3248 = vpop.f32.mrb[0].mxu0
        %3249 = vmatprep.mubr.f32.mxu0 0.0
        %v3250 = vand.u32 %v3145, 4294901760
        %v3251 = vsub.f32 %v3145, %v3250
        %v3252 = vand.u32 %v3251, 4294901760
        %v3253 = vsub.f32 %v3251, %v3252
        %v3254 = vand.u32 %v3253, 4294901760
        %3255 = vmatmul.mubr.f32.gmra.mrb[0].mxu0 %v3254
        %v3256 = vpop.f32.mrb[0].mxu0
        %v3257 = vadd.f32 0.0, %v3256
        %v3258 = vpop.f32.mrb[0].mxu0
        %3259 = vdwg.mxu0
        %3260 = vmatprep.subr.mxu0 0.0
        %v3261 = vand.u32 %v3112, 4294901760
        %v3262 = vsub.f32 %v3112, %v3261
        %v3263 = vand.u32 %v3262, 4294901760
        %v3264 = vsub.f32 %v3262, %v3263
        %v3265 = vand.u32 %v3264, 4294901760
        %3266 = vmatpush1.msra.mxu0 %v3265
        %3267 = vmatprep.subr.mxu0 0.0
        %v3268 = vand.u32 %v3114, 4294901760
        %v3269 = vsub.f32 %v3114, %v3268
        %v3270 = vand.u32 %v3269, 4294901760
        %v3271 = vsub.f32 %v3269, %v3270
        %v3272 = vand.u32 %v3271, 4294901760
        %3273 = vmatpush1.msra.mxu0 %v3272
        %3274 = vmatprep.subr.mxu0 0.0
        %v3275 = vand.u32 %v3116, 4294901760
        %v3276 = vsub.f32 %v3116, %v3275
        %v3277 = vand.u32 %v3276, 4294901760
        %v3278 = vsub.f32 %v3276, %v3277
        %v3279 = vand.u32 %v3278, 4294901760
        %3280 = vmatpush1.msra.mxu0 %v3279
        %3281 = vmatprep.subr.mxu0 0.0
        %v3282 = vand.u32 %v3118, 4294901760
        %v3283 = vsub.f32 %v3118, %v3282
        %v3284 = vand.u32 %v3283, 4294901760
        %v3285 = vsub.f32 %v3283, %v3284
        %v3286 = vand.u32 %v3285, 4294901760
        %3287 = vmatpush1.msra.mxu0 %v3286
        %3288 = vmatprep.subr.mxu0 0.0
        %v3289 = vand.u32 %v3120, 4294901760
        %v3290 = vsub.f32 %v3120, %v3289
        %v3291 = vand.u32 %v3290, 4294901760
        %v3292 = vsub.f32 %v3290, %v3291
        %v3293 = vand.u32 %v3292, 4294901760
        %3294 = vmatpush1.msra.mxu0 %v3293
        %3295 = vmatprep.subr.mxu0 0.0
        %v3296 = vand.u32 %v3122, 4294901760
        %v3297 = vsub.f32 %v3122, %v3296
        %v3298 = vand.u32 %v3297, 4294901760
        %v3299 = vsub.f32 %v3297, %v3298
        %v3300 = vand.u32 %v3299, 4294901760
        %3301 = vmatpush1.msra.mxu0 %v3300
        %3302 = vmatprep.subr.mxu0 0.0
        %v3303 = vand.u32 %v3124, 4294901760
        %v3304 = vsub.f32 %v3124, %v3303
        %v3305 = vand.u32 %v3304, 4294901760
        %v3306 = vsub.f32 %v3304, %v3305
        %v3307 = vand.u32 %v3306, 4294901760
        %3308 = vmatpush1.msra.mxu0 %v3307
        %3309 = vmatprep.subr.mxu0 0.0
        %v3310 = vand.u32 %v3126, 4294901760
        %v3311 = vsub.f32 %v3126, %v3310
        %v3312 = vand.u32 %v3311, 4294901760
        %v3313 = vsub.f32 %v3311, %v3312
        %v3314 = vand.u32 %v3313, 4294901760
        %3315 = vmatpush1.msra.mxu0 %v3314
        %3316 = vmatprep.subr.mxu0 0.0
        %3317 = vmatpush1.msra.mxu0 0.0
        %3318 = vmatprep.subr.mxu0 0.0
        %3319 = vmatpush1.msra.mxu0 0.0
        %3320 = vmatprep.subr.mxu0 0.0
        %3321 = vmatpush1.msra.mxu0 0.0
        %3322 = vmatprep.subr.mxu0 0.0
        %3323 = vmatpush1.msra.mxu0 0.0
        %3324 = vmatprep.subr.mxu0 0.0
        %3325 = vmatpush1.msra.mxu0 0.0
        %3326 = vmatprep.subr.mxu0 0.0
        %3327 = vmatpush1.msra.mxu0 0.0
        %3328 = vmatprep.subr.mxu0 0.0
        %3329 = vmatpush1.msra.mxu0 0.0
        %3330 = vmatprep.subr.mxu0 0.0
        %3331 = vmatpush1.msra.mxu0 0.0
        %3332 = vmatprep.subr.mxu0 0.0
        %3333 = vmatpush1.msra.mxu0 0.0
        %3334 = vmatprep.subr.mxu0 0.0
        %3335 = vmatpush1.msra.mxu0 0.0
        %3336 = vmatprep.subr.mxu0 0.0
        %3337 = vmatpush1.msra.mxu0 0.0
        %3338 = vmatprep.subr.mxu0 0.0
        %3339 = vmatpush1.msra.mxu0 0.0
        %3340 = vmatprep.subr.mxu0 0.0
        %3341 = vmatpush1.msra.mxu0 0.0
        %3342 = vmatprep.subr.mxu0 0.0
        %3343 = vmatpush1.msra.mxu0 0.0
        %3344 = vmatprep.subr.mxu0 0.0
        %3345 = vmatpush1.msra.mxu0 0.0
        %3346 = vmatprep.subr.mxu0 0.0
        %3347 = vmatpush1.msra.mxu0 0.0
        %3348 = vmatprep.subr.mxu0 0.0
        %3349 = vmatpush1.msra.mxu0 0.0
        %3350 = vmatprep.subr.mxu0 0.0
        %3351 = vmatpush1.msra.mxu0 0.0
        %3352 = vmatprep.subr.mxu0 0.0
        %3353 = vmatpush1.msra.mxu0 0.0
        %3354 = vmatprep.subr.mxu0 0.0
        %3355 = vmatpush1.msra.mxu0 0.0
        %3356 = vmatprep.subr.mxu0 0.0
        %3357 = vmatpush1.msra.mxu0 0.0
        %3358 = vmatprep.subr.mxu0 0.0
        %3359 = vmatpush1.msra.mxu0 0.0
        %3360 = vmatprep.subr.mxu0 0.0
        %3361 = vmatpush1.msra.mxu0 0.0
        %3362 = vmatprep.subr.mxu0 0.0
        %3363 = vmatpush1.msra.mxu0 0.0
        %3364 = vmatprep.mubr.f32.mxu0 0.0
        %v3365 = vand.u32 %v3136, 4294901760
        %3366 = vmatmul.mubr.f32.gmra.mrb[0].mxu0 %v3365
        %v3367 = vpop.f32.mrb[0].mxu0
        %v3368 = vadd.f32 %v3227, %v3367
        %v3369 = vpop.f32.mrb[0].mxu0
        %3370 = vmatprep.mubr.f32.mxu0 0.0
        %v3371 = vand.u32 %v3139, 4294901760
        %3372 = vmatmul.mubr.f32.gmra.mrb[0].mxu0 %v3371
        %v3373 = vpop.f32.mrb[0].mxu0
        %v3374 = vadd.f32 %v3237, %v3373
        %v3375 = vpop.f32.mrb[0].mxu0
        %3376 = vmatprep.mubr.f32.mxu0 0.0
        %v3377 = vand.u32 %v3142, 4294901760
        %3378 = vmatmul.mubr.f32.gmra.mrb[0].mxu0 %v3377
        %v3379 = vpop.f32.mrb[0].mxu0
        %v3380 = vadd.f32 %v3247, %v3379
        %v3381 = vpop.f32.mrb[0].mxu0
        %3382 = vmatprep.mubr.f32.mxu0 0.0
        %v3383 = vand.u32 %v3145, 4294901760
        %3384 = vmatmul.mubr.f32.gmra.mrb[0].mxu0 %v3383
        %v3385 = vpop.f32.mrb[0].mxu0
        %v3386 = vadd.f32 %v3257, %v3385
        %v3387 = vpop.f32.mrb[0].mxu0
        %3388 = vdwg.mxu0
        %3389 = vmatprep.subr.mxu0 0.0
        %v3390 = vand.u32 %v3112, 4294901760
        %v3391 = vsub.f32 %v3112, %v3390
        %3392 = vmatpush1.msra.mxu0 %v3391
        %3393 = vmatprep.subr.mxu0 0.0
        %v3394 = vand.u32 %v3114, 4294901760
        %v3395 = vsub.f32 %v3114, %v3394
        %3396 = vmatpush1.msra.mxu0 %v3395
        %3397 = vmatprep.subr.mxu0 0.0
        %v3398 = vand.u32 %v3116, 4294901760
        %v3399 = vsub.f32 %v3116, %v3398
        %3400 = vmatpush1.msra.mxu0 %v3399
        %3401 = vmatprep.subr.mxu0 0.0
        %v3402 = vand.u32 %v3118, 4294901760
        %v3403 = vsub.f32 %v3118, %v3402
        %3404 = vmatpush1.msra.mxu0 %v3403
        %3405 = vmatprep.subr.mxu0 0.0
        %v3406 = vand.u32 %v3120, 4294901760
        %v3407 = vsub.f32 %v3120, %v3406
        %3408 = vmatpush1.msra.mxu0 %v3407
        %3409 = vmatprep.subr.mxu0 0.0
        %v3410 = vand.u32 %v3122, 4294901760
        %v3411 = vsub.f32 %v3122, %v3410
        %3412 = vmatpush1.msra.mxu0 %v3411
        %3413 = vmatprep.subr.mxu0 0.0
        %v3414 = vand.u32 %v3124, 4294901760
        %v3415 = vsub.f32 %v3124, %v3414
        %3416 = vmatpush1.msra.mxu0 %v3415
        %3417 = vmatprep.subr.mxu0 0.0
        %v3418 = vand.u32 %v3126, 4294901760
        %v3419 = vsub.f32 %v3126, %v3418
        %3420 = vmatpush1.msra.mxu0 %v3419
        %3421 = vmatprep.subr.mxu0 0.0
        %3422 = vmatpush1.msra.mxu0 0.0
        %3423 = vmatprep.subr.mxu0 0.0
        %3424 = vmatpush1.msra.mxu0 0.0
        %3425 = vmatprep.subr.mxu0 0.0
        %3426 = vmatpush1.msra.mxu0 0.0
        %3427 = vmatprep.subr.mxu0 0.0
        %3428 = vmatpush1.msra.mxu0 0.0
        %3429 = vmatprep.subr.mxu0 0.0
        %3430 = vmatpush1.msra.mxu0 0.0
        %3431 = vmatprep.subr.mxu0 0.0
        %3432 = vmatpush1.msra.mxu0 0.0
        %3433 = vmatprep.subr.mxu0 0.0
        %3434 = vmatpush1.msra.mxu0 0.0
        %3435 = vmatprep.subr.mxu0 0.0
        %3436 = vmatpush1.msra.mxu0 0.0
        %3437 = vmatprep.subr.mxu0 0.0
        %3438 = vmatpush1.msra.mxu0 0.0
        %3439 = vmatprep.subr.mxu0 0.0
        %3440 = vmatpush1.msra.mxu0 0.0
        %3441 = vmatprep.subr.mxu0 0.0
        %3442 = vmatpush1.msra.mxu0 0.0
        %3443 = vmatprep.subr.mxu0 0.0
        %3444 = vmatpush1.msra.mxu0 0.0
        %3445 = vmatprep.subr.mxu0 0.0
        %3446 = vmatpush1.msra.mxu0 0.0
        %3447 = vmatprep.subr.mxu0 0.0
        %3448 = vmatpush1.msra.mxu0 0.0
        %3449 = vmatprep.subr.mxu0 0.0
        %3450 = vmatpush1.msra.mxu0 0.0
        %3451 = vmatprep.subr.mxu0 0.0
        %3452 = vmatpush1.msra.mxu0 0.0
        %3453 = vmatprep.subr.mxu0 0.0
        %3454 = vmatpush1.msra.mxu0 0.0
        %3455 = vmatprep.subr.mxu0 0.0
        %3456 = vmatpush1.msra.mxu0 0.0
        %3457 = vmatprep.subr.mxu0 0.0
        %3458 = vmatpush1.msra.mxu0 0.0
        %3459 = vmatprep.subr.mxu0 0.0
        %3460 = vmatpush1.msra.mxu0 0.0
        %3461 = vmatprep.subr.mxu0 0.0
        %3462 = vmatpush1.msra.mxu0 0.0
        %3463 = vmatprep.subr.mxu0 0.0
        %3464 = vmatpush1.msra.mxu0 0.0
        %3465 = vmatprep.subr.mxu0 0.0
        %3466 = vmatpush1.msra.mxu0 0.0
        %3467 = vmatprep.subr.mxu0 0.0
        %3468 = vmatpush1.msra.mxu0 0.0
        %3469 = vmatprep.mubr.f32.mxu0 0.0
        %v3470 = vand.u32 %v3136, 4294901760
        %v3471 = vsub.f32 %v3136, %v3470
        %3472 = vmatmul.mubr.f32.gmra.mrb[0].mxu0 %v3471
        %v3473 = vpop.f32.mrb[0].mxu0
        %v3474 = vadd.f32 %v3368, %v3473
        %v3475 = vpop.f32.mrb[0].mxu0
        %3476 = vmatprep.mubr.f32.mxu0 0.0
        %v3477 = vand.u32 %v3139, 4294901760
        %v3478 = vsub.f32 %v3139, %v3477
        %3479 = vmatmul.mubr.f32.gmra.mrb[0].mxu0 %v3478
        %v3480 = vpop.f32.mrb[0].mxu0
        %v3481 = vadd.f32 %v3374, %v3480
        %v3482 = vpop.f32.mrb[0].mxu0
        %3483 = vmatprep.mubr.f32.mxu0 0.0
        %v3484 = vand.u32 %v3142, 4294901760
        %v3485 = vsub.f32 %v3142, %v3484
        %3486 = vmatmul.mubr.f32.gmra.mrb[0].mxu0 %v3485
        %v3487 = vpop.f32.mrb[0].mxu0
        %v3488 = vadd.f32 %v3380, %v3487
        %v3489 = vpop.f32.mrb[0].mxu0
        %3490 = vmatprep.mubr.f32.mxu0 0.0
        %v3491 = vand.u32 %v3145, 4294901760
        %v3492 = vsub.f32 %v3145, %v3491
        %3493 = vmatmul.mubr.f32.gmra.mrb[0].mxu0 %v3492
        %v3494 = vpop.f32.mrb[0].mxu0
        %v3495 = vadd.f32 %v3386, %v3494
        %v3496 = vpop.f32.mrb[0].mxu0
        %3497 = vdwg.mxu0
        %3498 = vmatprep.subr.mxu0 0.0
        %v3499 = vand.u32 %v3112, 4294901760
        %3500 = vmatpush1.msra.mxu0 %v3499
        %3501 = vmatprep.subr.mxu0 0.0
        %v3502 = vand.u32 %v3114, 4294901760
        %3503 = vmatpush1.msra.mxu0 %v3502
        %3504 = vmatprep.subr.mxu0 0.0
        %v3505 = vand.u32 %v3116, 4294901760
        %3506 = vmatpush1.msra.mxu0 %v3505
        %3507 = vmatprep.subr.mxu0 0.0
        %v3508 = vand.u32 %v3118, 4294901760
        %3509 = vmatpush1.msra.mxu0 %v3508
        %3510 = vmatprep.subr.mxu0 0.0
        %v3511 = vand.u32 %v3120, 4294901760
        %3512 = vmatpush1.msra.mxu0 %v3511
        %3513 = vmatprep.subr.mxu0 0.0
        %v3514 = vand.u32 %v3122, 4294901760
        %3515 = vmatpush1.msra.mxu0 %v3514
        %3516 = vmatprep.subr.mxu0 0.0
        %v3517 = vand.u32 %v3124, 4294901760
        %3518 = vmatpush1.msra.mxu0 %v3517
        %3519 = vmatprep.subr.mxu0 0.0
        %v3520 = vand.u32 %v3126, 4294901760
        %3521 = vmatpush1.msra.mxu0 %v3520
        %3522 = vmatprep.subr.mxu0 0.0
        %3523 = vmatpush1.msra.mxu0 0.0
        %3524 = vmatprep.subr.mxu0 0.0
        %3525 = vmatpush1.msra.mxu0 0.0
        %3526 = vmatprep.subr.mxu0 0.0
        %3527 = vmatpush1.msra.mxu0 0.0
        %3528 = vmatprep.subr.mxu0 0.0
        %3529 = vmatpush1.msra.mxu0 0.0
        %3530 = vmatprep.subr.mxu0 0.0
        %3531 = vmatpush1.msra.mxu0 0.0
        %3532 = vmatprep.subr.mxu0 0.0
        %3533 = vmatpush1.msra.mxu0 0.0
        %3534 = vmatprep.subr.mxu0 0.0
        %3535 = vmatpush1.msra.mxu0 0.0
        %3536 = vmatprep.subr.mxu0 0.0
        %3537 = vmatpush1.msra.mxu0 0.0
        %3538 = vmatprep.subr.mxu0 0.0
        %3539 = vmatpush1.msra.mxu0 0.0
        %3540 = vmatprep.subr.mxu0 0.0
        %3541 = vmatpush1.msra.mxu0 0.0
        %3542 = vmatprep.subr.mxu0 0.0
        %3543 = vmatpush1.msra.mxu0 0.0
        %3544 = vmatprep.subr.mxu0 0.0
        %3545 = vmatpush1.msra.mxu0 0.0
        %3546 = vmatprep.subr.mxu0 0.0
        %3547 = vmatpush1.msra.mxu0 0.0
        %3548 = vmatprep.subr.mxu0 0.0
        %3549 = vmatpush1.msra.mxu0 0.0
        %3550 = vmatprep.subr.mxu0 0.0
        %3551 = vmatpush1.msra.mxu0 0.0
        %3552 = vmatprep.subr.mxu0 0.0
        %3553 = vmatpush1.msra.mxu0 0.0
        %3554 = vmatprep.subr.mxu0 0.0
        %3555 = vmatpush1.msra.mxu0 0.0
        %3556 = vmatprep.subr.mxu0 0.0
        %3557 = vmatpush1.msra.mxu0 0.0
        %3558 = vmatprep.subr.mxu0 0.0
        %3559 = vmatpush1.msra.mxu0 0.0
        %3560 = vmatprep.subr.mxu0 0.0
        %3561 = vmatpush1.msra.mxu0 0.0
        %3562 = vmatprep.subr.mxu0 0.0
        %3563 = vmatpush1.msra.mxu0 0.0
        %3564 = vmatprep.subr.mxu0 0.0
        %3565 = vmatpush1.msra.mxu0 0.0
        %3566 = vmatprep.subr.mxu0 0.0
        %3567 = vmatpush1.msra.mxu0 0.0
        %3568 = vmatprep.subr.mxu0 0.0
        %3569 = vmatpush1.msra.mxu0 0.0
        %3570 = vmatprep.mubr.f32.mxu0 0.0
        %v3571 = vand.u32 %v3136, 4294901760
        %v3572 = vsub.f32 %v3136, %v3571
        %v3573 = vand.u32 %v3572, 4294901760
        %3574 = vmatmul.mubr.f32.gmra.mrb[0].mxu0 %v3573
        %v3575 = vpop.f32.mrb[0].mxu0
        %v3576 = vadd.f32 %v3474, %v3575
        %v3577 = vpop.f32.mrb[0].mxu0
        %3578 = vmatprep.mubr.f32.mxu0 0.0
        %v3579 = vand.u32 %v3139, 4294901760
        %v3580 = vsub.f32 %v3139, %v3579
        %v3581 = vand.u32 %v3580, 4294901760
        %3582 = vmatmul.mubr.f32.gmra.mrb[0].mxu0 %v3581
        %v3583 = vpop.f32.mrb[0].mxu0
        %v3584 = vadd.f32 %v3481, %v3583
        %v3585 = vpop.f32.mrb[0].mxu0
        %3586 = vmatprep.mubr.f32.mxu0 0.0
        %v3587 = vand.u32 %v3142, 4294901760
        %v3588 = vsub.f32 %v3142, %v3587
        %v3589 = vand.u32 %v3588, 4294901760
        %3590 = vmatmul.mubr.f32.gmra.mrb[0].mxu0 %v3589
        %v3591 = vpop.f32.mrb[0].mxu0
        %v3592 = vadd.f32 %v3488, %v3591
        %v3593 = vpop.f32.mrb[0].mxu0
        %3594 = vmatprep.mubr.f32.mxu0 0.0
        %v3595 = vand.u32 %v3145, 4294901760
        %v3596 = vsub.f32 %v3145, %v3595
        %v3597 = vand.u32 %v3596, 4294901760
        %3598 = vmatmul.mubr.f32.gmra.mrb[0].mxu0 %v3597
        %v3599 = vpop.f32.mrb[0].mxu0
        %v3600 = vadd.f32 %v3495, %v3599
        %v3601 = vpop.f32.mrb[0].mxu0
        %3602 = vdwg.mxu0
        %3603 = vmatprep.subr.mxu0 0.0
        %v3604 = vand.u32 %v3112, 4294901760
        %v3605 = vsub.f32 %v3112, %v3604
        %v3606 = vand.u32 %v3605, 4294901760
        %3607 = vmatpush1.msra.mxu0 %v3606
        %3608 = vmatprep.subr.mxu0 0.0
        %v3609 = vand.u32 %v3114, 4294901760
        %v3610 = vsub.f32 %v3114, %v3609
        %v3611 = vand.u32 %v3610, 4294901760
        %3612 = vmatpush1.msra.mxu0 %v3611
        %3613 = vmatprep.subr.mxu0 0.0
        %v3614 = vand.u32 %v3116, 4294901760
        %v3615 = vsub.f32 %v3116, %v3614
        %v3616 = vand.u32 %v3615, 4294901760
        %3617 = vmatpush1.msra.mxu0 %v3616
        %3618 = vmatprep.subr.mxu0 0.0
        %v3619 = vand.u32 %v3118, 4294901760
        %v3620 = vsub.f32 %v3118, %v3619
        %v3621 = vand.u32 %v3620, 4294901760
        %3622 = vmatpush1.msra.mxu0 %v3621
        %3623 = vmatprep.subr.mxu0 0.0
        %v3624 = vand.u32 %v3120, 4294901760
        %v3625 = vsub.f32 %v3120, %v3624
        %v3626 = vand.u32 %v3625, 4294901760
        %3627 = vmatpush1.msra.mxu0 %v3626
        %3628 = vmatprep.subr.mxu0 0.0
        %v3629 = vand.u32 %v3122, 4294901760
        %v3630 = vsub.f32 %v3122, %v3629
        %v3631 = vand.u32 %v3630, 4294901760
        %3632 = vmatpush1.msra.mxu0 %v3631
        %3633 = vmatprep.subr.mxu0 0.0
        %v3634 = vand.u32 %v3124, 4294901760
        %v3635 = vsub.f32 %v3124, %v3634
        %v3636 = vand.u32 %v3635, 4294901760
        %3637 = vmatpush1.msra.mxu0 %v3636
        %3638 = vmatprep.subr.mxu0 0.0
        %v3639 = vand.u32 %v3126, 4294901760
        %v3640 = vsub.f32 %v3126, %v3639
        %v3641 = vand.u32 %v3640, 4294901760
        %3642 = vmatpush1.msra.mxu0 %v3641
        %3643 = vmatprep.subr.mxu0 0.0
        %3644 = vmatpush1.msra.mxu0 0.0
        %3645 = vmatprep.subr.mxu0 0.0
        %3646 = vmatpush1.msra.mxu0 0.0
        %3647 = vmatprep.subr.mxu0 0.0
        %3648 = vmatpush1.msra.mxu0 0.0
        %3649 = vmatprep.subr.mxu0 0.0
        %3650 = vmatpush1.msra.mxu0 0.0
        %3651 = vmatprep.subr.mxu0 0.0
        %3652 = vmatpush1.msra.mxu0 0.0
        %3653 = vmatprep.subr.mxu0 0.0
        %3654 = vmatpush1.msra.mxu0 0.0
        %3655 = vmatprep.subr.mxu0 0.0
        %3656 = vmatpush1.msra.mxu0 0.0
        %3657 = vmatprep.subr.mxu0 0.0
        %3658 = vmatpush1.msra.mxu0 0.0
        %3659 = vmatprep.subr.mxu0 0.0
        %3660 = vmatpush1.msra.mxu0 0.0
        %3661 = vmatprep.subr.mxu0 0.0
        %3662 = vmatpush1.msra.mxu0 0.0
        %3663 = vmatprep.subr.mxu0 0.0
        %3664 = vmatpush1.msra.mxu0 0.0
        %3665 = vmatprep.subr.mxu0 0.0
        %3666 = vmatpush1.msra.mxu0 0.0
        %3667 = vmatprep.subr.mxu0 0.0
        %3668 = vmatpush1.msra.mxu0 0.0
        %3669 = vmatprep.subr.mxu0 0.0
        %3670 = vmatpush1.msra.mxu0 0.0
        %3671 = vmatprep.subr.mxu0 0.0
        %3672 = vmatpush1.msra.mxu0 0.0
        %3673 = vmatprep.subr.mxu0 0.0
        %3674 = vmatpush1.msra.mxu0 0.0
        %3675 = vmatprep.subr.mxu0 0.0
        %3676 = vmatpush1.msra.mxu0 0.0
        %3677 = vmatprep.subr.mxu0 0.0
        %3678 = vmatpush1.msra.mxu0 0.0
        %3679 = vmatprep.subr.mxu0 0.0
        %3680 = vmatpush1.msra.mxu0 0.0
        %3681 = vmatprep.subr.mxu0 0.0
        %3682 = vmatpush1.msra.mxu0 0.0
        %3683 = vmatprep.subr.mxu0 0.0
        %3684 = vmatpush1.msra.mxu0 0.0
        %3685 = vmatprep.subr.mxu0 0.0
        %3686 = vmatpush1.msra.mxu0 0.0
        %3687 = vmatprep.subr.mxu0 0.0
        %3688 = vmatpush1.msra.mxu0 0.0
        %3689 = vmatprep.subr.mxu0 0.0
        %3690 = vmatpush1.msra.mxu0 0.0
        %3691 = vmatprep.mubr.f32.mxu0 0.0
        %v3692 = vand.u32 %v3136, 4294901760
        %3693 = vmatmul.mubr.f32.gmra.mrb[0].mxu0 %v3692
        %v3694 = vpop.f32.mrb[0].mxu0
        %v3695 = vadd.f32 %v3576, %v3694
        %v3696 = vpop.f32.mrb[0].mxu0
        %3697 = vmatprep.mubr.f32.mxu0 0.0
        %v3698 = vand.u32 %v3139, 4294901760
        %3699 = vmatmul.mubr.f32.gmra.mrb[0].mxu0 %v3698
        %v3700 = vpop.f32.mrb[0].mxu0
        %v3701 = vadd.f32 %v3584, %v3700
        %v3702 = vpop.f32.mrb[0].mxu0
        %3703 = vmatprep.mubr.f32.mxu0 0.0
        %v3704 = vand.u32 %v3142, 4294901760
        %3705 = vmatmul.mubr.f32.gmra.mrb[0].mxu0 %v3704
        %v3706 = vpop.f32.mrb[0].mxu0
        %v3707 = vadd.f32 %v3592, %v3706
        %v3708 = vpop.f32.mrb[0].mxu0
        %3709 = vmatprep.mubr.f32.mxu0 0.0
        %v3710 = vand.u32 %v3145, 4294901760
        %3711 = vmatmul.mubr.f32.gmra.mrb[0].mxu0 %v3710
        %v3712 = vpop.f32.mrb[0].mxu0
        %v3713 = vadd.f32 %v3600, %v3712
        %v3714 = vpop.f32.mrb[0].mxu0
        %3715 = vdwg.mxu0
        %3716 = vmatprep.subr.mxu0 0.0
        %v3717 = vand.u32 %v3112, 4294901760
        %3718 = vmatpush1.msra.mxu0 %v3717
        %3719 = vmatprep.subr.mxu0 0.0
        %v3720 = vand.u32 %v3114, 4294901760
        %3721 = vmatpush1.msra.mxu0 %v3720
        %3722 = vmatprep.subr.mxu0 0.0
        %v3723 = vand.u32 %v3116, 4294901760
        %3724 = vmatpush1.msra.mxu0 %v3723
        %3725 = vmatprep.subr.mxu0 0.0
        %v3726 = vand.u32 %v3118, 4294901760
        %3727 = vmatpush1.msra.mxu0 %v3726
        %3728 = vmatprep.subr.mxu0 0.0
        %v3729 = vand.u32 %v3120, 4294901760
        %3730 = vmatpush1.msra.mxu0 %v3729
        %3731 = vmatprep.subr.mxu0 0.0
        %v3732 = vand.u32 %v3122, 4294901760
        %3733 = vmatpush1.msra.mxu0 %v3732
        %3734 = vmatprep.subr.mxu0 0.0
        %v3735 = vand.u32 %v3124, 4294901760
        %3736 = vmatpush1.msra.mxu0 %v3735
        %3737 = vmatprep.subr.mxu0 0.0
        %v3738 = vand.u32 %v3126, 4294901760
        %3739 = vmatpush1.msra.mxu0 %v3738
        %3740 = vmatprep.subr.mxu0 0.0
        %3741 = vmatpush1.msra.mxu0 0.0
        %3742 = vmatprep.subr.mxu0 0.0
        %3743 = vmatpush1.msra.mxu0 0.0
        %3744 = vmatprep.subr.mxu0 0.0
        %3745 = vmatpush1.msra.mxu0 0.0
        %3746 = vmatprep.subr.mxu0 0.0
        %3747 = vmatpush1.msra.mxu0 0.0
        %3748 = vmatprep.subr.mxu0 0.0
        %3749 = vmatpush1.msra.mxu0 0.0
        %3750 = vmatprep.subr.mxu0 0.0
        %3751 = vmatpush1.msra.mxu0 0.0
        %3752 = vmatprep.subr.mxu0 0.0
        %3753 = vmatpush1.msra.mxu0 0.0
        %3754 = vmatprep.subr.mxu0 0.0
        %3755 = vmatpush1.msra.mxu0 0.0
        %3756 = vmatprep.subr.mxu0 0.0
        %3757 = vmatpush1.msra.mxu0 0.0
        %3758 = vmatprep.subr.mxu0 0.0
        %3759 = vmatpush1.msra.mxu0 0.0
        %3760 = vmatprep.subr.mxu0 0.0
        %3761 = vmatpush1.msra.mxu0 0.0
        %3762 = vmatprep.subr.mxu0 0.0
        %3763 = vmatpush1.msra.mxu0 0.0
        %3764 = vmatprep.subr.mxu0 0.0
        %3765 = vmatpush1.msra.mxu0 0.0
        %3766 = vmatprep.subr.mxu0 0.0
        %3767 = vmatpush1.msra.mxu0 0.0
        %3768 = vmatprep.subr.mxu0 0.0
        %3769 = vmatpush1.msra.mxu0 0.0
        %3770 = vmatprep.subr.mxu0 0.0
        %3771 = vmatpush1.msra.mxu0 0.0
        %3772 = vmatprep.subr.mxu0 0.0
        %3773 = vmatpush1.msra.mxu0 0.0
        %3774 = vmatprep.subr.mxu0 0.0
        %3775 = vmatpush1.msra.mxu0 0.0
        %3776 = vmatprep.subr.mxu0 0.0
        %3777 = vmatpush1.msra.mxu0 0.0
        %3778 = vmatprep.subr.mxu0 0.0
        %3779 = vmatpush1.msra.mxu0 0.0
        %3780 = vmatprep.subr.mxu0 0.0
        %3781 = vmatpush1.msra.mxu0 0.0
        %3782 = vmatprep.subr.mxu0 0.0
        %3783 = vmatpush1.msra.mxu0 0.0
        %3784 = vmatprep.subr.mxu0 0.0
        %3785 = vmatpush1.msra.mxu0 0.0
        %3786 = vmatprep.subr.mxu0 0.0
        %3787 = vmatpush1.msra.mxu0 0.0
        %3788 = vmatprep.mubr.f32.mxu0 0.0
        %v3789 = vand.u32 %v3136, 4294901760
        %3790 = vmatmul.mubr.f32.gmra.mrb[0].mxu0 %v3789
        %v3791 = vpop.f32.mrb[0].mxu0
        %v3792 = vadd.f32 %v3695, %v3791
        %v3793 = vpop.f32.mrb[0].mxu0
        %3794 = vmatprep.mubr.f32.mxu0 0.0
        %v3795 = vand.u32 %v3139, 4294901760
        %3796 = vmatmul.mubr.f32.gmra.mrb[0].mxu0 %v3795
        %v3797 = vpop.f32.mrb[0].mxu0
        %v3798 = vadd.f32 %v3701, %v3797
        %v3799 = vpop.f32.mrb[0].mxu0
        %3800 = vmatprep.mubr.f32.mxu0 0.0
        %v3801 = vand.u32 %v3142, 4294901760
        %3802 = vmatmul.mubr.f32.gmra.mrb[0].mxu0 %v3801
        %v3803 = vpop.f32.mrb[0].mxu0
        %v3804 = vadd.f32 %v3707, %v3803
        %v3805 = vpop.f32.mrb[0].mxu0
        %3806 = vmatprep.mubr.f32.mxu0 0.0
        %v3807 = vand.u32 %v3145, 4294901760
        %3808 = vmatmul.mubr.f32.gmra.mrb[0].mxu0 %v3807
        %v3809 = vpop.f32.mrb[0].mxu0
        %v3810 = vadd.f32 %v3713, %v3809
        %v3811 = vpop.f32.mrb[0].mxu0
        %3812 = vdwg.mxu0
        %3813 = vset.pattern.permute.xlu0 2
        %3814 = vperm.xlu0 %3813, %v2231
        %v3815 = vpop.permute.xlu0 %3814
        %3817 = vset.pattern.permute.xlu0 2
        %3818 = vperm.xlu0 %3817, %v2237
        %v3819 = vpop.permute.xlu0 %3818
        %3821 = vset.pattern.permute.xlu0 2
        %3822 = vperm.xlu0 %3821, %v2243
        %v3823 = vpop.permute.xlu0 %3822
        %3825 = vset.pattern.permute.xlu0 2
        %3826 = vperm.xlu0 %3825, %v2249
        %v3827 = vpop.permute.xlu0 %3826
        %v3829 = vlaneseq
        %v3830 = vshrl.u32 %v3829, 7
        %v3831 = vsub.s32 2, %v3830
        %v3832 = vrot.slane %v1615, %v3831
        %v3833 = vadd.f32 %v3815, %v3832
        %v3834 = vadd.f32 %v3819, %v3832
        %v3835 = vadd.f32 %v3823, %v3832
        %v3836 = vadd.f32 %v3827, %v3832
        %v3837 = vmul.f32 %v3833, 0.2
        %v3838 = vmul.f32 %v3834, 0.2
        %v3839 = vmul.f32 %v3835, 0.2
        %v3840 = vmul.f32 %v3836, 0.2
        %v3841 = vmax.f32 %v3833, %v3837
        %v3842 = vmax.f32 %v3834, %v3838
        %v3843 = vmax.f32 %v3835, %v3839
        %v3844 = vmax.f32 %v3836, %v3840
        %v3845 = vadd.f32 %v3841, %v2256
        %v3846 = vadd.f32 %v3842, %v2257
        %v3847 = vadd.f32 %v3843, %v2258
        %v3848 = vadd.f32 %v3844, %v2259
        %v3849 = vsel %vm2300, %v3845, -inf
        %3850 = vmax.xlane.f32.xlu0 %v3849
        %v3851 = vpop.xlane.xlu0 %3850
        %v3852 = vsel %vm2300, %v3846, -inf
        %3853 = vmax.xlane.f32.xlu0 %v3852
        %v3854 = vpop.xlane.xlu0 %3853
        %v3855 = vsel %vm2300, %v3847, -inf
        %3856 = vmax.xlane.f32.xlu0 %v3855
        %v3857 = vpop.xlane.xlu0 %3856
        %v3858 = vsel %vm2300, %v3848, -inf
        %3859 = vmax.xlane.f32.xlu0 %v3858
        %v3860 = vpop.xlane.xlu0 %3859
        %v3861 = vsub.f32 %v3845, %v3851
        %v3862 = vsub.f32 %v3846, %v3854
        %v3863 = vsub.f32 %v3847, %v3857
        %v3864 = vsub.f32 %v3848, %v3860
        %v3865 = vmul.f32 %v3861, 1.442695
        %v3866 = vpow.pop %v3865
        %v3867 = vmul.f32 %v3862, 1.442695
        %v3868 = vpow.pop %v3867
        %v3869 = vmul.f32 %v3863, 1.442695
        %v3870 = vpow.pop %v3869
        %v3871 = vmul.f32 %v3864, 1.442695
        %v3872 = vpow.pop %v3871
        %v3873 = vsel %vm2300, %v3866, 0.0
        %3874 = vadd.xlane.f32.xlu0 %v3873
        %v3875 = vpop.xlane.xlu0 %3874
        %v3876 = vsel %vm2300, %v3868, 0.0
        %3877 = vadd.xlane.f32.xlu0 %v3876
        %v3878 = vpop.xlane.xlu0 %3877
        %v3879 = vsel %vm2300, %v3870, 0.0
        %3880 = vadd.xlane.f32.xlu0 %v3879
        %v3881 = vpop.xlane.xlu0 %3880
        %v3882 = vsel %vm2300, %v3872, 0.0
        %3883 = vadd.xlane.f32.xlu0 %v3882
        %v3884 = vpop.xlane.xlu0 %3883
        %v3885 = vrcp.pop %v3875
        %v3886 = vmul.f32 %v3866, %v3885
        %v3887 = vrcp.pop %v3878
        %v3888 = vmul.f32 %v3868, %v3887
        %v3889 = vrcp.pop %v3881
        %v3890 = vmul.f32 %v3870, %v3889
        %v3891 = vrcp.pop %v3884
        %v3892 = vmul.f32 %v3872, %v3891
        %3893 = vrot.lane.b32.xlu0 %v1080, 96
        %v3894 = vpop.permute.xlu0 %3893
        %3895 = vrot.lane.b32.xlu0 %v1086, 96
        %v3896 = vpop.permute.xlu0 %3895
        %3897 = vrot.lane.b32.xlu0 %v1092, 96
        %v3898 = vpop.permute.xlu0 %3897
        %3899 = vrot.lane.b32.xlu0 %v1098, 96
        %v3900 = vpop.permute.xlu0 %3899
        %3901 = vrot.lane.b32.xlu0 %v1104, 96
        %v3902 = vpop.permute.xlu0 %3901
        %3903 = vrot.lane.b32.xlu0 %v1110, 96
        %v3904 = vpop.permute.xlu0 %3903
        %3905 = vrot.lane.b32.xlu0 %v1116, 96
        %v3906 = vpop.permute.xlu0 %3905
        %3907 = vrot.lane.b32.xlu0 %v1122, 96
        %v3908 = vpop.permute.xlu0 %3907
        %v3918 = vsel %vm2300, %v3886, 0
        %v3921 = vsel %vm2300, %v3888, 0
        %v3924 = vsel %vm2300, %v3890, 0
        %v3927 = vsel %vm2300, %v3892, 0
        %3929 = vmatprep.subr.mxu0 0.0
        %v3930 = vand.u32 %v3894, 4294901760
        %3931 = vmatpush1.msra.mxu0 %v3930
        %3932 = vmatprep.subr.mxu0 0.0
        %v3933 = vand.u32 %v3896, 4294901760
        %3934 = vmatpush1.msra.mxu0 %v3933
        %3935 = vmatprep.subr.mxu0 0.0
        %v3936 = vand.u32 %v3898, 4294901760
        %3937 = vmatpush1.msra.mxu0 %v3936
        %3938 = vmatprep.subr.mxu0 0.0
        %v3939 = vand.u32 %v3900, 4294901760
        %3940 = vmatpush1.msra.mxu0 %v3939
        %3941 = vmatprep.subr.mxu0 0.0
        %v3942 = vand.u32 %v3902, 4294901760
        %3943 = vmatpush1.msra.mxu0 %v3942
        %3944 = vmatprep.subr.mxu0 0.0
        %v3945 = vand.u32 %v3904, 4294901760
        %3946 = vmatpush1.msra.mxu0 %v3945
        %3947 = vmatprep.subr.mxu0 0.0
        %v3948 = vand.u32 %v3906, 4294901760
        %3949 = vmatpush1.msra.mxu0 %v3948
        %3950 = vmatprep.subr.mxu0 0.0
        %v3951 = vand.u32 %v3908, 4294901760
        %3952 = vmatpush1.msra.mxu0 %v3951
        %3953 = vmatprep.subr.mxu0 0.0
        %3954 = vmatpush1.msra.mxu0 0.0
        %3955 = vmatprep.subr.mxu0 0.0
        %3956 = vmatpush1.msra.mxu0 0.0
        %3957 = vmatprep.subr.mxu0 0.0
        %3958 = vmatpush1.msra.mxu0 0.0
        %3959 = vmatprep.subr.mxu0 0.0
        %3960 = vmatpush1.msra.mxu0 0.0
        %3961 = vmatprep.subr.mxu0 0.0
        %3962 = vmatpush1.msra.mxu0 0.0
        %3963 = vmatprep.subr.mxu0 0.0
        %3964 = vmatpush1.msra.mxu0 0.0
        %3965 = vmatprep.subr.mxu0 0.0
        %3966 = vmatpush1.msra.mxu0 0.0
        %3967 = vmatprep.subr.mxu0 0.0
        %3968 = vmatpush1.msra.mxu0 0.0
        %3969 = vmatprep.subr.mxu0 0.0
        %3970 = vmatpush1.msra.mxu0 0.0
        %3971 = vmatprep.subr.mxu0 0.0
        %3972 = vmatpush1.msra.mxu0 0.0
        %3973 = vmatprep.subr.mxu0 0.0
        %3974 = vmatpush1.msra.mxu0 0.0
        %3975 = vmatprep.subr.mxu0 0.0
        %3976 = vmatpush1.msra.mxu0 0.0
        %3977 = vmatprep.subr.mxu0 0.0
        %3978 = vmatpush1.msra.mxu0 0.0
        %3979 = vmatprep.subr.mxu0 0.0
        %3980 = vmatpush1.msra.mxu0 0.0
        %3981 = vmatprep.subr.mxu0 0.0
        %3982 = vmatpush1.msra.mxu0 0.0
        %3983 = vmatprep.subr.mxu0 0.0
        %3984 = vmatpush1.msra.mxu0 0.0
        %3985 = vmatprep.subr.mxu0 0.0
        %3986 = vmatpush1.msra.mxu0 0.0
        %3987 = vmatprep.subr.mxu0 0.0
        %3988 = vmatpush1.msra.mxu0 0.0
        %3989 = vmatprep.subr.mxu0 0.0
        %3990 = vmatpush1.msra.mxu0 0.0
        %3991 = vmatprep.subr.mxu0 0.0
        %3992 = vmatpush1.msra.mxu0 0.0
        %3993 = vmatprep.subr.mxu0 0.0
        %3994 = vmatpush1.msra.mxu0 0.0
        %3995 = vmatprep.subr.mxu0 0.0
        %3996 = vmatpush1.msra.mxu0 0.0
        %3997 = vmatprep.subr.mxu0 0.0
        %3998 = vmatpush1.msra.mxu0 0.0
        %3999 = vmatprep.subr.mxu0 0.0
        %4000 = vmatpush1.msra.mxu0 0.0
        %4001 = vmatprep.mubr.f32.mxu0 0.0
        %v4002 = vand.u32 %v3918, 4294901760
        %v4003 = vsub.f32 %v3918, %v4002
        %v4004 = vand.u32 %v4003, 4294901760
        %v4005 = vsub.f32 %v4003, %v4004
        %v4006 = vand.u32 %v4005, 4294901760
        %4007 = vmatmul.mubr.f32.gmra.mrb[0].mxu0 %v4006
        %v4008 = vpop.f32.mrb[0].mxu0
        %v4009 = vadd.f32 0.0, %v4008
        %v4010 = vpop.f32.mrb[0].mxu0
        %4011 = vmatprep.mubr.f32.mxu0 0.0
        %v4012 = vand.u32 %v3921, 4294901760
        %v4013 = vsub.f32 %v3921, %v4012
        %v4014 = vand.u32 %v4013, 4294901760
        %v4015 = vsub.f32 %v4013, %v4014
        %v4016 = vand.u32 %v4015, 4294901760
        %4017 = vmatmul.mubr.f32.gmra.mrb[0].mxu0 %v4016
        %v4018 = vpop.f32.mrb[0].mxu0
        %v4019 = vadd.f32 0.0, %v4018
        %v4020 = vpop.f32.mrb[0].mxu0
        %4021 = vmatprep.mubr.f32.mxu0 0.0
        %v4022 = vand.u32 %v3924, 4294901760
        %v4023 = vsub.f32 %v3924, %v4022
        %v4024 = vand.u32 %v4023, 4294901760
        %v4025 = vsub.f32 %v4023, %v4024
        %v4026 = vand.u32 %v4025, 4294901760
        %4027 = vmatmul.mubr.f32.gmra.mrb[0].mxu0 %v4026
        %v4028 = vpop.f32.mrb[0].mxu0
        %v4029 = vadd.f32 0.0, %v4028
        %v4030 = vpop.f32.mrb[0].mxu0
        %4031 = vmatprep.mubr.f32.mxu0 0.0
        %v4032 = vand.u32 %v3927, 4294901760
        %v4033 = vsub.f32 %v3927, %v4032
        %v4034 = vand.u32 %v4033, 4294901760
        %v4035 = vsub.f32 %v4033, %v4034
        %v4036 = vand.u32 %v4035, 4294901760
        %4037 = vmatmul.mubr.f32.gmra.mrb[0].mxu0 %v4036
        %v4038 = vpop.f32.mrb[0].mxu0
        %v4039 = vadd.f32 0.0, %v4038
        %v4040 = vpop.f32.mrb[0].mxu0
        %4041 = vdwg.mxu0
        %4042 = vmatprep.subr.mxu0 0.0
        %v4043 = vand.u32 %v3894, 4294901760
        %v4044 = vsub.f32 %v3894, %v4043
        %v4045 = vand.u32 %v4044, 4294901760
        %v4046 = vsub.f32 %v4044, %v4045
        %v4047 = vand.u32 %v4046, 4294901760
        %4048 = vmatpush1.msra.mxu0 %v4047
        %4049 = vmatprep.subr.mxu0 0.0
        %v4050 = vand.u32 %v3896, 4294901760
        %v4051 = vsub.f32 %v3896, %v4050
        %v4052 = vand.u32 %v4051, 4294901760
        %v4053 = vsub.f32 %v4051, %v4052
        %v4054 = vand.u32 %v4053, 4294901760
        %4055 = vmatpush1.msra.mxu0 %v4054
        %4056 = vmatprep.subr.mxu0 0.0
        %v4057 = vand.u32 %v3898, 4294901760
        %v4058 = vsub.f32 %v3898, %v4057
        %v4059 = vand.u32 %v4058, 4294901760
        %v4060 = vsub.f32 %v4058, %v4059
        %v4061 = vand.u32 %v4060, 4294901760
        %4062 = vmatpush1.msra.mxu0 %v4061
        %4063 = vmatprep.subr.mxu0 0.0
        %v4064 = vand.u32 %v3900, 4294901760
        %v4065 = vsub.f32 %v3900, %v4064
        %v4066 = vand.u32 %v4065, 4294901760
        %v4067 = vsub.f32 %v4065, %v4066
        %v4068 = vand.u32 %v4067, 4294901760
        %4069 = vmatpush1.msra.mxu0 %v4068
        %4070 = vmatprep.subr.mxu0 0.0
        %v4071 = vand.u32 %v3902, 4294901760
        %v4072 = vsub.f32 %v3902, %v4071
        %v4073 = vand.u32 %v4072, 4294901760
        %v4074 = vsub.f32 %v4072, %v4073
        %v4075 = vand.u32 %v4074, 4294901760
        %4076 = vmatpush1.msra.mxu0 %v4075
        %4077 = vmatprep.subr.mxu0 0.0
        %v4078 = vand.u32 %v3904, 4294901760
        %v4079 = vsub.f32 %v3904, %v4078
        %v4080 = vand.u32 %v4079, 4294901760
        %v4081 = vsub.f32 %v4079, %v4080
        %v4082 = vand.u32 %v4081, 4294901760
        %4083 = vmatpush1.msra.mxu0 %v4082
        %4084 = vmatprep.subr.mxu0 0.0
        %v4085 = vand.u32 %v3906, 4294901760
        %v4086 = vsub.f32 %v3906, %v4085
        %v4087 = vand.u32 %v4086, 4294901760
        %v4088 = vsub.f32 %v4086, %v4087
        %v4089 = vand.u32 %v4088, 4294901760
        %4090 = vmatpush1.msra.mxu0 %v4089
        %4091 = vmatprep.subr.mxu0 0.0
        %v4092 = vand.u32 %v3908, 4294901760
        %v4093 = vsub.f32 %v3908, %v4092
        %v4094 = vand.u32 %v4093, 4294901760
        %v4095 = vsub.f32 %v4093, %v4094
        %v4096 = vand.u32 %v4095, 4294901760
        %4097 = vmatpush1.msra.mxu0 %v4096
        %4098 = vmatprep.subr.mxu0 0.0
        %4099 = vmatpush1.msra.mxu0 0.0
        %4100 = vmatprep.subr.mxu0 0.0
        %4101 = vmatpush1.msra.mxu0 0.0
        %4102 = vmatprep.subr.mxu0 0.0
        %4103 = vmatpush1.msra.mxu0 0.0
        %4104 = vmatprep.subr.mxu0 0.0
        %4105 = vmatpush1.msra.mxu0 0.0
        %4106 = vmatprep.subr.mxu0 0.0
        %4107 = vmatpush1.msra.mxu0 0.0
        %4108 = vmatprep.subr.mxu0 0.0
        %4109 = vmatpush1.msra.mxu0 0.0
        %4110 = vmatprep.subr.mxu0 0.0
        %4111 = vmatpush1.msra.mxu0 0.0
        %4112 = vmatprep.subr.mxu0 0.0
        %4113 = vmatpush1.msra.mxu0 0.0
        %4114 = vmatprep.subr.mxu0 0.0
        %4115 = vmatpush1.msra.mxu0 0.0
        %4116 = vmatprep.subr.mxu0 0.0
        %4117 = vmatpush1.msra.mxu0 0.0
        %4118 = vmatprep.subr.mxu0 0.0
        %4119 = vmatpush1.msra.mxu0 0.0
        %4120 = vmatprep.subr.mxu0 0.0
        %4121 = vmatpush1.msra.mxu0 0.0
        %4122 = vmatprep.subr.mxu0 0.0
        %4123 = vmatpush1.msra.mxu0 0.0
        %4124 = vmatprep.subr.mxu0 0.0
        %4125 = vmatpush1.msra.mxu0 0.0
        %4126 = vmatprep.subr.mxu0 0.0
        %4127 = vmatpush1.msra.mxu0 0.0
        %4128 = vmatprep.subr.mxu0 0.0
        %4129 = vmatpush1.msra.mxu0 0.0
        %4130 = vmatprep.subr.mxu0 0.0
        %4131 = vmatpush1.msra.mxu0 0.0
        %4132 = vmatprep.subr.mxu0 0.0
        %4133 = vmatpush1.msra.mxu0 0.0
        %4134 = vmatprep.subr.mxu0 0.0
        %4135 = vmatpush1.msra.mxu0 0.0
        %4136 = vmatprep.subr.mxu0 0.0
        %4137 = vmatpush1.msra.mxu0 0.0
        %4138 = vmatprep.subr.mxu0 0.0
        %4139 = vmatpush1.msra.mxu0 0.0
        %4140 = vmatprep.subr.mxu0 0.0
        %4141 = vmatpush1.msra.mxu0 0.0
        %4142 = vmatprep.subr.mxu0 0.0
        %4143 = vmatpush1.msra.mxu0 0.0
        %4144 = vmatprep.subr.mxu0 0.0
        %4145 = vmatpush1.msra.mxu0 0.0
        %4146 = vmatprep.mubr.f32.mxu0 0.0
        %v4147 = vand.u32 %v3918, 4294901760
        %4148 = vmatmul.mubr.f32.gmra.mrb[0].mxu0 %v4147
        %v4149 = vpop.f32.mrb[0].mxu0
        %v4150 = vadd.f32 %v4009, %v4149
        %v4151 = vpop.f32.mrb[0].mxu0
        %4152 = vmatprep.mubr.f32.mxu0 0.0
        %v4153 = vand.u32 %v3921, 4294901760
        %4154 = vmatmul.mubr.f32.gmra.mrb[0].mxu0 %v4153
        %v4155 = vpop.f32.mrb[0].mxu0
        %v4156 = vadd.f32 %v4019, %v4155
        %v4157 = vpop.f32.mrb[0].mxu0
        %4158 = vmatprep.mubr.f32.mxu0 0.0
        %v4159 = vand.u32 %v3924, 4294901760
        %4160 = vmatmul.mubr.f32.gmra.mrb[0].mxu0 %v4159
        %v4161 = vpop.f32.mrb[0].mxu0
        %v4162 = vadd.f32 %v4029, %v4161
        %v4163 = vpop.f32.mrb[0].mxu0
        %4164 = vmatprep.mubr.f32.mxu0 0.0
        %v4165 = vand.u32 %v3927, 4294901760
        %4166 = vmatmul.mubr.f32.gmra.mrb[0].mxu0 %v4165
        %v4167 = vpop.f32.mrb[0].mxu0
        %v4168 = vadd.f32 %v4039, %v4167
        %v4169 = vpop.f32.mrb[0].mxu0
        %4170 = vdwg.mxu0
        %4171 = vmatprep.subr.mxu0 0.0
        %v4172 = vand.u32 %v3894, 4294901760
        %v4173 = vsub.f32 %v3894, %v4172
        %4174 = vmatpush1.msra.mxu0 %v4173
        %4175 = vmatprep.subr.mxu0 0.0
        %v4176 = vand.u32 %v3896, 4294901760
        %v4177 = vsub.f32 %v3896, %v4176
        %4178 = vmatpush1.msra.mxu0 %v4177
        %4179 = vmatprep.subr.mxu0 0.0
        %v4180 = vand.u32 %v3898, 4294901760
        %v4181 = vsub.f32 %v3898, %v4180
        %4182 = vmatpush1.msra.mxu0 %v4181
        %4183 = vmatprep.subr.mxu0 0.0
        %v4184 = vand.u32 %v3900, 4294901760
        %v4185 = vsub.f32 %v3900, %v4184
        %4186 = vmatpush1.msra.mxu0 %v4185
        %4187 = vmatprep.subr.mxu0 0.0
        %v4188 = vand.u32 %v3902, 4294901760
        %v4189 = vsub.f32 %v3902, %v4188
        %4190 = vmatpush1.msra.mxu0 %v4189
        %4191 = vmatprep.subr.mxu0 0.0
        %v4192 = vand.u32 %v3904, 4294901760
        %v4193 = vsub.f32 %v3904, %v4192
        %4194 = vmatpush1.msra.mxu0 %v4193
        %4195 = vmatprep.subr.mxu0 0.0
        %v4196 = vand.u32 %v3906, 4294901760
        %v4197 = vsub.f32 %v3906, %v4196
        %4198 = vmatpush1.msra.mxu0 %v4197
        %4199 = vmatprep.subr.mxu0 0.0
        %v4200 = vand.u32 %v3908, 4294901760
        %v4201 = vsub.f32 %v3908, %v4200
        %4202 = vmatpush1.msra.mxu0 %v4201
        %4203 = vmatprep.subr.mxu0 0.0
        %4204 = vmatpush1.msra.mxu0 0.0
        %4205 = vmatprep.subr.mxu0 0.0
        %4206 = vmatpush1.msra.mxu0 0.0
        %4207 = vmatprep.subr.mxu0 0.0
        %4208 = vmatpush1.msra.mxu0 0.0
        %4209 = vmatprep.subr.mxu0 0.0
        %4210 = vmatpush1.msra.mxu0 0.0
        %4211 = vmatprep.subr.mxu0 0.0
        %4212 = vmatpush1.msra.mxu0 0.0
        %4213 = vmatprep.subr.mxu0 0.0
        %4214 = vmatpush1.msra.mxu0 0.0
        %4215 = vmatprep.subr.mxu0 0.0
        %4216 = vmatpush1.msra.mxu0 0.0
        %4217 = vmatprep.subr.mxu0 0.0
        %4218 = vmatpush1.msra.mxu0 0.0
        %4219 = vmatprep.subr.mxu0 0.0
        %4220 = vmatpush1.msra.mxu0 0.0
        %4221 = vmatprep.subr.mxu0 0.0
        %4222 = vmatpush1.msra.mxu0 0.0
        %4223 = vmatprep.subr.mxu0 0.0
        %4224 = vmatpush1.msra.mxu0 0.0
        %4225 = vmatprep.subr.mxu0 0.0
        %4226 = vmatpush1.msra.mxu0 0.0
        %4227 = vmatprep.subr.mxu0 0.0
        %4228 = vmatpush1.msra.mxu0 0.0
        %4229 = vmatprep.subr.mxu0 0.0
        %4230 = vmatpush1.msra.mxu0 0.0
        %4231 = vmatprep.subr.mxu0 0.0
        %4232 = vmatpush1.msra.mxu0 0.0
        %4233 = vmatprep.subr.mxu0 0.0
        %4234 = vmatpush1.msra.mxu0 0.0
        %4235 = vmatprep.subr.mxu0 0.0
        %4236 = vmatpush1.msra.mxu0 0.0
        %4237 = vmatprep.subr.mxu0 0.0
        %4238 = vmatpush1.msra.mxu0 0.0
        %4239 = vmatprep.subr.mxu0 0.0
        %4240 = vmatpush1.msra.mxu0 0.0
        %4241 = vmatprep.subr.mxu0 0.0
        %4242 = vmatpush1.msra.mxu0 0.0
        %4243 = vmatprep.subr.mxu0 0.0
        %4244 = vmatpush1.msra.mxu0 0.0
        %4245 = vmatprep.subr.mxu0 0.0
        %4246 = vmatpush1.msra.mxu0 0.0
        %4247 = vmatprep.subr.mxu0 0.0
        %4248 = vmatpush1.msra.mxu0 0.0
        %4249 = vmatprep.subr.mxu0 0.0
        %4250 = vmatpush1.msra.mxu0 0.0
        %4251 = vmatprep.mubr.f32.mxu0 0.0
        %v4252 = vand.u32 %v3918, 4294901760
        %v4253 = vsub.f32 %v3918, %v4252
        %4254 = vmatmul.mubr.f32.gmra.mrb[0].mxu0 %v4253
        %v4255 = vpop.f32.mrb[0].mxu0
        %v4256 = vadd.f32 %v4150, %v4255
        %v4257 = vpop.f32.mrb[0].mxu0
        %4258 = vmatprep.mubr.f32.mxu0 0.0
        %v4259 = vand.u32 %v3921, 4294901760
        %v4260 = vsub.f32 %v3921, %v4259
        %4261 = vmatmul.mubr.f32.gmra.mrb[0].mxu0 %v4260
        %v4262 = vpop.f32.mrb[0].mxu0
        %v4263 = vadd.f32 %v4156, %v4262
        %v4264 = vpop.f32.mrb[0].mxu0
        %4265 = vmatprep.mubr.f32.mxu0 0.0
        %v4266 = vand.u32 %v3924, 4294901760
        %v4267 = vsub.f32 %v3924, %v4266
        %4268 = vmatmul.mubr.f32.gmra.mrb[0].mxu0 %v4267
        %v4269 = vpop.f32.mrb[0].mxu0
        %v4270 = vadd.f32 %v4162, %v4269
        %v4271 = vpop.f32.mrb[0].mxu0
        %4272 = vmatprep.mubr.f32.mxu0 0.0
        %v4273 = vand.u32 %v3927, 4294901760
        %v4274 = vsub.f32 %v3927, %v4273
        %4275 = vmatmul.mubr.f32.gmra.mrb[0].mxu0 %v4274
        %v4276 = vpop.f32.mrb[0].mxu0
        %v4277 = vadd.f32 %v4168, %v4276
        %v4278 = vpop.f32.mrb[0].mxu0
        %4279 = vdwg.mxu0
        %4280 = vmatprep.subr.mxu0 0.0
        %v4281 = vand.u32 %v3894, 4294901760
        %4282 = vmatpush1.msra.mxu0 %v4281
        %4283 = vmatprep.subr.mxu0 0.0
        %v4284 = vand.u32 %v3896, 4294901760
        %4285 = vmatpush1.msra.mxu0 %v4284
        %4286 = vmatprep.subr.mxu0 0.0
        %v4287 = vand.u32 %v3898, 4294901760
        %4288 = vmatpush1.msra.mxu0 %v4287
        %4289 = vmatprep.subr.mxu0 0.0
        %v4290 = vand.u32 %v3900, 4294901760
        %4291 = vmatpush1.msra.mxu0 %v4290
        %4292 = vmatprep.subr.mxu0 0.0
        %v4293 = vand.u32 %v3902, 4294901760
        %4294 = vmatpush1.msra.mxu0 %v4293
        %4295 = vmatprep.subr.mxu0 0.0
        %v4296 = vand.u32 %v3904, 4294901760
        %4297 = vmatpush1.msra.mxu0 %v4296
        %4298 = vmatprep.subr.mxu0 0.0
        %v4299 = vand.u32 %v3906, 4294901760
        %4300 = vmatpush1.msra.mxu0 %v4299
        %4301 = vmatprep.subr.mxu0 0.0
        %v4302 = vand.u32 %v3908, 4294901760
        %4303 = vmatpush1.msra.mxu0 %v4302
        %4304 = vmatprep.subr.mxu0 0.0
        %4305 = vmatpush1.msra.mxu0 0.0
        %4306 = vmatprep.subr.mxu0 0.0
        %4307 = vmatpush1.msra.mxu0 0.0
        %4308 = vmatprep.subr.mxu0 0.0
        %4309 = vmatpush1.msra.mxu0 0.0
        %4310 = vmatprep.subr.mxu0 0.0
        %4311 = vmatpush1.msra.mxu0 0.0
        %4312 = vmatprep.subr.mxu0 0.0
        %4313 = vmatpush1.msra.mxu0 0.0
        %4314 = vmatprep.subr.mxu0 0.0
        %4315 = vmatpush1.msra.mxu0 0.0
        %4316 = vmatprep.subr.mxu0 0.0
        %4317 = vmatpush1.msra.mxu0 0.0
        %4318 = vmatprep.subr.mxu0 0.0
        %4319 = vmatpush1.msra.mxu0 0.0
        %4320 = vmatprep.subr.mxu0 0.0
        %4321 = vmatpush1.msra.mxu0 0.0
        %4322 = vmatprep.subr.mxu0 0.0
        %4323 = vmatpush1.msra.mxu0 0.0
        %4324 = vmatprep.subr.mxu0 0.0
        %4325 = vmatpush1.msra.mxu0 0.0
        %4326 = vmatprep.subr.mxu0 0.0
        %4327 = vmatpush1.msra.mxu0 0.0
        %4328 = vmatprep.subr.mxu0 0.0
        %4329 = vmatpush1.msra.mxu0 0.0
        %4330 = vmatprep.subr.mxu0 0.0
        %4331 = vmatpush1.msra.mxu0 0.0
        %4332 = vmatprep.subr.mxu0 0.0
        %4333 = vmatpush1.msra.mxu0 0.0
        %4334 = vmatprep.subr.mxu0 0.0
        %4335 = vmatpush1.msra.mxu0 0.0
        %4336 = vmatprep.subr.mxu0 0.0
        %4337 = vmatpush1.msra.mxu0 0.0
        %4338 = vmatprep.subr.mxu0 0.0
        %4339 = vmatpush1.msra.mxu0 0.0
        %4340 = vmatprep.subr.mxu0 0.0
        %4341 = vmatpush1.msra.mxu0 0.0
        %4342 = vmatprep.subr.mxu0 0.0
        %4343 = vmatpush1.msra.mxu0 0.0
        %4344 = vmatprep.subr.mxu0 0.0
        %4345 = vmatpush1.msra.mxu0 0.0
        %4346 = vmatprep.subr.mxu0 0.0
        %4347 = vmatpush1.msra.mxu0 0.0
        %4348 = vmatprep.subr.mxu0 0.0
        %4349 = vmatpush1.msra.mxu0 0.0
        %4350 = vmatprep.subr.mxu0 0.0
        %4351 = vmatpush1.msra.mxu0 0.0
        %4352 = vmatprep.mubr.f32.mxu0 0.0
        %v4353 = vand.u32 %v3918, 4294901760
        %v4354 = vsub.f32 %v3918, %v4353
        %v4355 = vand.u32 %v4354, 4294901760
        %4356 = vmatmul.mubr.f32.gmra.mrb[0].mxu0 %v4355
        %v4357 = vpop.f32.mrb[0].mxu0
        %v4358 = vadd.f32 %v4256, %v4357
        %v4359 = vpop.f32.mrb[0].mxu0
        %4360 = vmatprep.mubr.f32.mxu0 0.0
        %v4361 = vand.u32 %v3921, 4294901760
        %v4362 = vsub.f32 %v3921, %v4361
        %v4363 = vand.u32 %v4362, 4294901760
        %4364 = vmatmul.mubr.f32.gmra.mrb[0].mxu0 %v4363
        %v4365 = vpop.f32.mrb[0].mxu0
        %v4366 = vadd.f32 %v4263, %v4365
        %v4367 = vpop.f32.mrb[0].mxu0
        %4368 = vmatprep.mubr.f32.mxu0 0.0
        %v4369 = vand.u32 %v3924, 4294901760
        %v4370 = vsub.f32 %v3924, %v4369
        %v4371 = vand.u32 %v4370, 4294901760
        %4372 = vmatmul.mubr.f32.gmra.mrb[0].mxu0 %v4371
        %v4373 = vpop.f32.mrb[0].mxu0
        %v4374 = vadd.f32 %v4270, %v4373
        %v4375 = vpop.f32.mrb[0].mxu0
        %4376 = vmatprep.mubr.f32.mxu0 0.0
        %v4377 = vand.u32 %v3927, 4294901760
        %v4378 = vsub.f32 %v3927, %v4377
        %v4379 = vand.u32 %v4378, 4294901760
        %4380 = vmatmul.mubr.f32.gmra.mrb[0].mxu0 %v4379
        %v4381 = vpop.f32.mrb[0].mxu0
        %v4382 = vadd.f32 %v4277, %v4381
        %v4383 = vpop.f32.mrb[0].mxu0
        %4384 = vdwg.mxu0
        %4385 = vmatprep.subr.mxu0 0.0
        %v4386 = vand.u32 %v3894, 4294901760
        %v4387 = vsub.f32 %v3894, %v4386
        %v4388 = vand.u32 %v4387, 4294901760
        %4389 = vmatpush1.msra.mxu0 %v4388
        %4390 = vmatprep.subr.mxu0 0.0
        %v4391 = vand.u32 %v3896, 4294901760
        %v4392 = vsub.f32 %v3896, %v4391
        %v4393 = vand.u32 %v4392, 4294901760
        %4394 = vmatpush1.msra.mxu0 %v4393
        %4395 = vmatprep.subr.mxu0 0.0
        %v4396 = vand.u32 %v3898, 4294901760
        %v4397 = vsub.f32 %v3898, %v4396
        %v4398 = vand.u32 %v4397, 4294901760
        %4399 = vmatpush1.msra.mxu0 %v4398
        %4400 = vmatprep.subr.mxu0 0.0
        %v4401 = vand.u32 %v3900, 4294901760
        %v4402 = vsub.f32 %v3900, %v4401
        %v4403 = vand.u32 %v4402, 4294901760
        %4404 = vmatpush1.msra.mxu0 %v4403
        %4405 = vmatprep.subr.mxu0 0.0
        %v4406 = vand.u32 %v3902, 4294901760
        %v4407 = vsub.f32 %v3902, %v4406
        %v4408 = vand.u32 %v4407, 4294901760
        %4409 = vmatpush1.msra.mxu0 %v4408
        %4410 = vmatprep.subr.mxu0 0.0
        %v4411 = vand.u32 %v3904, 4294901760
        %v4412 = vsub.f32 %v3904, %v4411
        %v4413 = vand.u32 %v4412, 4294901760
        %4414 = vmatpush1.msra.mxu0 %v4413
        %4415 = vmatprep.subr.mxu0 0.0
        %v4416 = vand.u32 %v3906, 4294901760
        %v4417 = vsub.f32 %v3906, %v4416
        %v4418 = vand.u32 %v4417, 4294901760
        %4419 = vmatpush1.msra.mxu0 %v4418
        %4420 = vmatprep.subr.mxu0 0.0
        %v4421 = vand.u32 %v3908, 4294901760
        %v4422 = vsub.f32 %v3908, %v4421
        %v4423 = vand.u32 %v4422, 4294901760
        %4424 = vmatpush1.msra.mxu0 %v4423
        %4425 = vmatprep.subr.mxu0 0.0
        %4426 = vmatpush1.msra.mxu0 0.0
        %4427 = vmatprep.subr.mxu0 0.0
        %4428 = vmatpush1.msra.mxu0 0.0
        %4429 = vmatprep.subr.mxu0 0.0
        %4430 = vmatpush1.msra.mxu0 0.0
        %4431 = vmatprep.subr.mxu0 0.0
        %4432 = vmatpush1.msra.mxu0 0.0
        %4433 = vmatprep.subr.mxu0 0.0
        %4434 = vmatpush1.msra.mxu0 0.0
        %4435 = vmatprep.subr.mxu0 0.0
        %4436 = vmatpush1.msra.mxu0 0.0
        %4437 = vmatprep.subr.mxu0 0.0
        %4438 = vmatpush1.msra.mxu0 0.0
        %4439 = vmatprep.subr.mxu0 0.0
        %4440 = vmatpush1.msra.mxu0 0.0
        %4441 = vmatprep.subr.mxu0 0.0
        %4442 = vmatpush1.msra.mxu0 0.0
        %4443 = vmatprep.subr.mxu0 0.0
        %4444 = vmatpush1.msra.mxu0 0.0
        %4445 = vmatprep.subr.mxu0 0.0
        %4446 = vmatpush1.msra.mxu0 0.0
        %4447 = vmatprep.subr.mxu0 0.0
        %4448 = vmatpush1.msra.mxu0 0.0
        %4449 = vmatprep.subr.mxu0 0.0
        %4450 = vmatpush1.msra.mxu0 0.0
        %4451 = vmatprep.subr.mxu0 0.0
        %4452 = vmatpush1.msra.mxu0 0.0
        %4453 = vmatprep.subr.mxu0 0.0
        %4454 = vmatpush1.msra.mxu0 0.0
        %4455 = vmatprep.subr.mxu0 0.0
        %4456 = vmatpush1.msra.mxu0 0.0
        %4457 = vmatprep.subr.mxu0 0.0
        %4458 = vmatpush1.msra.mxu0 0.0
        %4459 = vmatprep.subr.mxu0 0.0
        %4460 = vmatpush1.msra.mxu0 0.0
        %4461 = vmatprep.subr.mxu0 0.0
        %4462 = vmatpush1.msra.mxu0 0.0
        %4463 = vmatprep.subr.mxu0 0.0
        %4464 = vmatpush1.msra.mxu0 0.0
        %4465 = vmatprep.subr.mxu0 0.0
        %4466 = vmatpush1.msra.mxu0 0.0
        %4467 = vmatprep.subr.mxu0 0.0
        %4468 = vmatpush1.msra.mxu0 0.0
        %4469 = vmatprep.subr.mxu0 0.0
        %4470 = vmatpush1.msra.mxu0 0.0
        %4471 = vmatprep.subr.mxu0 0.0
        %4472 = vmatpush1.msra.mxu0 0.0
        %4473 = vmatprep.mubr.f32.mxu0 0.0
        %v4474 = vand.u32 %v3918, 4294901760
        %4475 = vmatmul.mubr.f32.gmra.mrb[0].mxu0 %v4474
        %v4476 = vpop.f32.mrb[0].mxu0
        %v4477 = vadd.f32 %v4358, %v4476
        %v4478 = vpop.f32.mrb[0].mxu0
        %4479 = vmatprep.mubr.f32.mxu0 0.0
        %v4480 = vand.u32 %v3921, 4294901760
        %4481 = vmatmul.mubr.f32.gmra.mrb[0].mxu0 %v4480
        %v4482 = vpop.f32.mrb[0].mxu0
        %v4483 = vadd.f32 %v4366, %v4482
        %v4484 = vpop.f32.mrb[0].mxu0
        %4485 = vmatprep.mubr.f32.mxu0 0.0
        %v4486 = vand.u32 %v3924, 4294901760
        %4487 = vmatmul.mubr.f32.gmra.mrb[0].mxu0 %v4486
        %v4488 = vpop.f32.mrb[0].mxu0
        %v4489 = vadd.f32 %v4374, %v4488
        %v4490 = vpop.f32.mrb[0].mxu0
        %4491 = vmatprep.mubr.f32.mxu0 0.0
        %v4492 = vand.u32 %v3927, 4294901760
        %4493 = vmatmul.mubr.f32.gmra.mrb[0].mxu0 %v4492
        %v4494 = vpop.f32.mrb[0].mxu0
        %v4495 = vadd.f32 %v4382, %v4494
        %v4496 = vpop.f32.mrb[0].mxu0
        %4497 = vdwg.mxu0
        %4498 = vmatprep.subr.mxu0 0.0
        %v4499 = vand.u32 %v3894, 4294901760
        %4500 = vmatpush1.msra.mxu0 %v4499
        %4501 = vmatprep.subr.mxu0 0.0
        %v4502 = vand.u32 %v3896, 4294901760
        %4503 = vmatpush1.msra.mxu0 %v4502
        %4504 = vmatprep.subr.mxu0 0.0
        %v4505 = vand.u32 %v3898, 4294901760
        %4506 = vmatpush1.msra.mxu0 %v4505
        %4507 = vmatprep.subr.mxu0 0.0
        %v4508 = vand.u32 %v3900, 4294901760
        %4509 = vmatpush1.msra.mxu0 %v4508
        %4510 = vmatprep.subr.mxu0 0.0
        %v4511 = vand.u32 %v3902, 4294901760
        %4512 = vmatpush1.msra.mxu0 %v4511
        %4513 = vmatprep.subr.mxu0 0.0
        %v4514 = vand.u32 %v3904, 4294901760
        %4515 = vmatpush1.msra.mxu0 %v4514
        %4516 = vmatprep.subr.mxu0 0.0
        %v4517 = vand.u32 %v3906, 4294901760
        %4518 = vmatpush1.msra.mxu0 %v4517
        %4519 = vmatprep.subr.mxu0 0.0
        %v4520 = vand.u32 %v3908, 4294901760
        %4521 = vmatpush1.msra.mxu0 %v4520
        %4522 = vmatprep.subr.mxu0 0.0
        %4523 = vmatpush1.msra.mxu0 0.0
        %4524 = vmatprep.subr.mxu0 0.0
        %4525 = vmatpush1.msra.mxu0 0.0
        %4526 = vmatprep.subr.mxu0 0.0
        %4527 = vmatpush1.msra.mxu0 0.0
        %4528 = vmatprep.subr.mxu0 0.0
        %4529 = vmatpush1.msra.mxu0 0.0
        %4530 = vmatprep.subr.mxu0 0.0
        %4531 = vmatpush1.msra.mxu0 0.0
        %4532 = vmatprep.subr.mxu0 0.0
        %4533 = vmatpush1.msra.mxu0 0.0
        %4534 = vmatprep.subr.mxu0 0.0
        %4535 = vmatpush1.msra.mxu0 0.0
        %4536 = vmatprep.subr.mxu0 0.0
        %4537 = vmatpush1.msra.mxu0 0.0
        %4538 = vmatprep.subr.mxu0 0.0
        %4539 = vmatpush1.msra.mxu0 0.0
        %4540 = vmatprep.subr.mxu0 0.0
        %4541 = vmatpush1.msra.mxu0 0.0
        %4542 = vmatprep.subr.mxu0 0.0
        %4543 = vmatpush1.msra.mxu0 0.0
        %4544 = vmatprep.subr.mxu0 0.0
        %4545 = vmatpush1.msra.mxu0 0.0
        %4546 = vmatprep.subr.mxu0 0.0
        %4547 = vmatpush1.msra.mxu0 0.0
        %4548 = vmatprep.subr.mxu0 0.0
        %4549 = vmatpush1.msra.mxu0 0.0
        %4550 = vmatprep.subr.mxu0 0.0
        %4551 = vmatpush1.msra.mxu0 0.0
        %4552 = vmatprep.subr.mxu0 0.0
        %4553 = vmatpush1.msra.mxu0 0.0
        %4554 = vmatprep.subr.mxu0 0.0
        %4555 = vmatpush1.msra.mxu0 0.0
        %4556 = vmatprep.subr.mxu0 0.0
        %4557 = vmatpush1.msra.mxu0 0.0
        %4558 = vmatprep.subr.mxu0 0.0
        %4559 = vmatpush1.msra.mxu0 0.0
        %4560 = vmatprep.subr.mxu0 0.0
        %4561 = vmatpush1.msra.mxu0 0.0
        %4562 = vmatprep.subr.mxu0 0.0
        %4563 = vmatpush1.msra.mxu0 0.0
        %4564 = vmatprep.subr.mxu0 0.0
        %4565 = vmatpush1.msra.mxu0 0.0
        %4566 = vmatprep.subr.mxu0 0.0
        %4567 = vmatpush1.msra.mxu0 0.0
        %4568 = vmatprep.subr.mxu0 0.0
        %4569 = vmatpush1.msra.mxu0 0.0
        %4570 = vmatprep.mubr.f32.mxu0 0.0
        %v4571 = vand.u32 %v3918, 4294901760
        %4572 = vmatmul.mubr.f32.gmra.mrb[0].mxu0 %v4571
        %v4573 = vpop.f32.mrb[0].mxu0
        %v4574 = vadd.f32 %v4477, %v4573
        %v4575 = vpop.f32.mrb[0].mxu0
        %4576 = vmatprep.mubr.f32.mxu0 0.0
        %v4577 = vand.u32 %v3921, 4294901760
        %4578 = vmatmul.mubr.f32.gmra.mrb[0].mxu0 %v4577
        %v4579 = vpop.f32.mrb[0].mxu0
        %v4580 = vadd.f32 %v4483, %v4579
        %v4581 = vpop.f32.mrb[0].mxu0
        %4582 = vmatprep.mubr.f32.mxu0 0.0
        %v4583 = vand.u32 %v3924, 4294901760
        %4584 = vmatmul.mubr.f32.gmra.mrb[0].mxu0 %v4583
        %v4585 = vpop.f32.mrb[0].mxu0
        %v4586 = vadd.f32 %v4489, %v4585
        %v4587 = vpop.f32.mrb[0].mxu0
        %4588 = vmatprep.mubr.f32.mxu0 0.0
        %v4589 = vand.u32 %v3927, 4294901760
        %4590 = vmatmul.mubr.f32.gmra.mrb[0].mxu0 %v4589
        %v4591 = vpop.f32.mrb[0].mxu0
        %v4592 = vadd.f32 %v4495, %v4591
        %v4593 = vpop.f32.mrb[0].mxu0
        %4594 = vdwg.mxu0
        %4595 = vset.pattern.permute.xlu0 3
        %4596 = vperm.xlu0 %4595, %v2231
        %v4597 = vpop.permute.xlu0 %4596
        %4599 = vset.pattern.permute.xlu0 3
        %4600 = vperm.xlu0 %4599, %v2237
        %v4601 = vpop.permute.xlu0 %4600
        %4603 = vset.pattern.permute.xlu0 3
        %4604 = vperm.xlu0 %4603, %v2243
        %v4605 = vpop.permute.xlu0 %4604
        %4607 = vset.pattern.permute.xlu0 3
        %4608 = vperm.xlu0 %4607, %v2249
        %v4609 = vpop.permute.xlu0 %4608
        %v4611 = vlaneseq
        %v4612 = vshrl.u32 %v4611, 7
        %v4613 = vsub.s32 3, %v4612
        %v4614 = vrot.slane %v1615, %v4613
        %v4615 = vadd.f32 %v4597, %v4614
        %v4616 = vadd.f32 %v4601, %v4614
        %v4617 = vadd.f32 %v4605, %v4614
        %v4618 = vadd.f32 %v4609, %v4614
        %v4619 = vmul.f32 %v4615, 0.2
        %v4620 = vmul.f32 %v4616, 0.2
        %v4621 = vmul.f32 %v4617, 0.2
        %v4622 = vmul.f32 %v4618, 0.2
        %v4623 = vmax.f32 %v4615, %v4619
        %v4624 = vmax.f32 %v4616, %v4620
        %v4625 = vmax.f32 %v4617, %v4621
        %v4626 = vmax.f32 %v4618, %v4622
        %v4627 = vadd.f32 %v4623, %v2256
        %v4628 = vadd.f32 %v4624, %v2257
        %v4629 = vadd.f32 %v4625, %v2258
        %v4630 = vadd.f32 %v4626, %v2259
        %v4631 = vsel %vm2300, %v4627, -inf
        %4632 = vmax.xlane.f32.xlu0 %v4631
        %v4633 = vpop.xlane.xlu0 %4632
        %v4634 = vsel %vm2300, %v4628, -inf
        %4635 = vmax.xlane.f32.xlu0 %v4634
        %v4636 = vpop.xlane.xlu0 %4635
        %v4637 = vsel %vm2300, %v4629, -inf
        %4638 = vmax.xlane.f32.xlu0 %v4637
        %v4639 = vpop.xlane.xlu0 %4638
        %v4640 = vsel %vm2300, %v4630, -inf
        %4641 = vmax.xlane.f32.xlu0 %v4640
        %v4642 = vpop.xlane.xlu0 %4641
        %v4643 = vsub.f32 %v4627, %v4633
        %v4644 = vsub.f32 %v4628, %v4636
        %v4645 = vsub.f32 %v4629, %v4639
        %v4646 = vsub.f32 %v4630, %v4642
        %v4647 = vmul.f32 %v4643, 1.442695
        %v4648 = vpow.pop %v4647
        %v4649 = vmul.f32 %v4644, 1.442695
        %v4650 = vpow.pop %v4649
        %v4651 = vmul.f32 %v4645, 1.442695
        %v4652 = vpow.pop %v4651
        %v4653 = vmul.f32 %v4646, 1.442695
        %v4654 = vpow.pop %v4653
        %v4655 = vsel %vm2300, %v4648, 0.0
        %4656 = vadd.xlane.f32.xlu0 %v4655
        %v4657 = vpop.xlane.xlu0 %4656
        %v4658 = vsel %vm2300, %v4650, 0.0
        %4659 = vadd.xlane.f32.xlu0 %v4658
        %v4660 = vpop.xlane.xlu0 %4659
        %v4661 = vsel %vm2300, %v4652, 0.0
        %4662 = vadd.xlane.f32.xlu0 %v4661
        %v4663 = vpop.xlane.xlu0 %4662
        %v4664 = vsel %vm2300, %v4654, 0.0
        %4665 = vadd.xlane.f32.xlu0 %v4664
        %v4666 = vpop.xlane.xlu0 %4665
        %v4667 = vrcp.pop %v4657
        %v4668 = vmul.f32 %v4648, %v4667
        %v4669 = vrcp.pop %v4660
        %v4670 = vmul.f32 %v4650, %v4669
        %v4671 = vrcp.pop %v4663
        %v4672 = vmul.f32 %v4652, %v4671
        %v4673 = vrcp.pop %v4666
        %v4674 = vmul.f32 %v4654, %v4673
        %4675 = vrot.lane.b32.xlu0 %v1080, 80
        %v4676 = vpop.permute.xlu0 %4675
        %4677 = vrot.lane.b32.xlu0 %v1086, 80
        %v4678 = vpop.permute.xlu0 %4677
        %4679 = vrot.lane.b32.xlu0 %v1092, 80
        %v4680 = vpop.permute.xlu0 %4679
        %4681 = vrot.lane.b32.xlu0 %v1098, 80
        %v4682 = vpop.permute.xlu0 %4681
        %4683 = vrot.lane.b32.xlu0 %v1104, 80
        %v4684 = vpop.permute.xlu0 %4683
        %4685 = vrot.lane.b32.xlu0 %v1110, 80
        %v4686 = vpop.permute.xlu0 %4685
        %4687 = vrot.lane.b32.xlu0 %v1116, 80
        %v4688 = vpop.permute.xlu0 %4687
        %4689 = vrot.lane.b32.xlu0 %v1122, 80
        %v4690 = vpop.permute.xlu0 %4689
        %v4700 = vsel %vm2300, %v4668, 0
        %v4703 = vsel %vm2300, %v4670, 0
        %v4706 = vsel %vm2300, %v4672, 0
        %v4709 = vsel %vm2300, %v4674, 0
        %4711 = vmatprep.subr.mxu0 0.0
        %v4712 = vand.u32 %v4676, 4294901760
        %4713 = vmatpush1.msra.mxu0 %v4712
        %4714 = vmatprep.subr.mxu0 0.0
        %v4715 = vand.u32 %v4678, 4294901760
        %4716 = vmatpush1.msra.mxu0 %v4715
        %4717 = vmatprep.subr.mxu0 0.0
        %v4718 = vand.u32 %v4680, 4294901760
        %4719 = vmatpush1.msra.mxu0 %v4718
        %4720 = vmatprep.subr.mxu0 0.0
        %v4721 = vand.u32 %v4682, 4294901760
        %4722 = vmatpush1.msra.mxu0 %v4721
        %4723 = vmatprep.subr.mxu0 0.0
        %v4724 = vand.u32 %v4684, 4294901760
        %4725 = vmatpush1.msra.mxu0 %v4724
        %4726 = vmatprep.subr.mxu0 0.0
        %v4727 = vand.u32 %v4686, 4294901760
        %4728 = vmatpush1.msra.mxu0 %v4727
        %4729 = vmatprep.subr.mxu0 0.0
        %v4730 = vand.u32 %v4688, 4294901760
        %4731 = vmatpush1.msra.mxu0 %v4730
        %4732 = vmatprep.subr.mxu0 0.0
        %v4733 = vand.u32 %v4690, 4294901760
        %4734 = vmatpush1.msra.mxu0 %v4733
        %4735 = vmatprep.subr.mxu0 0.0
        %4736 = vmatpush1.msra.mxu0 0.0
        %4737 = vmatprep.subr.mxu0 0.0
        %4738 = vmatpush1.msra.mxu0 0.0
        %4739 = vmatprep.subr.mxu0 0.0
        %4740 = vmatpush1.msra.mxu0 0.0
        %4741 = vmatprep.subr.mxu0 0.0
        %4742 = vmatpush1.msra.mxu0 0.0
        %4743 = vmatprep.subr.mxu0 0.0
        %4744 = vmatpush1.msra.mxu0 0.0
        %4745 = vmatprep.subr.mxu0 0.0
        %4746 = vmatpush1.msra.mxu0 0.0
        %4747 = vmatprep.subr.mxu0 0.0
        %4748 = vmatpush1.msra.mxu0 0.0
        %4749 = vmatprep.subr.mxu0 0.0
        %4750 = vmatpush1.msra.mxu0 0.0
        %4751 = vmatprep.subr.mxu0 0.0
        %4752 = vmatpush1.msra.mxu0 0.0
        %4753 = vmatprep.subr.mxu0 0.0
        %4754 = vmatpush1.msra.mxu0 0.0
        %4755 = vmatprep.subr.mxu0 0.0
        %4756 = vmatpush1.msra.mxu0 0.0
        %4757 = vmatprep.subr.mxu0 0.0
        %4758 = vmatpush1.msra.mxu0 0.0
        %4759 = vmatprep.subr.mxu0 0.0
        %4760 = vmatpush1.msra.mxu0 0.0
        %4761 = vmatprep.subr.mxu0 0.0
        %4762 = vmatpush1.msra.mxu0 0.0
        %4763 = vmatprep.subr.mxu0 0.0
        %4764 = vmatpush1.msra.mxu0 0.0
        %4765 = vmatprep.subr.mxu0 0.0
        %4766 = vmatpush1.msra.mxu0 0.0
        %4767 = vmatprep.subr.mxu0 0.0
        %4768 = vmatpush1.msra.mxu0 0.0
        %4769 = vmatprep.subr.mxu0 0.0
        %4770 = vmatpush1.msra.mxu0 0.0
        %4771 = vmatprep.subr.mxu0 0.0
        %4772 = vmatpush1.msra.mxu0 0.0
        %4773 = vmatprep.subr.mxu0 0.0
        %4774 = vmatpush1.msra.mxu0 0.0
        %4775 = vmatprep.subr.mxu0 0.0
        %4776 = vmatpush1.msra.mxu0 0.0
        %4777 = vmatprep.subr.mxu0 0.0
        %4778 = vmatpush1.msra.mxu0 0.0
        %4779 = vmatprep.subr.mxu0 0.0
        %4780 = vmatpush1.msra.mxu0 0.0
        %4781 = vmatprep.subr.mxu0 0.0
        %4782 = vmatpush1.msra.mxu0 0.0
        %4783 = vmatprep.mubr.f32.mxu0 0.0
        %v4784 = vand.u32 %v4700, 4294901760
        %v4785 = vsub.f32 %v4700, %v4784
        %v4786 = vand.u32 %v4785, 4294901760
        %v4787 = vsub.f32 %v4785, %v4786
        %v4788 = vand.u32 %v4787, 4294901760
        %4789 = vmatmul.mubr.f32.gmra.mrb[0].mxu0 %v4788
        %v4790 = vpop.f32.mrb[0].mxu0
        %v4791 = vadd.f32 0.0, %v4790
        %v4792 = vpop.f32.mrb[0].mxu0
        %4793 = vmatprep.mubr.f32.mxu0 0.0
        %v4794 = vand.u32 %v4703, 4294901760
        %v4795 = vsub.f32 %v4703, %v4794
        %v4796 = vand.u32 %v4795, 4294901760
        %v4797 = vsub.f32 %v4795, %v4796
        %v4798 = vand.u32 %v4797, 4294901760
        %4799 = vmatmul.mubr.f32.gmra.mrb[0].mxu0 %v4798
        %v4800 = vpop.f32.mrb[0].mxu0
        %v4801 = vadd.f32 0.0, %v4800
        %v4802 = vpop.f32.mrb[0].mxu0
        %4803 = vmatprep.mubr.f32.mxu0 0.0
        %v4804 = vand.u32 %v4706, 4294901760
        %v4805 = vsub.f32 %v4706, %v4804
        %v4806 = vand.u32 %v4805, 4294901760
        %v4807 = vsub.f32 %v4805, %v4806
        %v4808 = vand.u32 %v4807, 4294901760
        %4809 = vmatmul.mubr.f32.gmra.mrb[0].mxu0 %v4808
        %v4810 = vpop.f32.mrb[0].mxu0
        %v4811 = vadd.f32 0.0, %v4810
        %v4812 = vpop.f32.mrb[0].mxu0
        %4813 = vmatprep.mubr.f32.mxu0 0.0
        %v4814 = vand.u32 %v4709, 4294901760
        %v4815 = vsub.f32 %v4709, %v4814
        %v4816 = vand.u32 %v4815, 4294901760
        %v4817 = vsub.f32 %v4815, %v4816
        %v4818 = vand.u32 %v4817, 4294901760
        %4819 = vmatmul.mubr.f32.gmra.mrb[0].mxu0 %v4818
        %v4820 = vpop.f32.mrb[0].mxu0
        %v4821 = vadd.f32 0.0, %v4820
        %v4822 = vpop.f32.mrb[0].mxu0
        %4823 = vdwg.mxu0
        %4824 = vmatprep.subr.mxu0 0.0
        %v4825 = vand.u32 %v4676, 4294901760
        %v4826 = vsub.f32 %v4676, %v4825
        %v4827 = vand.u32 %v4826, 4294901760
        %v4828 = vsub.f32 %v4826, %v4827
        %v4829 = vand.u32 %v4828, 4294901760
        %4830 = vmatpush1.msra.mxu0 %v4829
        %4831 = vmatprep.subr.mxu0 0.0
        %v4832 = vand.u32 %v4678, 4294901760
        %v4833 = vsub.f32 %v4678, %v4832
        %v4834 = vand.u32 %v4833, 4294901760
        %v4835 = vsub.f32 %v4833, %v4834
        %v4836 = vand.u32 %v4835, 4294901760
        %4837 = vmatpush1.msra.mxu0 %v4836
        %4838 = vmatprep.subr.mxu0 0.0
        %v4839 = vand.u32 %v4680, 4294901760
        %v4840 = vsub.f32 %v4680, %v4839
        %v4841 = vand.u32 %v4840, 4294901760
        %v4842 = vsub.f32 %v4840, %v4841
        %v4843 = vand.u32 %v4842, 4294901760
        %4844 = vmatpush1.msra.mxu0 %v4843
        %4845 = vmatprep.subr.mxu0 0.0
        %v4846 = vand.u32 %v4682, 4294901760
        %v4847 = vsub.f32 %v4682, %v4846
        %v4848 = vand.u32 %v4847, 4294901760
        %v4849 = vsub.f32 %v4847, %v4848
        %v4850 = vand.u32 %v4849, 4294901760
        %4851 = vmatpush1.msra.mxu0 %v4850
        %4852 = vmatprep.subr.mxu0 0.0
        %v4853 = vand.u32 %v4684, 4294901760
        %v4854 = vsub.f32 %v4684, %v4853
        %v4855 = vand.u32 %v4854, 4294901760
        %v4856 = vsub.f32 %v4854, %v4855
        %v4857 = vand.u32 %v4856, 4294901760
        %4858 = vmatpush1.msra.mxu0 %v4857
        %4859 = vmatprep.subr.mxu0 0.0
        %v4860 = vand.u32 %v4686, 4294901760
        %v4861 = vsub.f32 %v4686, %v4860
        %v4862 = vand.u32 %v4861, 4294901760
        %v4863 = vsub.f32 %v4861, %v4862
        %v4864 = vand.u32 %v4863, 4294901760
        %4865 = vmatpush1.msra.mxu0 %v4864
        %4866 = vmatprep.subr.mxu0 0.0
        %v4867 = vand.u32 %v4688, 4294901760
        %v4868 = vsub.f32 %v4688, %v4867
        %v4869 = vand.u32 %v4868, 4294901760
        %v4870 = vsub.f32 %v4868, %v4869
        %v4871 = vand.u32 %v4870, 4294901760
        %4872 = vmatpush1.msra.mxu0 %v4871
        %4873 = vmatprep.subr.mxu0 0.0
        %v4874 = vand.u32 %v4690, 4294901760
        %v4875 = vsub.f32 %v4690, %v4874
        %v4876 = vand.u32 %v4875, 4294901760
        %v4877 = vsub.f32 %v4875, %v4876
        %v4878 = vand.u32 %v4877, 4294901760
        %4879 = vmatpush1.msra.mxu0 %v4878
        %4880 = vmatprep.subr.mxu0 0.0
        %4881 = vmatpush1.msra.mxu0 0.0
        %4882 = vmatprep.subr.mxu0 0.0
        %4883 = vmatpush1.msra.mxu0 0.0
        %4884 = vmatprep.subr.mxu0 0.0
        %4885 = vmatpush1.msra.mxu0 0.0
        %4886 = vmatprep.subr.mxu0 0.0
        %4887 = vmatpush1.msra.mxu0 0.0
        %4888 = vmatprep.subr.mxu0 0.0
        %4889 = vmatpush1.msra.mxu0 0.0
        %4890 = vmatprep.subr.mxu0 0.0
        %4891 = vmatpush1.msra.mxu0 0.0
        %4892 = vmatprep.subr.mxu0 0.0
        %4893 = vmatpush1.msra.mxu0 0.0
        %4894 = vmatprep.subr.mxu0 0.0
        %4895 = vmatpush1.msra.mxu0 0.0
        %4896 = vmatprep.subr.mxu0 0.0
        %4897 = vmatpush1.msra.mxu0 0.0
        %4898 = vmatprep.subr.mxu0 0.0
        %4899 = vmatpush1.msra.mxu0 0.0
        %4900 = vmatprep.subr.mxu0 0.0
        %4901 = vmatpush1.msra.mxu0 0.0
        %4902 = vmatprep.subr.mxu0 0.0
        %4903 = vmatpush1.msra.mxu0 0.0
        %4904 = vmatprep.subr.mxu0 0.0
        %4905 = vmatpush1.msra.mxu0 0.0
        %4906 = vmatprep.subr.mxu0 0.0
        %4907 = vmatpush1.msra.mxu0 0.0
        %4908 = vmatprep.subr.mxu0 0.0
        %4909 = vmatpush1.msra.mxu0 0.0
        %4910 = vmatprep.subr.mxu0 0.0
        %4911 = vmatpush1.msra.mxu0 0.0
        %4912 = vmatprep.subr.mxu0 0.0
        %4913 = vmatpush1.msra.mxu0 0.0
        %4914 = vmatprep.subr.mxu0 0.0
        %4915 = vmatpush1.msra.mxu0 0.0
        %4916 = vmatprep.subr.mxu0 0.0
        %4917 = vmatpush1.msra.mxu0 0.0
        %4918 = vmatprep.subr.mxu0 0.0
        %4919 = vmatpush1.msra.mxu0 0.0
        %4920 = vmatprep.subr.mxu0 0.0
        %4921 = vmatpush1.msra.mxu0 0.0
        %4922 = vmatprep.subr.mxu0 0.0
        %4923 = vmatpush1.msra.mxu0 0.0
        %4924 = vmatprep.subr.mxu0 0.0
        %4925 = vmatpush1.msra.mxu0 0.0
        %4926 = vmatprep.subr.mxu0 0.0
        %4927 = vmatpush1.msra.mxu0 0.0
        %4928 = vmatprep.mubr.f32.mxu0 0.0
        %v4929 = vand.u32 %v4700, 4294901760
        %4930 = vmatmul.mubr.f32.gmra.mrb[0].mxu0 %v4929
        %v4931 = vpop.f32.mrb[0].mxu0
        %v4932 = vadd.f32 %v4791, %v4931
        %v4933 = vpop.f32.mrb[0].mxu0
        %4934 = vmatprep.mubr.f32.mxu0 0.0
        %v4935 = vand.u32 %v4703, 4294901760
        %4936 = vmatmul.mubr.f32.gmra.mrb[0].mxu0 %v4935
        %v4937 = vpop.f32.mrb[0].mxu0
        %v4938 = vadd.f32 %v4801, %v4937
        %v4939 = vpop.f32.mrb[0].mxu0
        %4940 = vmatprep.mubr.f32.mxu0 0.0
        %v4941 = vand.u32 %v4706, 4294901760
        %4942 = vmatmul.mubr.f32.gmra.mrb[0].mxu0 %v4941
        %v4943 = vpop.f32.mrb[0].mxu0
        %v4944 = vadd.f32 %v4811, %v4943
        %v4945 = vpop.f32.mrb[0].mxu0
        %4946 = vmatprep.mubr.f32.mxu0 0.0
        %v4947 = vand.u32 %v4709, 4294901760
        %4948 = vmatmul.mubr.f32.gmra.mrb[0].mxu0 %v4947
        %v4949 = vpop.f32.mrb[0].mxu0
        %v4950 = vadd.f32 %v4821, %v4949
        %v4951 = vpop.f32.mrb[0].mxu0
        %4952 = vdwg.mxu0
        %4953 = vmatprep.subr.mxu0 0.0
        %v4954 = vand.u32 %v4676, 4294901760
        %v4955 = vsub.f32 %v4676, %v4954
        %4956 = vmatpush1.msra.mxu0 %v4955
        %4957 = vmatprep.subr.mxu0 0.0
        %v4958 = vand.u32 %v4678, 4294901760
        %v4959 = vsub.f32 %v4678, %v4958
        %4960 = vmatpush1.msra.mxu0 %v4959
        %4961 = vmatprep.subr.mxu0 0.0
        %v4962 = vand.u32 %v4680, 4294901760
        %v4963 = vsub.f32 %v4680, %v4962
        %4964 = vmatpush1.msra.mxu0 %v4963
        %4965 = vmatprep.subr.mxu0 0.0
        %v4966 = vand.u32 %v4682, 4294901760
        %v4967 = vsub.f32 %v4682, %v4966
        %4968 = vmatpush1.msra.mxu0 %v4967
        %4969 = vmatprep.subr.mxu0 0.0
        %v4970 = vand.u32 %v4684, 4294901760
        %v4971 = vsub.f32 %v4684, %v4970
        %4972 = vmatpush1.msra.mxu0 %v4971
        %4973 = vmatprep.subr.mxu0 0.0
        %v4974 = vand.u32 %v4686, 4294901760
        %v4975 = vsub.f32 %v4686, %v4974
        %4976 = vmatpush1.msra.mxu0 %v4975
        %4977 = vmatprep.subr.mxu0 0.0
        %v4978 = vand.u32 %v4688, 4294901760
        %v4979 = vsub.f32 %v4688, %v4978
        %4980 = vmatpush1.msra.mxu0 %v4979
        %4981 = vmatprep.subr.mxu0 0.0
        %v4982 = vand.u32 %v4690, 4294901760
        %v4983 = vsub.f32 %v4690, %v4982
        %4984 = vmatpush1.msra.mxu0 %v4983
        %4985 = vmatprep.subr.mxu0 0.0
        %4986 = vmatpush1.msra.mxu0 0.0
        %4987 = vmatprep.subr.mxu0 0.0
        %4988 = vmatpush1.msra.mxu0 0.0
        %4989 = vmatprep.subr.mxu0 0.0
        %4990 = vmatpush1.msra.mxu0 0.0
        %4991 = vmatprep.subr.mxu0 0.0
        %4992 = vmatpush1.msra.mxu0 0.0
        %4993 = vmatprep.subr.mxu0 0.0
        %4994 = vmatpush1.msra.mxu0 0.0
        %4995 = vmatprep.subr.mxu0 0.0
        %4996 = vmatpush1.msra.mxu0 0.0
        %4997 = vmatprep.subr.mxu0 0.0
        %4998 = vmatpush1.msra.mxu0 0.0
        %4999 = vmatprep.subr.mxu0 0.0
        %5000 = vmatpush1.msra.mxu0 0.0
        %5001 = vmatprep.subr.mxu0 0.0
        %5002 = vmatpush1.msra.mxu0 0.0
        %5003 = vmatprep.subr.mxu0 0.0
        %5004 = vmatpush1.msra.mxu0 0.0
        %5005 = vmatprep.subr.mxu0 0.0
        %5006 = vmatpush1.msra.mxu0 0.0
        %5007 = vmatprep.subr.mxu0 0.0
        %5008 = vmatpush1.msra.mxu0 0.0
        %5009 = vmatprep.subr.mxu0 0.0
        %5010 = vmatpush1.msra.mxu0 0.0
        %5011 = vmatprep.subr.mxu0 0.0
        %5012 = vmatpush1.msra.mxu0 0.0
        %5013 = vmatprep.subr.mxu0 0.0
        %5014 = vmatpush1.msra.mxu0 0.0
        %5015 = vmatprep.subr.mxu0 0.0
        %5016 = vmatpush1.msra.mxu0 0.0
        %5017 = vmatprep.subr.mxu0 0.0
        %5018 = vmatpush1.msra.mxu0 0.0
        %5019 = vmatprep.subr.mxu0 0.0
        %5020 = vmatpush1.msra.mxu0 0.0
        %5021 = vmatprep.subr.mxu0 0.0
        %5022 = vmatpush1.msra.mxu0 0.0
        %5023 = vmatprep.subr.mxu0 0.0
        %5024 = vmatpush1.msra.mxu0 0.0
        %5025 = vmatprep.subr.mxu0 0.0
        %5026 = vmatpush1.msra.mxu0 0.0
        %5027 = vmatprep.subr.mxu0 0.0
        %5028 = vmatpush1.msra.mxu0 0.0
        %5029 = vmatprep.subr.mxu0 0.0
        %5030 = vmatpush1.msra.mxu0 0.0
        %5031 = vmatprep.subr.mxu0 0.0
        %5032 = vmatpush1.msra.mxu0 0.0
        %5033 = vmatprep.mubr.f32.mxu0 0.0
        %v5034 = vand.u32 %v4700, 4294901760
        %v5035 = vsub.f32 %v4700, %v5034
        %5036 = vmatmul.mubr.f32.gmra.mrb[0].mxu0 %v5035
        %v5037 = vpop.f32.mrb[0].mxu0
        %v5038 = vadd.f32 %v4932, %v5037
        %v5039 = vpop.f32.mrb[0].mxu0
        %5040 = vmatprep.mubr.f32.mxu0 0.0
        %v5041 = vand.u32 %v4703, 4294901760
        %v5042 = vsub.f32 %v4703, %v5041
        %5043 = vmatmul.mubr.f32.gmra.mrb[0].mxu0 %v5042
        %v5044 = vpop.f32.mrb[0].mxu0
        %v5045 = vadd.f32 %v4938, %v5044
        %v5046 = vpop.f32.mrb[0].mxu0
        %5047 = vmatprep.mubr.f32.mxu0 0.0
        %v5048 = vand.u32 %v4706, 4294901760
        %v5049 = vsub.f32 %v4706, %v5048
        %5050 = vmatmul.mubr.f32.gmra.mrb[0].mxu0 %v5049
        %v5051 = vpop.f32.mrb[0].mxu0
        %v5052 = vadd.f32 %v4944, %v5051
        %v5053 = vpop.f32.mrb[0].mxu0
        %5054 = vmatprep.mubr.f32.mxu0 0.0
        %v5055 = vand.u32 %v4709, 4294901760
        %v5056 = vsub.f32 %v4709, %v5055
        %5057 = vmatmul.mubr.f32.gmra.mrb[0].mxu0 %v5056
        %v5058 = vpop.f32.mrb[0].mxu0
        %v5059 = vadd.f32 %v4950, %v5058
        %v5060 = vpop.f32.mrb[0].mxu0
        %5061 = vdwg.mxu0
        %5062 = vmatprep.subr.mxu0 0.0
        %v5063 = vand.u32 %v4676, 4294901760
        %5064 = vmatpush1.msra.mxu0 %v5063
        %5065 = vmatprep.subr.mxu0 0.0
        %v5066 = vand.u32 %v4678, 4294901760
        %5067 = vmatpush1.msra.mxu0 %v5066
        %5068 = vmatprep.subr.mxu0 0.0
        %v5069 = vand.u32 %v4680, 4294901760
        %5070 = vmatpush1.msra.mxu0 %v5069
        %5071 = vmatprep.subr.mxu0 0.0
        %v5072 = vand.u32 %v4682, 4294901760
        %5073 = vmatpush1.msra.mxu0 %v5072
        %5074 = vmatprep.subr.mxu0 0.0
        %v5075 = vand.u32 %v4684, 4294901760
        %5076 = vmatpush1.msra.mxu0 %v5075
        %5077 = vmatprep.subr.mxu0 0.0
        %v5078 = vand.u32 %v4686, 4294901760
        %5079 = vmatpush1.msra.mxu0 %v5078
        %5080 = vmatprep.subr.mxu0 0.0
        %v5081 = vand.u32 %v4688, 4294901760
        %5082 = vmatpush1.msra.mxu0 %v5081
        %5083 = vmatprep.subr.mxu0 0.0
        %v5084 = vand.u32 %v4690, 4294901760
        %5085 = vmatpush1.msra.mxu0 %v5084
        %5086 = vmatprep.subr.mxu0 0.0
        %5087 = vmatpush1.msra.mxu0 0.0
        %5088 = vmatprep.subr.mxu0 0.0
        %5089 = vmatpush1.msra.mxu0 0.0
        %5090 = vmatprep.subr.mxu0 0.0
        %5091 = vmatpush1.msra.mxu0 0.0
        %5092 = vmatprep.subr.mxu0 0.0
        %5093 = vmatpush1.msra.mxu0 0.0
        %5094 = vmatprep.subr.mxu0 0.0
        %5095 = vmatpush1.msra.mxu0 0.0
        %5096 = vmatprep.subr.mxu0 0.0
        %5097 = vmatpush1.msra.mxu0 0.0
        %5098 = vmatprep.subr.mxu0 0.0
        %5099 = vmatpush1.msra.mxu0 0.0
        %5100 = vmatprep.subr.mxu0 0.0
        %5101 = vmatpush1.msra.mxu0 0.0
        %5102 = vmatprep.subr.mxu0 0.0
        %5103 = vmatpush1.msra.mxu0 0.0
        %5104 = vmatprep.subr.mxu0 0.0
        %5105 = vmatpush1.msra.mxu0 0.0
        %5106 = vmatprep.subr.mxu0 0.0
        %5107 = vmatpush1.msra.mxu0 0.0
        %5108 = vmatprep.subr.mxu0 0.0
        %5109 = vmatpush1.msra.mxu0 0.0
        %5110 = vmatprep.subr.mxu0 0.0
        %5111 = vmatpush1.msra.mxu0 0.0
        %5112 = vmatprep.subr.mxu0 0.0
        %5113 = vmatpush1.msra.mxu0 0.0
        %5114 = vmatprep.subr.mxu0 0.0
        %5115 = vmatpush1.msra.mxu0 0.0
        %5116 = vmatprep.subr.mxu0 0.0
        %5117 = vmatpush1.msra.mxu0 0.0
        %5118 = vmatprep.subr.mxu0 0.0
        %5119 = vmatpush1.msra.mxu0 0.0
        %5120 = vmatprep.subr.mxu0 0.0
        %5121 = vmatpush1.msra.mxu0 0.0
        %5122 = vmatprep.subr.mxu0 0.0
        %5123 = vmatpush1.msra.mxu0 0.0
        %5124 = vmatprep.subr.mxu0 0.0
        %5125 = vmatpush1.msra.mxu0 0.0
        %5126 = vmatprep.subr.mxu0 0.0
        %5127 = vmatpush1.msra.mxu0 0.0
        %5128 = vmatprep.subr.mxu0 0.0
        %5129 = vmatpush1.msra.mxu0 0.0
        %5130 = vmatprep.subr.mxu0 0.0
        %5131 = vmatpush1.msra.mxu0 0.0
        %5132 = vmatprep.subr.mxu0 0.0
        %5133 = vmatpush1.msra.mxu0 0.0
        %5134 = vmatprep.mubr.f32.mxu0 0.0
        %v5135 = vand.u32 %v4700, 4294901760
        %v5136 = vsub.f32 %v4700, %v5135
        %v5137 = vand.u32 %v5136, 4294901760
        %5138 = vmatmul.mubr.f32.gmra.mrb[0].mxu0 %v5137
        %v5139 = vpop.f32.mrb[0].mxu0
        %v5140 = vadd.f32 %v5038, %v5139
        %v5141 = vpop.f32.mrb[0].mxu0
        %5142 = vmatprep.mubr.f32.mxu0 0.0
        %v5143 = vand.u32 %v4703, 4294901760
        %v5144 = vsub.f32 %v4703, %v5143
        %v5145 = vand.u32 %v5144, 4294901760
        %5146 = vmatmul.mubr.f32.gmra.mrb[0].mxu0 %v5145
        %v5147 = vpop.f32.mrb[0].mxu0
        %v5148 = vadd.f32 %v5045, %v5147
        %v5149 = vpop.f32.mrb[0].mxu0
        %5150 = vmatprep.mubr.f32.mxu0 0.0
        %v5151 = vand.u32 %v4706, 4294901760
        %v5152 = vsub.f32 %v4706, %v5151
        %v5153 = vand.u32 %v5152, 4294901760
        %5154 = vmatmul.mubr.f32.gmra.mrb[0].mxu0 %v5153
        %v5155 = vpop.f32.mrb[0].mxu0
        %v5156 = vadd.f32 %v5052, %v5155
        %v5157 = vpop.f32.mrb[0].mxu0
        %5158 = vmatprep.mubr.f32.mxu0 0.0
        %v5159 = vand.u32 %v4709, 4294901760
        %v5160 = vsub.f32 %v4709, %v5159
        %v5161 = vand.u32 %v5160, 4294901760
        %5162 = vmatmul.mubr.f32.gmra.mrb[0].mxu0 %v5161
        %v5163 = vpop.f32.mrb[0].mxu0
        %v5164 = vadd.f32 %v5059, %v5163
        %v5165 = vpop.f32.mrb[0].mxu0
        %5166 = vdwg.mxu0
        %5167 = vmatprep.subr.mxu0 0.0
        %v5168 = vand.u32 %v4676, 4294901760
        %v5169 = vsub.f32 %v4676, %v5168
        %v5170 = vand.u32 %v5169, 4294901760
        %5171 = vmatpush1.msra.mxu0 %v5170
        %5172 = vmatprep.subr.mxu0 0.0
        %v5173 = vand.u32 %v4678, 4294901760
        %v5174 = vsub.f32 %v4678, %v5173
        %v5175 = vand.u32 %v5174, 4294901760
        %5176 = vmatpush1.msra.mxu0 %v5175
        %5177 = vmatprep.subr.mxu0 0.0
        %v5178 = vand.u32 %v4680, 4294901760
        %v5179 = vsub.f32 %v4680, %v5178
        %v5180 = vand.u32 %v5179, 4294901760
        %5181 = vmatpush1.msra.mxu0 %v5180
        %5182 = vmatprep.subr.mxu0 0.0
        %v5183 = vand.u32 %v4682, 4294901760
        %v5184 = vsub.f32 %v4682, %v5183
        %v5185 = vand.u32 %v5184, 4294901760
        %5186 = vmatpush1.msra.mxu0 %v5185
        %5187 = vmatprep.subr.mxu0 0.0
        %v5188 = vand.u32 %v4684, 4294901760
        %v5189 = vsub.f32 %v4684, %v5188
        %v5190 = vand.u32 %v5189, 4294901760
        %5191 = vmatpush1.msra.mxu0 %v5190
        %5192 = vmatprep.subr.mxu0 0.0
        %v5193 = vand.u32 %v4686, 4294901760
        %v5194 = vsub.f32 %v4686, %v5193
        %v5195 = vand.u32 %v5194, 4294901760
        %5196 = vmatpush1.msra.mxu0 %v5195
        %5197 = vmatprep.subr.mxu0 0.0
        %v5198 = vand.u32 %v4688, 4294901760
        %v5199 = vsub.f32 %v4688, %v5198
        %v5200 = vand.u32 %v5199, 4294901760
        %5201 = vmatpush1.msra.mxu0 %v5200
        %5202 = vmatprep.subr.mxu0 0.0
        %v5203 = vand.u32 %v4690, 4294901760
        %v5204 = vsub.f32 %v4690, %v5203
        %v5205 = vand.u32 %v5204, 4294901760
        %5206 = vmatpush1.msra.mxu0 %v5205
        %5207 = vmatprep.subr.mxu0 0.0
        %5208 = vmatpush1.msra.mxu0 0.0
        %5209 = vmatprep.subr.mxu0 0.0
        %5210 = vmatpush1.msra.mxu0 0.0
        %5211 = vmatprep.subr.mxu0 0.0
        %5212 = vmatpush1.msra.mxu0 0.0
        %5213 = vmatprep.subr.mxu0 0.0
        %5214 = vmatpush1.msra.mxu0 0.0
        %5215 = vmatprep.subr.mxu0 0.0
        %5216 = vmatpush1.msra.mxu0 0.0
        %5217 = vmatprep.subr.mxu0 0.0
        %5218 = vmatpush1.msra.mxu0 0.0
        %5219 = vmatprep.subr.mxu0 0.0
        %5220 = vmatpush1.msra.mxu0 0.0
        %5221 = vmatprep.subr.mxu0 0.0
        %5222 = vmatpush1.msra.mxu0 0.0
        %5223 = vmatprep.subr.mxu0 0.0
        %5224 = vmatpush1.msra.mxu0 0.0
        %5225 = vmatprep.subr.mxu0 0.0
        %5226 = vmatpush1.msra.mxu0 0.0
        %5227 = vmatprep.subr.mxu0 0.0
        %5228 = vmatpush1.msra.mxu0 0.0
        %5229 = vmatprep.subr.mxu0 0.0
        %5230 = vmatpush1.msra.mxu0 0.0
        %5231 = vmatprep.subr.mxu0 0.0
        %5232 = vmatpush1.msra.mxu0 0.0
        %5233 = vmatprep.subr.mxu0 0.0
        %5234 = vmatpush1.msra.mxu0 0.0
        %5235 = vmatprep.subr.mxu0 0.0
        %5236 = vmatpush1.msra.mxu0 0.0
        %5237 = vmatprep.subr.mxu0 0.0
        %5238 = vmatpush1.msra.mxu0 0.0
        %5239 = vmatprep.subr.mxu0 0.0
        %5240 = vmatpush1.msra.mxu0 0.0
        %5241 = vmatprep.subr.mxu0 0.0
        %5242 = vmatpush1.msra.mxu0 0.0
        %5243 = vmatprep.subr.mxu0 0.0
        %5244 = vmatpush1.msra.mxu0 0.0
        %5245 = vmatprep.subr.mxu0 0.0
        %5246 = vmatpush1.msra.mxu0 0.0
        %5247 = vmatprep.subr.mxu0 0.0
        %5248 = vmatpush1.msra.mxu0 0.0
        %5249 = vmatprep.subr.mxu0 0.0
        %5250 = vmatpush1.msra.mxu0 0.0
        %5251 = vmatprep.subr.mxu0 0.0
        %5252 = vmatpush1.msra.mxu0 0.0
        %5253 = vmatprep.subr.mxu0 0.0
        %5254 = vmatpush1.msra.mxu0 0.0
        %5255 = vmatprep.mubr.f32.mxu0 0.0
        %v5256 = vand.u32 %v4700, 4294901760
        %5257 = vmatmul.mubr.f32.gmra.mrb[0].mxu0 %v5256
        %v5258 = vpop.f32.mrb[0].mxu0
        %v5259 = vadd.f32 %v5140, %v5258
        %v5260 = vpop.f32.mrb[0].mxu0
        %5261 = vmatprep.mubr.f32.mxu0 0.0
        %v5262 = vand.u32 %v4703, 4294901760
        %5263 = vmatmul.mubr.f32.gmra.mrb[0].mxu0 %v5262
        %v5264 = vpop.f32.mrb[0].mxu0
        %v5265 = vadd.f32 %v5148, %v5264
        %v5266 = vpop.f32.mrb[0].mxu0
        %5267 = vmatprep.mubr.f32.mxu0 0.0
        %v5268 = vand.u32 %v4706, 4294901760
        %5269 = vmatmul.mubr.f32.gmra.mrb[0].mxu0 %v5268
        %v5270 = vpop.f32.mrb[0].mxu0
        %v5271 = vadd.f32 %v5156, %v5270
        %v5272 = vpop.f32.mrb[0].mxu0
        %5273 = vmatprep.mubr.f32.mxu0 0.0
        %v5274 = vand.u32 %v4709, 4294901760
        %5275 = vmatmul.mubr.f32.gmra.mrb[0].mxu0 %v5274
        %v5276 = vpop.f32.mrb[0].mxu0
        %v5277 = vadd.f32 %v5164, %v5276
        %v5278 = vpop.f32.mrb[0].mxu0
        %5279 = vdwg.mxu0
        %5280 = vmatprep.subr.mxu0 0.0
        %v5281 = vand.u32 %v4676, 4294901760
        %5282 = vmatpush1.msra.mxu0 %v5281
        %5283 = vmatprep.subr.mxu0 0.0
        %v5284 = vand.u32 %v4678, 4294901760
        %5285 = vmatpush1.msra.mxu0 %v5284
        %5286 = vmatprep.subr.mxu0 0.0
        %v5287 = vand.u32 %v4680, 4294901760
        %5288 = vmatpush1.msra.mxu0 %v5287
        %5289 = vmatprep.subr.mxu0 0.0
        %v5290 = vand.u32 %v4682, 4294901760
        %5291 = vmatpush1.msra.mxu0 %v5290
        %5292 = vmatprep.subr.mxu0 0.0
        %v5293 = vand.u32 %v4684, 4294901760
        %5294 = vmatpush1.msra.mxu0 %v5293
        %5295 = vmatprep.subr.mxu0 0.0
        %v5296 = vand.u32 %v4686, 4294901760
        %5297 = vmatpush1.msra.mxu0 %v5296
        %5298 = vmatprep.subr.mxu0 0.0
        %v5299 = vand.u32 %v4688, 4294901760
        %5300 = vmatpush1.msra.mxu0 %v5299
        %5301 = vmatprep.subr.mxu0 0.0
        %v5302 = vand.u32 %v4690, 4294901760
        %5303 = vmatpush1.msra.mxu0 %v5302
        %5304 = vmatprep.subr.mxu0 0.0
        %5305 = vmatpush1.msra.mxu0 0.0
        %5306 = vmatprep.subr.mxu0 0.0
        %5307 = vmatpush1.msra.mxu0 0.0
        %5308 = vmatprep.subr.mxu0 0.0
        %5309 = vmatpush1.msra.mxu0 0.0
        %5310 = vmatprep.subr.mxu0 0.0
        %5311 = vmatpush1.msra.mxu0 0.0
        %5312 = vmatprep.subr.mxu0 0.0
        %5313 = vmatpush1.msra.mxu0 0.0
        %5314 = vmatprep.subr.mxu0 0.0
        %5315 = vmatpush1.msra.mxu0 0.0
        %5316 = vmatprep.subr.mxu0 0.0
        %5317 = vmatpush1.msra.mxu0 0.0
        %5318 = vmatprep.subr.mxu0 0.0
        %5319 = vmatpush1.msra.mxu0 0.0
        %5320 = vmatprep.subr.mxu0 0.0
        %5321 = vmatpush1.msra.mxu0 0.0
        %5322 = vmatprep.subr.mxu0 0.0
        %5323 = vmatpush1.msra.mxu0 0.0
        %5324 = vmatprep.subr.mxu0 0.0
        %5325 = vmatpush1.msra.mxu0 0.0
        %5326 = vmatprep.subr.mxu0 0.0
        %5327 = vmatpush1.msra.mxu0 0.0
        %5328 = vmatprep.subr.mxu0 0.0
        %5329 = vmatpush1.msra.mxu0 0.0
        %5330 = vmatprep.subr.mxu0 0.0
        %5331 = vmatpush1.msra.mxu0 0.0
        %5332 = vmatprep.subr.mxu0 0.0
        %5333 = vmatpush1.msra.mxu0 0.0
        %5334 = vmatprep.subr.mxu0 0.0
        %5335 = vmatpush1.msra.mxu0 0.0
        %5336 = vmatprep.subr.mxu0 0.0
        %5337 = vmatpush1.msra.mxu0 0.0
        %5338 = vmatprep.subr.mxu0 0.0
        %5339 = vmatpush1.msra.mxu0 0.0
        %5340 = vmatprep.subr.mxu0 0.0
        %5341 = vmatpush1.msra.mxu0 0.0
        %5342 = vmatprep.subr.mxu0 0.0
        %5343 = vmatpush1.msra.mxu0 0.0
        %5344 = vmatprep.subr.mxu0 0.0
        %5345 = vmatpush1.msra.mxu0 0.0
        %5346 = vmatprep.subr.mxu0 0.0
        %5347 = vmatpush1.msra.mxu0 0.0
        %5348 = vmatprep.subr.mxu0 0.0
        %5349 = vmatpush1.msra.mxu0 0.0
        %5350 = vmatprep.subr.mxu0 0.0
        %5351 = vmatpush1.msra.mxu0 0.0
        %5352 = vmatprep.mubr.f32.mxu0 0.0
        %v5353 = vand.u32 %v4700, 4294901760
        %5354 = vmatmul.mubr.f32.gmra.mrb[0].mxu0 %v5353
        %v5355 = vpop.f32.mrb[0].mxu0
        %v5356 = vadd.f32 %v5259, %v5355
        %v5357 = vpop.f32.mrb[0].mxu0
        %5358 = vmatprep.mubr.f32.mxu0 0.0
        %v5359 = vand.u32 %v4703, 4294901760
        %5360 = vmatmul.mubr.f32.gmra.mrb[0].mxu0 %v5359
        %v5361 = vpop.f32.mrb[0].mxu0
        %v5362 = vadd.f32 %v5265, %v5361
        %v5363 = vpop.f32.mrb[0].mxu0
        %5364 = vmatprep.mubr.f32.mxu0 0.0
        %v5365 = vand.u32 %v4706, 4294901760
        %5366 = vmatmul.mubr.f32.gmra.mrb[0].mxu0 %v5365
        %v5367 = vpop.f32.mrb[0].mxu0
        %v5368 = vadd.f32 %v5271, %v5367
        %v5369 = vpop.f32.mrb[0].mxu0
        %5370 = vmatprep.mubr.f32.mxu0 0.0
        %v5371 = vand.u32 %v4709, 4294901760
        %5372 = vmatmul.mubr.f32.gmra.mrb[0].mxu0 %v5371
        %v5373 = vpop.f32.mrb[0].mxu0
        %v5374 = vadd.f32 %v5277, %v5373
        %v5375 = vpop.f32.mrb[0].mxu0
        %5376 = vdwg.mxu0
        %5381 = vrot.lane.b32.xlu0 %v3792, 16
        %v5382 = vpop.permute.xlu0 %5381
        %5383 = vrot.lane.b32.xlu0 %v3798, 16
        %v5384 = vpop.permute.xlu0 %5383
        %5385 = vrot.lane.b32.xlu0 %v3804, 16
        %v5386 = vpop.permute.xlu0 %5385
        %5387 = vrot.lane.b32.xlu0 %v3810, 16
        %v5388 = vpop.permute.xlu0 %5387
        %5397 = vrot.lane.b32.xlu0 %v4574, 32
        %v5398 = vpop.permute.xlu0 %5397
        %5399 = vrot.lane.b32.xlu0 %v4580, 32
        %v5400 = vpop.permute.xlu0 %5399
        %5401 = vrot.lane.b32.xlu0 %v4586, 32
        %v5402 = vpop.permute.xlu0 %5401
        %5403 = vrot.lane.b32.xlu0 %v4592, 32
        %v5404 = vpop.permute.xlu0 %5403
        %5413 = vrot.lane.b32.xlu0 %v5356, 48
        %v5414 = vpop.permute.xlu0 %5413
        %5415 = vrot.lane.b32.xlu0 %v5362, 48
        %v5416 = vpop.permute.xlu0 %5415
        %5417 = vrot.lane.b32.xlu0 %v5368, 48
        %v5418 = vpop.permute.xlu0 %5417
        %5419 = vrot.lane.b32.xlu0 %v5374, 48
        %v5420 = vpop.permute.xlu0 %5419
        %vm5425 = vcmask 130048
        %v5426 = vsel %vm5425, %v3002, %v5382
        %v5427 = vsel %vm5425, %v3008, %v5384
        %v5428 = vsel %vm5425, %v3014, %v5386
        %v5429 = vsel %vm5425, %v3020, %v5388
        %v5430 = vsel %vm314, %v5426, %v5398
        %v5431 = vsel %vm314, %v5427, %v5400
        %v5432 = vsel %vm314, %v5428, %v5402
        %v5433 = vsel %vm314, %v5429, %v5404
        %vm5434 = vcmask 392192
        %v5435 = vsel %vm5434, %v5430, %v5414
        %v5436 = vsel %vm5434, %v5431, %v5416
        %v5437 = vsel %vm5434, %v5432, %v5418
        %v5438 = vsel %vm5434, %v5433, %v5420
        %5439 = vst.msk [vmem:[%s288] sm:$0xff] %vm2300, %v5435
        %5440 = vst.msk [vmem:[%s288 + $0x8] sm:$0xff] %vm2300, %v5436
        %5441 = vst.msk [vmem:[%s288 + $0x10] sm:$0xff] %vm2300, %v5437
        %5442 = vst.msk [vmem:[%s288 + $0x18] sm:$0xff] %vm2300, %v5438
        %s5443 = sand.u32 %s186, 1
        %s5444 = scalar_lea.sflag [#allocation3], %s5443
        %s5445 = sand.u32 %s186, 1
        %s5446 = smul.addr %s5445, 32
        %s5447 = scalar_lea.vmem [#allocation2], %s5446
        // Predicated region
        $region49: #{tpu_custom_call.1} parent=47 // pred_check
          %p5448 = pneg %p196
        $region50: #{tpu_custom_call.1} parent=47 // pred_check_branch
          %5450 = sbr.rel (%p5448) target = $region52
        $region51: #{tpu_custom_call.1} parent=47 // pred_region
          %s5451 = smul.u32 4, %s21
          %s5453 = ssub.s32 512, 512
          %5454 = vsyncadd %s5444, %s5453
          %s5455 = smul.addr %s5451, 128
          %s5456 = scalar_lea.hbm %s7, %s5455
          %s5457 = sshll.u32 %s5447, 4
          %s5458 = int_to_ptr.vmem [resolvable:$true] %s5457
          %5463 = dma.vmem_to_hbm [thread:$0]  %s5458, 512, %s5456, %s5444, 128, 128, 8
        $region52: #{tpu_custom_call.1} parent=47 // pred_fallthru
          _
      $region48: #{tpu_custom_call.1} parent=5 // pred_fallthru
        _
      %p5464 = scmp.le.s32.totalorder 2, %s16
      // Predicated region
      $region53: #{tpu_custom_call.1} parent=5 // pred_check
        %p5465 = pneg %p5464
      $region54: #{tpu_custom_call.1} parent=5 // pred_check_branch
        %5467 = sbr.rel (%p5465) target = $region56
      $region55: #{tpu_custom_call.1} parent=5 // pred_region
        %s5468 = ssub.s32 %s16, 2
        // Predicated region
        $region57: #{tpu_custom_call.1} parent=55 // pred_check
          %p5469 = pneg %p202
        $region58: #{tpu_custom_call.1} parent=55 // pred_check_branch
          %5471 = sbr.rel (%p5469) target = $region60
        $region59: #{tpu_custom_call.1} parent=55 // pred_region
          %s5472 = sand.u32 %s187, 1
          %s5473 = scalar_lea.sflag [#allocation3], %s5472
          %s5474 = sand.u32 %s187, 1
          %s5475 = smul.addr %s5474, 32
          %s5476 = scalar_lea.vmem [#allocation2], %s5475
          %5477 = dma.done %s5473, 512
        $region60: #{tpu_custom_call.1} parent=55 // pred_fallthru
          _
      $region56: #{tpu_custom_call.1} parent=5 // pred_fallthru
        _
    $region6: #{tpu_custom_call.1} parent=1 // loop_footer
      %s20 = sadd.s32 1, %s16
    $region7: #{tpu_custom_call.1} parent=1 // loop_footer_branch
      %15 = sbr.rel target = $region3
    $region8: #{tpu_custom_call.1} parent=1 // loop_exit
      _
    %5478 = vsyncpa [#allocation3], 1
    %s5479 = scalar_lea.sflag [#allocation3], 1
    %5480 = vsyncpa %s5479, 1

</llo_original>
